<compile_context>
chip_gen: v5e
topology: v5e:2x2
jax: 0.10.0
libtpu: 0.0.40
codegen_flags: <defaults>
</compile_context>

<pallas_src>
import functools

import jax
import jax.numpy as jnp
from jax import lax
from jax.experimental import pallas as pl
from jax.experimental.pallas import tpu as pltpu


# ----------------------------- Pallas kernel --------------------------------


def multivae_kernel(
    x_ref, eps_ref,
    w1_ref, b1_ref,          # encoder layer 0: (n_items, hidden) bf16, (1, hidden) f32
    w2_ref, b2_ref,          # encoder layer 1 (fused mu|logvar): (hidden, 2*latent), (1, 2*latent)
    w3_ref, b3_ref,          # decoder layer 0: (latent, hidden), (1, hidden)
    w4_ref, b4_ref,          # decoder layer 1 column block: (hidden, tn), (1, tn)
    logits_ref, mulogvar_ref,
    d_scratch,               # VMEM (tb, hidden) bf16: decoder hidden activation
):
    j = pl.program_id(1)     # logits column block index
    latent = eps_ref.shape[1]

    # Encoder + sample + first decoder layer: only once per batch block.
    @pl.when(j == 0)
    def _():
        x = x_ref[...]                                    # f32 (tb, n_items)

        # functional.normalize(input, p=2, dim=1): x / max(||x||_2, 1e-12).
        # Single EUP transcendental: rsqrt(max(sum_sq, 1e-24)) == 1/max(||x||, 1e-12).
        sq = jnp.sum(x * x, axis=1, keepdims=True)
        inv_norm = lax.rsqrt(jnp.maximum(sq, 1e-24))
        h = (x * inv_norm).astype(jnp.bfloat16)

        # TODO(synk): nn.Dropout(0.5) is identity here (eval-mode semantics);
        # training-mode dropout would use pltpu.prng_seed + pltpu.stateful_bernoulli.

        # ----- q network -----
        h = jnp.dot(h, w1_ref[...], preferred_element_type=jnp.float32) + b1_ref[...]
        h = jnp.maximum(h, 0.0).astype(jnp.bfloat16)      # ReLU (not on last q layer)

        mv = jnp.dot(h, w2_ref[...], preferred_element_type=jnp.float32) + b2_ref[...]
        mu = mv[:, :latent]
        logvar = mv[:, latent:]

        # ----- reparameterization sample (f32 elementwise, bf16 only at the dot) ---
        std = jnp.exp(0.5 * logvar)
        z = (mu + eps_ref[...] * std).astype(jnp.bfloat16)

        # ----- p network, first layer -----
        d = jnp.dot(z, w3_ref[...], preferred_element_type=jnp.float32) + b3_ref[...]
        d_scratch[...] = jnp.maximum(d, 0.0).astype(jnp.bfloat16)

        mulogvar_ref[...] = mv

    # ----- p network, last layer: lane-dense logits column block (every j) -----
    logits_ref[...] = (
        jnp.dot(d_scratch[...], w4_ref[...], preferred_element_type=jnp.float32)
        + b4_ref[...]
    ).astype(logits_ref.dtype)


# ------------------------------ wrapper --------------------------------------


@functools.partial(
    jax.jit, static_argnames=("tb", "tn", "logits_dtype", "vmem_limit_mb")
)
def multivae_forward(x, eps, params, *, tb=128, tn=512,
                     logits_dtype=jnp.bfloat16, vmem_limit_mb=32):
    """Returns (logits, mu, logvar) like MultiVAE.forward (eval dropout).

    tb: batch row tile. 128 keeps >=2 batch blocks for megacore sharding on v7x;
        on v5e/v6e (128 MiB VMEM) tb=256 halves per-output w4 read traffic at
        production shapes.
    tn: logits column tile (multiple of 128; 512 default -> 256-multiple for the
        v6e/v7x MXU and ~4x fewer grid steps than 128).
    """
    w1, b1 = params["w1"], params["b1"]
    w2, b2 = params["w2"], params["b2"]
    w3, b3 = params["w3"], params["b3"]
    w4, b4 = params["w4"], params["b4"]

    B, n_items = x.shape
    latent = eps.shape[1]
    hidden = w1.shape[1]

    # --- logits column tiling: pad n_items up to a multiple of tn (no fallback
    # to one giant block).  Padded w4/b4 columns are zero and sliced off below.
    tn = min(tn, pl.cdiv(n_items, 128) * 128)
    Np = pl.cdiv(n_items, tn) * tn
    if Np != n_items:
        w4 = jnp.pad(w4, ((0, 0), (0, Np - n_items)))
        b4 = jnp.pad(b4, ((0, 0), (0, Np - n_items)))

    # --- pad batch up to a multiple of the row tile (zero rows are harmless:
    # the norm clamp keeps them finite; they are sliced off below).
    Bp = pl.cdiv(B, tb) * tb
    if Bp != B:
        x = jnp.pad(x, ((0, Bp - B), (0, 0)))
        eps = jnp.pad(eps, ((0, Bp - B), (0, 0)))

    grid = (Bp // tb, Np // tn)

    # Constant-index weights: single-buffered (index_map never changes, so the
    # default double-buffering would only double resident VMEM).
    resident = lambda shape: pl.BlockSpec(
        shape, lambda i, j: (0, 0), pipeline_mode=pl.Buffered(1))

    in_specs = [
        pl.BlockSpec((tb, n_items), lambda i, j: (i, 0)),   # x
        pl.BlockSpec((tb, latent), lambda i, j: (i, 0)),    # eps
        resident((n_items, hidden)),                        # w1
        resident((1, hidden)),                              # b1
        resident((hidden, 2 * latent)),                     # w2 (mu|logvar fused)
        resident((1, 2 * latent)),                          # b2
        resident((latent, hidden)),                         # w3
        resident((1, hidden)),                              # b3
        pl.BlockSpec((hidden, tn), lambda i, j: (0, j)),    # w4 column block
        pl.BlockSpec((1, tn), lambda i, j: (0, j)),         # b4 column block
    ]
    out_specs = (
        pl.BlockSpec((tb, tn), lambda i, j: (i, j)),        # logits (lane-dense)
        pl.BlockSpec((tb, 2 * latent), lambda i, j: (i, 0)),  # mu|logvar (resident over j)
    )
    out_shapes = (
        jax.ShapeDtypeStruct((Bp, Np), logits_dtype),
        jax.ShapeDtypeStruct((Bp, 2 * latent), jnp.float32),
    )

    logits, mulogvar = pl.pallas_call(
        multivae_kernel,
        out_shape=out_shapes,
        grid_spec=pltpu.PrefetchScalarGridSpec(
            num_scalar_prefetch=0,
            grid=grid,
            in_specs=in_specs,
            out_specs=out_specs,
            scratch_shapes=[pltpu.VMEM((tb, hidden), jnp.bfloat16)],
        ),
        compiler_params=pltpu.CompilerParams(
            # Batch axis shards across TCs on v7x; the n_items axis carries the
            # resident encoder state so it must stay "arbitrary" (and last).
            dimension_semantics=("parallel", "arbitrary"),
            # 32 MiB is plenty at demo shapes and safe on all generations.  At
            # production n_items (~20k): raise to ~96 MiB on v5e/v6e; on v7x cap
            # at ~48-56 MiB and K-stream the encoder (see TODO at top of file).
            vmem_limit_bytes=vmem_limit_mb * 1024 * 1024,
        ),
    )(x, eps, w1, b1, w2, b2, w3, b3, w4, b4)

    logits = logits[:B, :n_items]
    mu = mulogvar[:B, :latent]
    logvar = mulogvar[:B, latent:]
    return logits, mu, logvar


# -------------------------- parameter init -----------------------------------


def xavier_uniform(key, d_out, d_in):
    # torch.nn.init.xavier_uniform_ on a (d_out, d_in) Linear weight.
    bound = jnp.sqrt(6.0 / (d_in + d_out))
    w = jax.random.uniform(key, (d_out, d_in), jnp.float32, -bound, bound)
    return w.T  # stored as (d_in, d_out) so the kernel computes y = x @ W + b


def bias_init(key, d_out):
    # torch.nn.init.normal_(bias, mean=0, std=0.001), stored as (1, d_out).
    return 0.001 * jax.random.normal(key, (1, d_out), jnp.float32)


def make_multivae_params(key, p_dims):
    """p_dims = [latent, hidden, n_items] (the standard 3-level MultiVAE config)."""
    latent, hidden, n_items = p_dims
    q_dims = p_dims[::-1]                       # [n_items, hidden, latent]
    keys = iter(jax.random.split(key, 8))

    # q layer 0: n_items -> hidden
    w1 = xavier_uniform(next(keys), q_dims[1], q_dims[0])
    b1 = bias_init(next(keys), q_dims[1])
    # q layer 1: hidden -> 2*latent (fused mu|logvar, like the PyTorch module)
    w2 = xavier_uniform(next(keys), 2 * latent, q_dims[1])
    b2 = bias_init(next(keys), 2 * latent)
    # p layer 0: latent -> hidden ; p layer 1: hidden -> n_items
    w3 = xavier_uniform(next(keys), p_dims[1], p_dims[0])
    b3 = bias_init(next(keys), p_dims[1])
    w4 = xavier_uniform(next(keys), p_dims[2], p_dims[1])
    b4 = bias_init(next(keys), p_dims[2])

    bf16 = jnp.bfloat16
    return {
        "w1": w1.astype(bf16), "b1": b1,
        "w2": w2.astype(bf16), "b2": b2,
        "w3": w3.astype(bf16), "b3": b3,
        "w4": w4.astype(bf16), "b4": b4,
    }


# ------------------------ pure-JAX reference ----------------------------------


def multivae_reference(x, eps, params):
    """Same math (same bf16 cast points) computed with plain jnp, for validation."""
    latent = eps.shape[1]
    sq = jnp.sum(x * x, axis=1, keepdims=True)
    h = (x * lax.rsqrt(jnp.maximum(sq, 1e-24))).astype(jnp.bfloat16)
    h = jnp.dot(h, params["w1"], preferred_element_type=jnp.float32) + params["b1"]
    h = jnp.maximum(h, 0.0).astype(jnp.bfloat16)
    mv = jnp.dot(h, params["w2"], preferred_element_type=jnp.float32) + params["b2"]
    mu, logvar = mv[:, :latent], mv[:, latent:]
    z = (mu + eps * jnp.exp(0.5 * logvar)).astype(jnp.bfloat16)
    d = jnp.dot(z, params["w3"], preferred_element_type=jnp.float32) + params["b3"]
    d = jnp.maximum(d, 0.0).astype(jnp.bfloat16)
    logits = jnp.dot(d, params["w4"], preferred_element_type=jnp.float32) + params["b4"]
    return logits, mu, logvar


# ------------------------------- main -----------------------------------------


if __name__ == "__main__":
    p_dims = [64, 256, 1024]          # [latent, hidden, n_items]
    latent, hidden, n_items = p_dims
    batch = 256                        # two batch blocks at tb=128 (megacore-friendly)

    root = jax.random.PRNGKey(0)
    k_params, k_x, k_eps = jax.random.split(root, 3)

    params = make_multivae_params(k_params, p_dims)

    # Implicit-feedback-style input (non-negative counts), f32 like the module.
    x = (jax.random.uniform(k_x, (batch, n_items)) > 0.7).astype(jnp.float32)
    # epsilon for the reparameterization trick (torch.randn_like equivalent).
    eps = jax.random.normal(k_eps, (batch, latent), jnp.float32)

    logits, mu, logvar = multivae_forward(x, eps, params, tb=128, tn=512)
    jax.block_until_ready((logits, mu, logvar))

    assert logits.shape == (batch, n_items)
    assert mu.shape == (batch, latent)
    assert logvar.shape == (batch, latent)

    ref_logits, ref_mu, ref_logvar = multivae_reference(x, eps, params)
    logits_f32 = logits.astype(jnp.float32)
    assert bool(jnp.all(jnp.isfinite(logits_f32)))
    assert bool(jnp.allclose(logits_f32, ref_logits, rtol=3e-2, atol=3e-2))
    assert bool(jnp.allclose(mu, ref_mu, rtol=3e-2, atol=3e-2))
    assert bool(jnp.allclose(logvar, ref_logvar, rtol=3e-2, atol=3e-2))

    print("KERNEL_OK")
</pallas_src>

<mosaic_0001>
module attributes {stable_mosaic.version = 11 : i64} {
  func.func @multivae_kernel(%arg0: i32, %arg1: i32, %arg2: memref<128x1024xf32, #tpu.memory_space<vmem>>, %arg3: memref<128x64xf32, #tpu.memory_space<vmem>>, %arg4: memref<1024x256xbf16, #tpu.memory_space<vmem>>, %arg5: memref<1x256xf32, #tpu.memory_space<vmem>>, %arg6: memref<256x128xbf16, #tpu.memory_space<vmem>>, %arg7: memref<1x128xf32, #tpu.memory_space<vmem>>, %arg8: memref<64x256xbf16, #tpu.memory_space<vmem>>, %arg9: memref<1x256xf32, #tpu.memory_space<vmem>>, %arg10: memref<256x512xbf16, #tpu.memory_space<vmem>>, %arg11: memref<1x512xf32, #tpu.memory_space<vmem>>, %arg12: memref<128x512xbf16, #tpu.memory_space<vmem>>, %arg13: memref<128x128xf32, #tpu.memory_space<vmem>>, %arg14: memref<128x256xbf16, #tpu.memory_space<vmem>>) attributes {dimension_semantics = [#tpu.dimension_semantics<parallel>, #tpu.dimension_semantics<arbitrary>], iteration_bounds = array<i64: 2, 2>, scalar_prefetch = 0 : i64, scratch_operands = 1 : i64, tpu.core_type = #tpu.core_type<tc>, window_params = [{transform_indices = @transform_0, window_bounds = array<i64: 128, 1024>}, {transform_indices = @transform_1, window_bounds = array<i64: 128, 64>}, {pipeline_mode = #tpu.pipeline_mode<synchronous>, transform_indices = @transform_2, window_bounds = array<i64: 1024, 256>}, {pipeline_mode = #tpu.pipeline_mode<synchronous>, transform_indices = @transform_3, window_bounds = array<i64: 1, 256>}, {pipeline_mode = #tpu.pipeline_mode<synchronous>, transform_indices = @transform_4, window_bounds = array<i64: 256, 128>}, {pipeline_mode = #tpu.pipeline_mode<synchronous>, transform_indices = @transform_5, window_bounds = array<i64: 1, 128>}, {pipeline_mode = #tpu.pipeline_mode<synchronous>, transform_indices = @transform_6, window_bounds = array<i64: 64, 256>}, {pipeline_mode = #tpu.pipeline_mode<synchronous>, transform_indices = @transform_7, window_bounds = array<i64: 1, 256>}, {transform_indices = @transform_8, window_bounds = array<i64: 256, 512>}, {transform_indices = @transform_9, window_bounds = array<i64: 1, 512>}, {transform_indices = @transform_10, window_bounds = array<i64: 128, 512>}, {transform_indices = @transform_11, window_bounds = array<i64: 128, 128>}]} {
    %c0_i32 = arith.constant 0 : i32
    %0 = arith.cmpi eq, %arg1, %c0_i32 : i32
    %1 = arith.extui %0 : i1 to i32
    %c0_i32_0 = arith.constant 0 : i32
    %2 = arith.cmpi ne, %1, %c0_i32_0 : i32
    scf.if %2 {
      %c0_8 = arith.constant 0 : index
      %c0_9 = arith.constant 0 : index
      %11 = vector.load %arg2[%c0_8, %c0_9] : memref<128x1024xf32, #tpu.memory_space<vmem>>, vector<128x1024xf32>
      %12 = arith.mulf %11, %11 : vector<128x1024xf32>
      %cst_10 = arith.constant dense<0.000000e+00> : vector<128xf32>
      %13 = vector.multi_reduction <add>, %12, %cst_10 [1] : vector<128x1024xf32> to vector<128xf32>
      %14 = vector.shape_cast %13 : vector<128xf32> to vector<128x1xf32>
      %cst_11 = arith.constant 1.000000e-24 : f32
      %15 = vector.broadcast %cst_11 : f32 to vector<128x1xf32>
      %16 = arith.maximumf %14, %15 : vector<128x1xf32>
      %17 = math.rsqrt %16 : vector<128x1xf32>
      %18 = vector.broadcast %17 : vector<128x1xf32> to vector<128x1024xf32>
      %19 = arith.mulf %11, %18 : vector<128x1024xf32>
      %20 = arith.truncf %19 : vector<128x1024xf32> to vector<128x1024xbf16>
      %c0_12 = arith.constant 0 : index
      %c0_13 = arith.constant 0 : index
      %21 = vector.load %arg4[%c0_12, %c0_13] : memref<1024x256xbf16, #tpu.memory_space<vmem>>, vector<1024x256xbf16>
      %cst_14 = arith.constant dense<0.000000e+00> : vector<128x256xf32>
      %22 = tpu.matmul %20, %21, %cst_14 {dimension_numbers = #tpu.dot_dimension_numbers<[1], [0], [0], [1], [0, 0, 1, 1], [], []>} : vector<128x1024xbf16>, vector<1024x256xbf16>, vector<128x256xf32> -> vector<128x256xf32>
      %c0_15 = arith.constant 0 : index
      %c0_16 = arith.constant 0 : index
      %23 = vector.load %arg5[%c0_15, %c0_16] : memref<1x256xf32, #tpu.memory_space<vmem>>, vector<1x256xf32>
      %24 = vector.broadcast %23 : vector<1x256xf32> to vector<128x256xf32>
      %25 = arith.addf %22, %24 : vector<128x256xf32>
      %cst_17 = arith.constant 0.000000e+00 : f32
      %26 = vector.broadcast %cst_17 : f32 to vector<128x256xf32>
      %27 = arith.maximumf %25, %26 : vector<128x256xf32>
      %28 = arith.truncf %27 : vector<128x256xf32> to vector<128x256xbf16>
      %c0_18 = arith.constant 0 : index
      %c0_19 = arith.constant 0 : index
      %29 = vector.load %arg6[%c0_18, %c0_19] : memref<256x128xbf16, #tpu.memory_space<vmem>>, vector<256x128xbf16>
      %cst_20 = arith.constant dense<0.000000e+00> : vector<128x128xf32>
      %30 = tpu.matmul %28, %29, %cst_20 {dimension_numbers = #tpu.dot_dimension_numbers<[1], [0], [0], [1], [0, 0, 1, 1], [], []>} : vector<128x256xbf16>, vector<256x128xbf16>, vector<128x128xf32> -> vector<128x128xf32>
      %c0_21 = arith.constant 0 : index
      %c0_22 = arith.constant 0 : index
      %31 = vector.load %arg7[%c0_21, %c0_22] : memref<1x128xf32, #tpu.memory_space<vmem>>, vector<1x128xf32>
      %32 = vector.broadcast %31 : vector<1x128xf32> to vector<128x128xf32>
      %33 = arith.addf %30, %32 : vector<128x128xf32>
      %34 = vector.extract_strided_slice %33 {offsets = [0, 0], sizes = [128, 64], strides = [1, 1]} : vector<128x128xf32> to vector<128x64xf32>
      %35 = vector.extract_strided_slice %33 {offsets = [0, 64], sizes = [128, 64], strides = [1, 1]} : vector<128x128xf32> to vector<128x64xf32>
      %cst_23 = arith.constant 5.000000e-01 : f32
      %36 = vector.broadcast %cst_23 : f32 to vector<128x64xf32>
      %37 = arith.mulf %36, %35 : vector<128x64xf32>
      %38 = math.exp %37 : vector<128x64xf32>
      %c0_24 = arith.constant 0 : index
      %c0_25 = arith.constant 0 : index
      %39 = vector.load %arg3[%c0_24, %c0_25] : memref<128x64xf32, #tpu.memory_space<vmem>>, vector<128x64xf32>
      %40 = arith.mulf %39, %38 : vector<128x64xf32>
      %41 = arith.addf %34, %40 : vector<128x64xf32>
      %42 = arith.truncf %41 : vector<128x64xf32> to vector<128x64xbf16>
      %c0_26 = arith.constant 0 : index
      %c0_27 = arith.constant 0 : index
      %43 = vector.load %arg8[%c0_26, %c0_27] : memref<64x256xbf16, #tpu.memory_space<vmem>>, vector<64x256xbf16>
      %cst_28 = arith.constant dense<0.000000e+00> : vector<128x256xf32>
      %44 = tpu.matmul %42, %43, %cst_28 {dimension_numbers = #tpu.dot_dimension_numbers<[1], [0], [0], [1], [0, 0, 1, 1], [], []>} : vector<128x64xbf16>, vector<64x256xbf16>, vector<128x256xf32> -> vector<128x256xf32>
      %c0_29 = arith.constant 0 : index
      %c0_30 = arith.constant 0 : index
      %45 = vector.load %arg9[%c0_29, %c0_30] : memref<1x256xf32, #tpu.memory_space<vmem>>, vector<1x256xf32>
      %46 = vector.broadcast %45 : vector<1x256xf32> to vector<128x256xf32>
      %47 = arith.addf %44, %46 : vector<128x256xf32>
      %cst_31 = arith.constant 0.000000e+00 : f32
      %48 = vector.broadcast %cst_31 : f32 to vector<128x256xf32>
      %49 = arith.maximumf %47, %48 : vector<128x256xf32>
      %50 = arith.truncf %49 : vector<128x256xf32> to vector<128x256xbf16>
      %c0_32 = arith.constant 0 : index
      %c0_33 = arith.constant 0 : index
      %51 = vector.load %arg14[%c0_32, %c0_33] : memref<128x256xbf16, #tpu.memory_space<vmem>>, vector<128x256xbf16>
      tpu.vector_store %arg14[%c0_32, %c0_33], %50 {strides = array<i32>} : memref<128x256xbf16, #tpu.memory_space<vmem>>, vector<128x256xbf16>,
      %c0_34 = arith.constant 0 : index
      %c0_35 = arith.constant 0 : index
      %52 = vector.load %arg13[%c0_34, %c0_35] : memref<128x128xf32, #tpu.memory_space<vmem>>, vector<128x128xf32>
      tpu.vector_store %arg13[%c0_34, %c0_35], %33 {strides = array<i32>} : memref<128x128xf32, #tpu.memory_space<vmem>>, vector<128x128xf32>,
    } else {
    }
    %c0 = arith.constant 0 : index
    %c0_1 = arith.constant 0 : index
    %3 = vector.load %arg14[%c0, %c0_1] : memref<128x256xbf16, #tpu.memory_space<vmem>>, vector<128x256xbf16>
    %c0_2 = arith.constant 0 : index
    %c0_3 = arith.constant 0 : index
    %4 = vector.load %arg10[%c0_2, %c0_3] : memref<256x512xbf16, #tpu.memory_space<vmem>>, vector<256x512xbf16>
    %cst = arith.constant dense<0.000000e+00> : vector<128x512xf32>
    %5 = tpu.matmul %3, %4, %cst {dimension_numbers = #tpu.dot_dimension_numbers<[1], [0], [0], [1], [0, 0, 1, 1], [], []>} : vector<128x256xbf16>, vector<256x512xbf16>, vector<128x512xf32> -> vector<128x512xf32>
    %c0_4 = arith.constant 0 : index
    %c0_5 = arith.constant 0 : index
    %6 = vector.load %arg11[%c0_4, %c0_5] : memref<1x512xf32, #tpu.memory_space<vmem>>, vector<1x512xf32>
    %7 = vector.broadcast %6 : vector<1x512xf32> to vector<128x512xf32>
    %8 = arith.addf %5, %7 : vector<128x512xf32>
    %9 = arith.truncf %8 : vector<128x512xf32> to vector<128x512xbf16>
    %c0_6 = arith.constant 0 : index
    %c0_7 = arith.constant 0 : index
    %10 = vector.load %arg12[%c0_6, %c0_7] : memref<128x512xbf16, #tpu.memory_space<vmem>>, vector<128x512xbf16>
    tpu.vector_store %arg12[%c0_6, %c0_7], %9 {strides = array<i32>} : memref<128x512xbf16, #tpu.memory_space<vmem>>, vector<128x512xbf16>,
    return
  }
  func.func @transform_0(%arg0: i32, %arg1: i32) -> (i32, i32) {
    %c0_i32 = arith.constant 0 : i32
    %c0_i32_0 = arith.constant 0 : i32
    return %arg0, %c0_i32 : i32, i32
  }
  func.func @transform_1(%arg0: i32, %arg1: i32) -> (i32, i32) {
    %c0_i32 = arith.constant 0 : i32
    %c0_i32_0 = arith.constant 0 : i32
    return %arg0, %c0_i32 : i32, i32
  }
  func.func @transform_2(%arg0: i32, %arg1: i32) -> (i32, i32) {
    %c0_i32 = arith.constant 0 : i32
    %c0_i32_0 = arith.constant 0 : i32
    %c0_i32_1 = arith.constant 0 : i32
    return %c0_i32, %c0_i32_0 : i32, i32
  }
  func.func @transform_3(%arg0: i32, %arg1: i32) -> (i32, i32) {
    %c0_i32 = arith.constant 0 : i32
    %c0_i32_0 = arith.constant 0 : i32
    %c0_i32_1 = arith.constant 0 : i32
    return %c0_i32, %c0_i32_0 : i32, i32
  }
  func.func @transform_4(%arg0: i32, %arg1: i32) -> (i32, i32) {
    %c0_i32 = arith.constant 0 : i32
    %c0_i32_0 = arith.constant 0 : i32
    %c0_i32_1 = arith.constant 0 : i32
    return %c0_i32, %c0_i32_0 : i32, i32
  }
  func.func @transform_5(%arg0: i32, %arg1: i32) -> (i32, i32) {
    %c0_i32 = arith.constant 0 : i32
    %c0_i32_0 = arith.constant 0 : i32
    %c0_i32_1 = arith.constant 0 : i32
    return %c0_i32, %c0_i32_0 : i32, i32
  }
  func.func @transform_6(%arg0: i32, %arg1: i32) -> (i32, i32) {
    %c0_i32 = arith.constant 0 : i32
    %c0_i32_0 = arith.constant 0 : i32
    %c0_i32_1 = arith.constant 0 : i32
    return %c0_i32, %c0_i32_0 : i32, i32
  }
  func.func @transform_7(%arg0: i32, %arg1: i32) -> (i32, i32) {
    %c0_i32 = arith.constant 0 : i32
    %c0_i32_0 = arith.constant 0 : i32
    %c0_i32_1 = arith.constant 0 : i32
    return %c0_i32, %c0_i32_0 : i32, i32
  }
  func.func @transform_8(%arg0: i32, %arg1: i32) -> (i32, i32) {
    %c0_i32 = arith.constant 0 : i32
    %c0_i32_0 = arith.constant 0 : i32
    return %c0_i32, %arg1 : i32, i32
  }
  func.func @transform_9(%arg0: i32, %arg1: i32) -> (i32, i32) {
    %c0_i32 = arith.constant 0 : i32
    %c0_i32_0 = arith.constant 0 : i32
    return %c0_i32, %arg1 : i32, i32
  }
  func.func @transform_10(%arg0: i32, %arg1: i32) -> (i32, i32) {
    %c0_i32 = arith.constant 0 : i32
    return %arg0, %arg1 : i32, i32
  }
  func.func @transform_11(%arg0: i32, %arg1: i32) -> (i32, i32) {
    %c0_i32 = arith.constant 0 : i32
    %c0_i32_0 = arith.constant 0 : i32
    return %arg0, %c0_i32 : i32, i32
  }
}

</mosaic_0001>

<llo_original>
// kernel: multivae_forward.1
$region0: #{multivae_forward.1}
  #allocation0 [shape = 'u32[]', space=smem, size = 0x4, offset = 0x4, fixed_abs, tag = 'smem constant byte address 0x4 - core index']
  #allocation1 [shape = 'u32[72,128]{1,0:T(1,128)}', space=vmem, size = 0x9000, scoped, tag = 'internal scratch']
  #allocation2 [shape = 'bf16[128,256]{1,0:T(8,128)(2,1)}', space=vmem, size = 0x10000, scoped, tag = 'scratch operand']
  %s0 = inlined_call_operand.hbm [shape: f32[256,1024], index: 0, kind: input, shape index: {}]
  %s1 = inlined_call_operand.vmem [shape: f32[256,64], index: 1, kind: input, shape index: {}]
  %s2 = inlined_call_operand.hbm [shape: bf16[1024,256], index: 2, kind: input, shape index: {}]
  %s3 = inlined_call_operand.vmem [shape: f32[1,256], index: 3, kind: input, shape index: {}]
  %s4 = inlined_call_operand.vmem [shape: bf16[256,128], index: 4, kind: input, shape index: {}]
  %s5 = inlined_call_operand.vmem [shape: f32[1,128], index: 5, kind: input, shape index: {}]
  %s6 = inlined_call_operand.vmem [shape: bf16[64,256], index: 6, kind: input, shape index: {}]
  %s7 = inlined_call_operand.vmem [shape: f32[1,256], index: 7, kind: input, shape index: {}]
  %s8 = inlined_call_operand.hbm [shape: bf16[256,1024], index: 8, kind: input, shape index: {}]
  %s9 = inlined_call_operand.vmem [shape: f32[1,1024], index: 9, kind: input, shape index: {}]
  %s10 = inlined_call_operand.hbm [shape: bf16[256,1024], index: 10, kind: output, shape index: {0}]
  %s11 = inlined_call_operand.vmem [shape: f32[256,128], index: 11, kind: output, shape index: {1}]
  %12 = xla_tuple %s10, %s11
  %s13 = sld [smem:[#allocation0]]
  $region97: #{multivae_forward.1} parent=0
    _
  %s15 = ssub.s32 1, %s13
  %s16 = scalar_select 0, %s15, %s13
  $region1: #{multivae_forward.1} parent=0
    #allocation3 [shape = 'u8[1048576]{0}', space=vmem, size = 0x100000, scoped, tag = 'input window, operand 0']
    #allocation4 [shape = 's32[2]{0}', space=sflag, size = 0x8, scoped, tag = 'scoped memory for multivae_forward.1']
    #allocation5 [shape = 's32[2]{0}', space=sflag, size = 0x8, scoped, tag = 'scoped memory for multivae_forward.1']
    #allocation6 [shape = 'u8[524288]{0}', space=vmem, size = 0x80000, scoped, tag = 'input window, operand 2, single buffered']
    #allocation7 [shape = 's32[1]{0}', space=sflag, size = 0x4, scoped, tag = 'scoped memory for multivae_forward.1']
    #allocation8 [shape = 'u8[524288]{0}', space=vmem, size = 0x80000, scoped, tag = 'input window, operand 8']
    #allocation9 [shape = 'u8[262144]{0}', space=vmem, size = 0x40000, scoped, tag = 'output window, operand 0']
    %17 = vsyncpa [#allocation4], 0
    %s18 = scalar_lea.sflag [#allocation4], 1
    %19 = vsyncpa %s18, 0
    %20 = vsyncpa [#allocation7], 0
    %21 = vsyncpa [#allocation5], 0
    %s22 = scalar_lea.sflag [#allocation5], 1
    %23 = vsyncpa %s22, 0
    loop: start=0, step=1, limit=6
    $region2: #{multivae_forward.1} parent=1 // loop_pre_header
      _
    $region3: #{multivae_forward.1} parent=1 // loop_header
      %s25 = sphi 0, %s29
      %p26 = scmp.ge.s32.totalorder %s25, 6
      %s32 = sphi 0, %s44
      %s33 = sphi 0, %s40
      %s34 = sphi 0, %s32
      %s35 = sphi 0, %s33
      %s36 = sphi 0, %s34
      %s37 = sphi 0, %s35
      %s47 = sphi 0, %s49
      %s50 = sphi 0, %s47
      %s51 = sphi 0, %s50
      %s67 = sphi 0, %s51
      %s73 = sphi 0, %s75
      %s76 = sphi 0, %s73
      %s77 = sphi 0, %s76
      %s93 = sphi 0, %s77
      %s97 = sphi 0, %s97
      %s99 = sphi 0, %s97
      %s100 = sphi 0, %s99
      %s114 = sphi 0, %s100
      %s118 = sphi 0, %s118
      %s120 = sphi 0, %s118
      %s121 = sphi 0, %s120
      %s135 = sphi 0, %s121
      %s139 = sphi 0, %s139
      %s141 = sphi 0, %s139
      %s142 = sphi 0, %s141
      %s156 = sphi 0, %s142
      %s160 = sphi 0, %s160
      %s162 = sphi 0, %s160
      %s163 = sphi 0, %s162
      %s177 = sphi 0, %s163
      %s181 = sphi 0, %s181
      %s183 = sphi 0, %s181
      %s184 = sphi 0, %s183
      %s198 = sphi 0, %s184
      %s202 = sphi 0, %s202
      %s204 = sphi 0, %s202
      %s205 = sphi 0, %s204
      %s219 = sphi 0, %s205
      %s225 = sphi 0, %s227
      %s228 = sphi 0, %s225
      %s229 = sphi 0, %s228
      %s245 = sphi 0, %s229
      %s251 = sphi 0, %s253
      %s254 = sphi 0, %s251
      %s255 = sphi 0, %s254
      %s271 = sphi 0, %s255
      %s279 = sphi 0, %s281
      %s282 = sphi 0, %s279
      %s283 = sphi 0, %s282
      %s299 = sphi 0, %s283
      %s305 = sphi 0, %s307
      %s308 = sphi 0, %s305
      %s309 = sphi 0, %s308
      %s325 = sphi 0, %s309
    $region4: #{multivae_forward.1} parent=1 // loop_header_branch
      %28 = sbr.rel (%p26) target = $region8
    $region5: #{multivae_forward.1} parent=1 // loop_body
      %s30 = ssub.s32 %s25, 1
      %s31 = ssub.s32 %s25, 2
      %s38 = sadd.s32 1, %s33
      %p39 = scmp.ge.s32.totalorder %s38, 2
      %s40 = scalar_select %p39, 0, %s38
      %s41 = sadd.s32 1, %s32
      %s42 = scalar_select %p39, %s41, %s32
      %p43 = scmp.ge.s32.totalorder %s42, 2
      %s44 = scalar_select %p43, 0, %s42
      %s45 = ssub.s32 %s32, %s44
      %p46 = scmp.eq.s32.totalorder %s45, 0
      %s48 = sadd.s32 %s47, 1
      %s49 = scalar_select %p46, %s47, %s48
      %p52 = pneg %p46
      %p53 = scmp.eq.s32.totalorder %s25, 3
      %p54 = por %p52, %p53
      %p55 = scmp.ne.s32.totalorder %s47, %s50
      %p56 = scmp.eq.s32.totalorder %s25, 0
      %p57 = por %p55, %p56
      %p58 = scmp.ne.s32.totalorder %s47, %s50
      %p59 = scmp.eq.s32.totalorder %s30, 3
      %p60 = por %p58, %p59
      %p61 = scmp.ne.s32.totalorder %s50, %s51
      %p62 = scmp.eq.s32.totalorder %s30, 0
      %p63 = por %p61, %p62
      %p64 = scmp.ne.s32.totalorder %s50, %s51
      %p65 = scmp.eq.s32.totalorder %s31, 3
      %p66 = por %p64, %p65
      %p68 = scmp.ne.s32.totalorder %s51, %s67
      %p69 = scmp.eq.s32.totalorder %s31, 0
      %p70 = por %p68, %p69
      %s71 = ssub.s32 %s32, %s44
      %p72 = scmp.eq.s32.totalorder %s71, 0
      %s74 = sadd.s32 %s73, 1
      %s75 = scalar_select %p72, %s73, %s74
      %p78 = pneg %p72
      %p79 = scmp.eq.s32.totalorder %s25, 3
      %p80 = por %p78, %p79
      %p81 = scmp.ne.s32.totalorder %s73, %s76
      %p82 = scmp.eq.s32.totalorder %s25, 0
      %p83 = por %p81, %p82
      %p84 = scmp.ne.s32.totalorder %s73, %s76
      %p85 = scmp.eq.s32.totalorder %s30, 3
      %p86 = por %p84, %p85
      %p87 = scmp.ne.s32.totalorder %s76, %s77
      %p88 = scmp.eq.s32.totalorder %s30, 0
      %p89 = por %p87, %p88
      %p90 = scmp.ne.s32.totalorder %s76, %s77
      %p91 = scmp.eq.s32.totalorder %s31, 3
      %p92 = por %p90, %p91
      %p94 = scmp.ne.s32.totalorder %s77, %s93
      %p95 = scmp.eq.s32.totalorder %s31, 0
      %p96 = por %p94, %p95
      %s98 = sadd.s32 %s97, 1
      %p101 = scmp.eq.s32.totalorder %s25, 3
      %p102 = scmp.ne.s32.totalorder %s97, %s99
      %p103 = scmp.eq.s32.totalorder %s25, 0
      %p104 = por %p102, %p103
      %p105 = scmp.ne.s32.totalorder %s97, %s99
      %p106 = scmp.eq.s32.totalorder %s30, 3
      %p107 = por %p105, %p106
      %p108 = scmp.ne.s32.totalorder %s99, %s100
      %p109 = scmp.eq.s32.totalorder %s30, 0
      %p110 = por %p108, %p109
      %p111 = scmp.ne.s32.totalorder %s99, %s100
      %p112 = scmp.eq.s32.totalorder %s31, 3
      %p113 = por %p111, %p112
      %p115 = scmp.ne.s32.totalorder %s100, %s114
      %p116 = scmp.eq.s32.totalorder %s31, 0
      %p117 = por %p115, %p116
      %s119 = sadd.s32 %s118, 1
      %p122 = scmp.eq.s32.totalorder %s25, 3
      %p123 = scmp.ne.s32.totalorder %s118, %s120
      %p124 = scmp.eq.s32.totalorder %s25, 0
      %p125 = por %p123, %p124
      %p126 = scmp.ne.s32.totalorder %s118, %s120
      %p127 = scmp.eq.s32.totalorder %s30, 3
      %p128 = por %p126, %p127
      %p129 = scmp.ne.s32.totalorder %s120, %s121
      %p130 = scmp.eq.s32.totalorder %s30, 0
      %p131 = por %p129, %p130
      %p132 = scmp.ne.s32.totalorder %s120, %s121
      %p133 = scmp.eq.s32.totalorder %s31, 3
      %p134 = por %p132, %p133
      %p136 = scmp.ne.s32.totalorder %s121, %s135
      %p137 = scmp.eq.s32.totalorder %s31, 0
      %p138 = por %p136, %p137
      %s140 = sadd.s32 %s139, 1
      %p143 = scmp.eq.s32.totalorder %s25, 3
      %p144 = scmp.ne.s32.totalorder %s139, %s141
      %p145 = scmp.eq.s32.totalorder %s25, 0
      %p146 = por %p144, %p145
      %p147 = scmp.ne.s32.totalorder %s139, %s141
      %p148 = scmp.eq.s32.totalorder %s30, 3
      %p149 = por %p147, %p148
      %p150 = scmp.ne.s32.totalorder %s141, %s142
      %p151 = scmp.eq.s32.totalorder %s30, 0
      %p152 = por %p150, %p151
      %p153 = scmp.ne.s32.totalorder %s141, %s142
      %p154 = scmp.eq.s32.totalorder %s31, 3
      %p155 = por %p153, %p154
      %p157 = scmp.ne.s32.totalorder %s142, %s156
      %p158 = scmp.eq.s32.totalorder %s31, 0
      %p159 = por %p157, %p158
      %s161 = sadd.s32 %s160, 1
      %p164 = scmp.eq.s32.totalorder %s25, 3
      %p165 = scmp.ne.s32.totalorder %s160, %s162
      %p166 = scmp.eq.s32.totalorder %s25, 0
      %p167 = por %p165, %p166
      %p168 = scmp.ne.s32.totalorder %s160, %s162
      %p169 = scmp.eq.s32.totalorder %s30, 3
      %p170 = por %p168, %p169
      %p171 = scmp.ne.s32.totalorder %s162, %s163
      %p172 = scmp.eq.s32.totalorder %s30, 0
      %p173 = por %p171, %p172
      %p174 = scmp.ne.s32.totalorder %s162, %s163
      %p175 = scmp.eq.s32.totalorder %s31, 3
      %p176 = por %p174, %p175
      %p178 = scmp.ne.s32.totalorder %s163, %s177
      %p179 = scmp.eq.s32.totalorder %s31, 0
      %p180 = por %p178, %p179
      %s182 = sadd.s32 %s181, 1
      %p185 = scmp.eq.s32.totalorder %s25, 3
      %p186 = scmp.ne.s32.totalorder %s181, %s183
      %p187 = scmp.eq.s32.totalorder %s25, 0
      %p188 = por %p186, %p187
      %p189 = scmp.ne.s32.totalorder %s181, %s183
      %p190 = scmp.eq.s32.totalorder %s30, 3
      %p191 = por %p189, %p190
      %p192 = scmp.ne.s32.totalorder %s183, %s184
      %p193 = scmp.eq.s32.totalorder %s30, 0
      %p194 = por %p192, %p193
      %p195 = scmp.ne.s32.totalorder %s183, %s184
      %p196 = scmp.eq.s32.totalorder %s31, 3
      %p197 = por %p195, %p196
      %p199 = scmp.ne.s32.totalorder %s184, %s198
      %p200 = scmp.eq.s32.totalorder %s31, 0
      %p201 = por %p199, %p200
      %s203 = sadd.s32 %s202, 1
      %p206 = scmp.eq.s32.totalorder %s25, 3
      %p207 = scmp.ne.s32.totalorder %s202, %s204
      %p208 = scmp.eq.s32.totalorder %s25, 0
      %p209 = por %p207, %p208
      %p210 = scmp.ne.s32.totalorder %s202, %s204
      %p211 = scmp.eq.s32.totalorder %s30, 3
      %p212 = por %p210, %p211
      %p213 = scmp.ne.s32.totalorder %s204, %s205
      %p214 = scmp.eq.s32.totalorder %s30, 0
      %p215 = por %p213, %p214
      %p216 = scmp.ne.s32.totalorder %s204, %s205
      %p217 = scmp.eq.s32.totalorder %s31, 3
      %p218 = por %p216, %p217
      %p220 = scmp.ne.s32.totalorder %s205, %s219
      %p221 = scmp.eq.s32.totalorder %s31, 0
      %p222 = por %p220, %p221
      %s223 = ssub.s32 %s33, %s40
      %p224 = scmp.eq.s32.totalorder %s223, 0
      %s226 = sadd.s32 %s225, 1
      %s227 = scalar_select %p224, %s225, %s226
      %p230 = pneg %p224
      %p231 = scmp.eq.s32.totalorder %s25, 3
      %p232 = por %p230, %p231
      %p233 = scmp.ne.s32.totalorder %s225, %s228
      %p234 = scmp.eq.s32.totalorder %s25, 0
      %p235 = por %p233, %p234
      %p236 = scmp.ne.s32.totalorder %s225, %s228
      %p237 = scmp.eq.s32.totalorder %s30, 3
      %p238 = por %p236, %p237
      %p239 = scmp.ne.s32.totalorder %s228, %s229
      %p240 = scmp.eq.s32.totalorder %s30, 0
      %p241 = por %p239, %p240
      %p242 = scmp.ne.s32.totalorder %s228, %s229
      %p243 = scmp.eq.s32.totalorder %s31, 3
      %p244 = por %p242, %p243
      %p246 = scmp.ne.s32.totalorder %s229, %s245
      %p247 = scmp.eq.s32.totalorder %s31, 0
      %p248 = por %p246, %p247
      %s249 = ssub.s32 %s33, %s40
      %p250 = scmp.eq.s32.totalorder %s249, 0
      %s252 = sadd.s32 %s251, 1
      %s253 = scalar_select %p250, %s251, %s252
      %p256 = pneg %p250
      %p257 = scmp.eq.s32.totalorder %s25, 3
      %p258 = por %p256, %p257
      %p259 = scmp.ne.s32.totalorder %s251, %s254
      %p260 = scmp.eq.s32.totalorder %s25, 0
      %p261 = por %p259, %p260
      %p262 = scmp.ne.s32.totalorder %s251, %s254
      %p263 = scmp.eq.s32.totalorder %s30, 3
      %p264 = por %p262, %p263
      %p265 = scmp.ne.s32.totalorder %s254, %s255
      %p266 = scmp.eq.s32.totalorder %s30, 0
      %p267 = por %p265, %p266
      %p268 = scmp.ne.s32.totalorder %s254, %s255
      %p269 = scmp.eq.s32.totalorder %s31, 3
      %p270 = por %p268, %p269
      %p272 = scmp.ne.s32.totalorder %s255, %s271
      %p273 = scmp.eq.s32.totalorder %s31, 0
      %p274 = por %p272, %p273
      %s275 = ssub.s32 %s32, %s44
      %s276 = ssub.s32 %s33, %s40
      %s277 = sor.u32 %s275, %s276
      %p278 = scmp.eq.s32.totalorder %s277, 0
      %s280 = sadd.s32 %s279, 1
      %s281 = scalar_select %p278, %s279, %s280
      %p284 = pneg %p278
      %p285 = scmp.eq.s32.totalorder %s25, 3
      %p286 = por %p284, %p285
      %p287 = scmp.ne.s32.totalorder %s279, %s282
      %p288 = scmp.eq.s32.totalorder %s25, 0
      %p289 = por %p287, %p288
      %p290 = scmp.ne.s32.totalorder %s279, %s282
      %p291 = scmp.eq.s32.totalorder %s30, 3
      %p292 = por %p290, %p291
      %p293 = scmp.ne.s32.totalorder %s282, %s283
      %p294 = scmp.eq.s32.totalorder %s30, 0
      %p295 = por %p293, %p294
      %p296 = scmp.ne.s32.totalorder %s282, %s283
      %p297 = scmp.eq.s32.totalorder %s31, 3
      %p298 = por %p296, %p297
      %p300 = scmp.ne.s32.totalorder %s283, %s299
      %p301 = scmp.eq.s32.totalorder %s31, 0
      %p302 = por %p300, %p301
      %s303 = ssub.s32 %s32, %s44
      %p304 = scmp.eq.s32.totalorder %s303, 0
      %s306 = sadd.s32 %s305, 1
      %s307 = scalar_select %p304, %s305, %s306
      %p310 = pneg %p304
      %p311 = scmp.eq.s32.totalorder %s25, 3
      %p312 = por %p310, %p311
      %p313 = scmp.ne.s32.totalorder %s305, %s308
      %p314 = scmp.eq.s32.totalorder %s25, 0
      %p315 = por %p313, %p314
      %p316 = scmp.ne.s32.totalorder %s305, %s308
      %p317 = scmp.eq.s32.totalorder %s30, 3
      %p318 = por %p316, %p317
      %p319 = scmp.ne.s32.totalorder %s308, %s309
      %p320 = scmp.eq.s32.totalorder %s30, 0
      %p321 = por %p319, %p320
      %p322 = scmp.ne.s32.totalorder %s308, %s309
      %p323 = scmp.eq.s32.totalorder %s31, 3
      %p324 = por %p322, %p323
      %p326 = scmp.ne.s32.totalorder %s309, %s325
      %p327 = scmp.eq.s32.totalorder %s31, 0
      %p328 = por %p326, %p327
      %p329 = scmp.le.s32.totalorder 1, %s25
      %p330 = scmp.lt.s32.totalorder %s25, 5
      %p331 = pnand %p329, %p330
      %p332 = pneg %p331
      // Predicated region
      $region9: #{multivae_forward.1} parent=5 // pred_check
        _
      $region10: #{multivae_forward.1} parent=5 // pred_check_branch
        %334 = sbr.rel (%p331) target = $region12
      $region11: #{multivae_forward.1} parent=5 // pred_region
        %s335 = ssub.s32 %s25, 1
        // Predicated region
        $region13: #{multivae_forward.1} parent=11 // pred_check
          %p336 = pneg %p110
        $region14: #{multivae_forward.1} parent=11 // pred_check_branch
          %338 = sbr.rel (%p336) target = $region16
        $region15: #{multivae_forward.1} parent=11 // pred_region
          %340 = vsyncadd [#allocation7], 0
          %s341 = sshll.u32 %s2, 4
          %s342 = int_to_ptr.hbm [resolvable:$true] %s341
          %s343 = sshll.u32 [#allocation6], 4
          %s344 = int_to_ptr.vmem [resolvable:$true] %s343
          %349 = dma.hbm_to_vmem [thread:$0]  %s342, 16384, %s344, [#allocation7], 128, 128, 8
        $region16: #{multivae_forward.1} parent=11 // pred_fallthru
          _
        // Predicated region
        $region17: #{multivae_forward.1} parent=11 // pred_check
          %p350 = pneg %p131
        $region18: #{multivae_forward.1} parent=11 // pred_check_branch
          %352 = sbr.rel (%p350) target = $region20
        $region19: #{multivae_forward.1} parent=11 // pred_region
          _
        $region20: #{multivae_forward.1} parent=11 // pred_fallthru
          _
        // Predicated region
        $region21: #{multivae_forward.1} parent=11 // pred_check
          %p353 = pneg %p152
        $region22: #{multivae_forward.1} parent=11 // pred_check_branch
          %355 = sbr.rel (%p353) target = $region24
        $region23: #{multivae_forward.1} parent=11 // pred_region
          _
        $region24: #{multivae_forward.1} parent=11 // pred_fallthru
          _
        // Predicated region
        $region25: #{multivae_forward.1} parent=11 // pred_check
          %p356 = pneg %p173
        $region26: #{multivae_forward.1} parent=11 // pred_check_branch
          %358 = sbr.rel (%p356) target = $region28
        $region27: #{multivae_forward.1} parent=11 // pred_region
          _
        $region28: #{multivae_forward.1} parent=11 // pred_fallthru
          _
        // Predicated region
        $region29: #{multivae_forward.1} parent=11 // pred_check
          %p359 = pneg %p194
        $region30: #{multivae_forward.1} parent=11 // pred_check_branch
          %361 = sbr.rel (%p359) target = $region32
        $region31: #{multivae_forward.1} parent=11 // pred_region
          _
        $region32: #{multivae_forward.1} parent=11 // pred_fallthru
          _
        // Predicated region
        $region33: #{multivae_forward.1} parent=11 // pred_check
          %p362 = pneg %p215
        $region34: #{multivae_forward.1} parent=11 // pred_check_branch
          %364 = sbr.rel (%p362) target = $region36
        $region35: #{multivae_forward.1} parent=11 // pred_region
          _
        $region36: #{multivae_forward.1} parent=11 // pred_fallthru
          _
      $region12: #{multivae_forward.1} parent=5 // pred_fallthru
        _
      %p365 = scmp.lt.s32.totalorder %s25, 4
      // Predicated region
      $region37: #{multivae_forward.1} parent=5 // pred_check
        %p366 = pneg %p365
      $region38: #{multivae_forward.1} parent=5 // pred_check_branch
        %368 = sbr.rel (%p366) target = $region40
      $region39: #{multivae_forward.1} parent=5 // pred_region
        // Predicated region
        $region41: #{multivae_forward.1} parent=39 // pred_check
          %p369 = pneg %p57
        $region42: #{multivae_forward.1} parent=39 // pred_check_branch
          %371 = sbr.rel (%p369) target = $region44
        $region43: #{multivae_forward.1} parent=39 // pred_region
          %s372 = sand.u32 %s25, 1
          %s373 = scalar_lea.sflag [#allocation4], %s372
          %s374 = sand.u32 %s47, 1
          %s375 = smul.addr %s374, 1024
          %s376 = scalar_lea.vmem [#allocation3], %s375
          %s377 = smul.u32 16, %s32
          %379 = vsyncadd %s373, 0
          %s380 = smul.addr %s377, 8
          %s381 = smul.addr %s380, 8
          %s382 = scalar_lea.hbm %s0, %s381
          %s383 = sshll.u32 %s382, 4
          %s384 = int_to_ptr.hbm [resolvable:$true] %s383
          %s385 = sshll.u32 %s376, 4
          %s386 = int_to_ptr.vmem [resolvable:$true] %s385
          %391 = dma.hbm_to_vmem [thread:$0]  %s384, 16384, %s386, %s373, 1024, 1024, 64
        $region44: #{multivae_forward.1} parent=39 // pred_fallthru
          _
        // Predicated region
        $region45: #{multivae_forward.1} parent=39 // pred_check
          %p392 = pneg %p83
        $region46: #{multivae_forward.1} parent=39 // pred_check_branch
          %394 = sbr.rel (%p392) target = $region48
        $region47: #{multivae_forward.1} parent=39 // pred_region
          %s395 = smul.u32 16, %s32
          %p396 = scmp.lt.s32.totalorder %s395, 31
          %s397 = scalar_select %p396, %s395, 31
          %s398 = smul.addr %s397, 8
          %s399 = scalar_lea.vmem %s1, %s398
          %s400 = smul.u32 16, %s32
        $region48: #{multivae_forward.1} parent=39 // pred_fallthru
          _
        // Predicated region
        $region49: #{multivae_forward.1} parent=39 // pred_check
          %p401 = pneg %p235
        $region50: #{multivae_forward.1} parent=39 // pred_check_branch
          %403 = sbr.rel (%p401) target = $region52
        $region51: #{multivae_forward.1} parent=39 // pred_region
          %s404 = sand.u32 %s25, 1
          %s405 = scalar_lea.sflag [#allocation4], %s404
          %s406 = sand.u32 %s225, 1
          %s407 = smul.addr %s406, 512
          %s408 = scalar_lea.vmem [#allocation8], %s407
          %s409 = smul.u32 4, %s33
          %411 = vsyncadd %s405, 0
          %s412 = smul.addr %s409, 4
          %s413 = scalar_lea.hbm %s8, %s412
          %s414 = sshll.u32 %s413, 4
          %s415 = int_to_ptr.hbm [resolvable:$true] %s414
          %s416 = sshll.u32 %s408, 4
          %s417 = int_to_ptr.vmem [resolvable:$true] %s416
          %422 = dma.hbm_to_vmem [thread:$0]  %s415, 8192, %s417, %s405, 512, 256, 16
        $region52: #{multivae_forward.1} parent=39 // pred_fallthru
          _
        // Predicated region
        $region53: #{multivae_forward.1} parent=39 // pred_check
          %p423 = pneg %p261
        $region54: #{multivae_forward.1} parent=39 // pred_check_branch
          %425 = sbr.rel (%p423) target = $region56
        $region55: #{multivae_forward.1} parent=39 // pred_region
          %s426 = smul.u32 4, %s33
          %p427 = scmp.lt.s32.totalorder %s426, 7
          %s428 = scalar_select %p427, %s426, 7
          %s429 = scalar_lea.vmem %s9, %s428
          %s430 = smul.u32 4, %s33
        $region56: #{multivae_forward.1} parent=39 // pred_fallthru
          _
      $region40: #{multivae_forward.1} parent=5 // pred_fallthru
        _
      %p431 = scmp.le.s32.totalorder 1, %s25
      %p432 = scmp.lt.s32.totalorder %s25, 5
      %p433 = pnand %p431, %p432
      %p434 = pneg %p433
      // Predicated region
      $region57: #{multivae_forward.1} parent=5 // pred_check
        _
      $region58: #{multivae_forward.1} parent=5 // pred_check_branch
        %436 = sbr.rel (%p433) target = $region60
      $region59: #{multivae_forward.1} parent=5 // pred_region
        %s437 = ssub.s32 %s25, 1
        %s438 = sand.u32 %s30, 1
        %s439 = scalar_lea.sflag [#allocation4], %s438
        %s440 = sand.u32 %s50, 1
        %s441 = smul.addr %s440, 1024
        %s442 = scalar_lea.vmem [#allocation3], %s441
        // Predicated region
        $region61: #{multivae_forward.1} parent=59 // pred_check
          %p443 = pneg %p63
        $region62: #{multivae_forward.1} parent=59 // pred_check_branch
          %445 = sbr.rel (%p443) target = $region64
        $region63: #{multivae_forward.1} parent=59 // pred_region
          %447 = dma.done %s439, 16384
        $region64: #{multivae_forward.1} parent=59 // pred_fallthru
          _
        // Predicated region
        $region65: #{multivae_forward.1} parent=59 // pred_check
          %p448 = pneg %p110
        $region66: #{multivae_forward.1} parent=59 // pred_check_branch
          %450 = sbr.rel (%p448) target = $region68
        $region67: #{multivae_forward.1} parent=59 // pred_region
          %452 = dma.done [#allocation7], 16384
        $region68: #{multivae_forward.1} parent=59 // pred_fallthru
          _
        %s453 = sand.u32 %s30, 1
        %s454 = scalar_lea.sflag [#allocation4], %s453
        %s455 = sand.u32 %s228, 1
        %s456 = smul.addr %s455, 512
        %s457 = scalar_lea.vmem [#allocation8], %s456
        // Predicated region
        $region69: #{multivae_forward.1} parent=59 // pred_check
          %p458 = pneg %p241
        $region70: #{multivae_forward.1} parent=59 // pred_check_branch
          %460 = sbr.rel (%p458) target = $region72
        $region71: #{multivae_forward.1} parent=59 // pred_region
          %462 = dma.done %s454, 8192
        $region72: #{multivae_forward.1} parent=59 // pred_fallthru
          _
        %s463 = sand.u32 %s30, 1
        %s464 = scalar_lea.sflag [#allocation4], %s463
        %s465 = sand.u32 %s50, 1
        %s466 = smul.addr %s465, 1024
        %s467 = scalar_lea.vmem [#allocation3], %s466
        %p468 = pneg %p63
        %p469 = pneg %p60
        %s470 = smul.u32 16, %s34
        %p471 = scmp.lt.s32.totalorder %s470, 31
        %s472 = scalar_select %p471, %s470, 31
        %s473 = smul.addr %s472, 8
        %s474 = scalar_lea.vmem %s1, %s473
        %p475 = pneg %p89
        %p476 = pneg %p86
        %p477 = pneg %p110
        %p478 = pneg %p107
        %p479 = pneg %p131
        %p480 = pneg %p128
        %p481 = pneg %p152
        %p482 = pneg %p149
        %p483 = pneg %p173
        %p484 = pneg %p170
        %p485 = pneg %p194
        %p486 = pneg %p191
        %p487 = pneg %p215
        %p488 = pneg %p212
        %s489 = sand.u32 %s30, 1
        %s490 = scalar_lea.sflag [#allocation4], %s489
        %s491 = sand.u32 %s228, 1
        %s492 = smul.addr %s491, 512
        %s493 = scalar_lea.vmem [#allocation8], %s492
        %p494 = pneg %p241
        %p495 = pneg %p238
        %s496 = smul.u32 4, %s35
        %p497 = scmp.lt.s32.totalorder %s496, 7
        %s498 = scalar_select %p497, %s496, 7
        %s499 = scalar_lea.vmem %s9, %s498
        %p500 = pneg %p267
        %p501 = pneg %p264
        %p502 = pneg %p295
        %p503 = pneg %p292
        %s504 = sand.u32 %s282, 1
        %s505 = scalar_lea.sflag [#allocation5], %s504
        %s506 = sand.u32 %s282, 1
        %s507 = smul.addr %s506, 256
        %s508 = scalar_lea.vmem [#allocation9], %s507
        %p509 = pneg %p321
        %p510 = pneg %p318
        %s511 = smul.u32 16, %s34
        %p512 = scmp.lt.s32.totalorder %s511, 31
        %s513 = scalar_select %p512, %s511, 31
        %s514 = smul.addr %s513, 8
        %s515 = scalar_lea.vmem %s11, %s514
        %s516 = smul.u32 16, %s34
        %s517 = smul.u32 16, %s34
        %p518 = scmp.lt.s32.totalorder %s517, 31
        %s519 = scalar_select %p518, %s517, 31
        %s520 = smul.addr %s519, 8
        %s521 = scalar_lea.vmem %s1, %s520
        %s522 = smul.u32 16, %s34
        %s523 = smul.u32 4, %s35
        %s524 = smul.u32 4, %s35
        %p525 = scmp.lt.s32.totalorder %s524, 7
        %s526 = scalar_select %p525, %s524, 7
        %s527 = scalar_lea.vmem %s9, %s526
        %s528 = smul.u32 4, %s35
        %s529 = smul.u32 16, %s34
        %s530 = smul.u32 4, %s35
        %s531 = smul.u32 16, %s34
        %p532 = scmp.lt.s32.totalorder %s531, 31
        %s533 = scalar_select %p532, %s531, 31
        %s534 = smul.addr %s533, 8
        %s535 = scalar_lea.vmem %s11, %s534
        %s536 = smul.u32 16, %s34
        %p538 = scmp.eq.s32.totalorder %s35, 0
        // Predicated region
        $region73: #{multivae_forward.1} parent=59 // pred_check
          %p539 = pneg %p538
        $region74: #{multivae_forward.1} parent=59 // pred_check_branch
          %541 = sbr.rel (%p539) target = $region76
        $region75: #{multivae_forward.1} parent=59 // pred_region
          %v542 = vld [vmem:[%s442] sm:$0xff]
          %v543 = vld [vmem:[%s442 + $0x8] sm:$0xff]
          %v544 = vld [vmem:[%s442 + $0x10] sm:$0xff]
          %v545 = vld [vmem:[%s442 + $0x18] sm:$0xff]
          %v546 = vld [vmem:[%s442 + $0x20] sm:$0xff]
          %v547 = vld [vmem:[%s442 + $0x28] sm:$0xff]
          %v548 = vld [vmem:[%s442 + $0x30] sm:$0xff]
          %v549 = vld [vmem:[%s442 + $0x38] sm:$0xff]
          %v550 = vld [vmem:[%s442 + $0x40] sm:$0xff]
          %v551 = vld [vmem:[%s442 + $0x48] sm:$0xff]
          %v552 = vld [vmem:[%s442 + $0x50] sm:$0xff]
          %v553 = vld [vmem:[%s442 + $0x58] sm:$0xff]
          %v554 = vld [vmem:[%s442 + $0x60] sm:$0xff]
          %v555 = vld [vmem:[%s442 + $0x68] sm:$0xff]
          %v556 = vld [vmem:[%s442 + $0x70] sm:$0xff]
          %v557 = vld [vmem:[%s442 + $0x78] sm:$0xff]
          %v558 = vld [vmem:[%s442 + $0x80] sm:$0xff]
          %v559 = vld [vmem:[%s442 + $0x88] sm:$0xff]
          %v560 = vld [vmem:[%s442 + $0x90] sm:$0xff]
          %v561 = vld [vmem:[%s442 + $0x98] sm:$0xff]
          %v562 = vld [vmem:[%s442 + $0xa0] sm:$0xff]
          %v563 = vld [vmem:[%s442 + $0xa8] sm:$0xff]
          %v564 = vld [vmem:[%s442 + $0xb0] sm:$0xff]
          %v565 = vld [vmem:[%s442 + $0xb8] sm:$0xff]
          %v566 = vld [vmem:[%s442 + $0xc0] sm:$0xff]
          %v567 = vld [vmem:[%s442 + $0xc8] sm:$0xff]
          %v568 = vld [vmem:[%s442 + $0xd0] sm:$0xff]
          %v569 = vld [vmem:[%s442 + $0xd8] sm:$0xff]
          %v570 = vld [vmem:[%s442 + $0xe0] sm:$0xff]
          %v571 = vld [vmem:[%s442 + $0xe8] sm:$0xff]
          %v572 = vld [vmem:[%s442 + $0xf0] sm:$0xff]
          %v573 = vld [vmem:[%s442 + $0xf8] sm:$0xff]
          %v574 = vld [vmem:[%s442 + $0x100] sm:$0xff]
          %v575 = vld [vmem:[%s442 + $0x108] sm:$0xff]
          %v576 = vld [vmem:[%s442 + $0x110] sm:$0xff]
          %v577 = vld [vmem:[%s442 + $0x118] sm:$0xff]
          %v578 = vld [vmem:[%s442 + $0x120] sm:$0xff]
          %v579 = vld [vmem:[%s442 + $0x128] sm:$0xff]
          %v580 = vld [vmem:[%s442 + $0x130] sm:$0xff]
          %v581 = vld [vmem:[%s442 + $0x138] sm:$0xff]
          %v582 = vld [vmem:[%s442 + $0x140] sm:$0xff]
          %v583 = vld [vmem:[%s442 + $0x148] sm:$0xff]
          %v584 = vld [vmem:[%s442 + $0x150] sm:$0xff]
          %v585 = vld [vmem:[%s442 + $0x158] sm:$0xff]
          %v586 = vld [vmem:[%s442 + $0x160] sm:$0xff]
          %v587 = vld [vmem:[%s442 + $0x168] sm:$0xff]
          %v588 = vld [vmem:[%s442 + $0x170] sm:$0xff]
          %v589 = vld [vmem:[%s442 + $0x178] sm:$0xff]
          %v590 = vld [vmem:[%s442 + $0x180] sm:$0xff]
          %v591 = vld [vmem:[%s442 + $0x188] sm:$0xff]
          %v592 = vld [vmem:[%s442 + $0x190] sm:$0xff]
          %v593 = vld [vmem:[%s442 + $0x198] sm:$0xff]
          %v594 = vld [vmem:[%s442 + $0x1a0] sm:$0xff]
          %v595 = vld [vmem:[%s442 + $0x1a8] sm:$0xff]
          %v596 = vld [vmem:[%s442 + $0x1b0] sm:$0xff]
          %v597 = vld [vmem:[%s442 + $0x1b8] sm:$0xff]
          %v598 = vld [vmem:[%s442 + $0x1c0] sm:$0xff]
          %v599 = vld [vmem:[%s442 + $0x1c8] sm:$0xff]
          %v600 = vld [vmem:[%s442 + $0x1d0] sm:$0xff]
          %v601 = vld [vmem:[%s442 + $0x1d8] sm:$0xff]
          %v602 = vld [vmem:[%s442 + $0x1e0] sm:$0xff]
          %v603 = vld [vmem:[%s442 + $0x1e8] sm:$0xff]
          %v604 = vld [vmem:[%s442 + $0x1f0] sm:$0xff]
          %v605 = vld [vmem:[%s442 + $0x1f8] sm:$0xff]
          %v606 = vld [vmem:[%s442 + $0x200] sm:$0xff]
          %v607 = vld [vmem:[%s442 + $0x208] sm:$0xff]
          %v608 = vld [vmem:[%s442 + $0x210] sm:$0xff]
          %v609 = vld [vmem:[%s442 + $0x218] sm:$0xff]
          %v610 = vld [vmem:[%s442 + $0x220] sm:$0xff]
          %v611 = vld [vmem:[%s442 + $0x228] sm:$0xff]
          %v612 = vld [vmem:[%s442 + $0x230] sm:$0xff]
          %v613 = vld [vmem:[%s442 + $0x238] sm:$0xff]
          %v614 = vld [vmem:[%s442 + $0x240] sm:$0xff]
          %v615 = vld [vmem:[%s442 + $0x248] sm:$0xff]
          %v616 = vld [vmem:[%s442 + $0x250] sm:$0xff]
          %v617 = vld [vmem:[%s442 + $0x258] sm:$0xff]
          %v618 = vld [vmem:[%s442 + $0x260] sm:$0xff]
          %v619 = vld [vmem:[%s442 + $0x268] sm:$0xff]
          %v620 = vld [vmem:[%s442 + $0x270] sm:$0xff]
          %v621 = vld [vmem:[%s442 + $0x278] sm:$0xff]
          %v622 = vld [vmem:[%s442 + $0x280] sm:$0xff]
          %v623 = vld [vmem:[%s442 + $0x288] sm:$0xff]
          %v624 = vld [vmem:[%s442 + $0x290] sm:$0xff]
          %v625 = vld [vmem:[%s442 + $0x298] sm:$0xff]
          %v626 = vld [vmem:[%s442 + $0x2a0] sm:$0xff]
          %v627 = vld [vmem:[%s442 + $0x2a8] sm:$0xff]
          %v628 = vld [vmem:[%s442 + $0x2b0] sm:$0xff]
          %v629 = vld [vmem:[%s442 + $0x2b8] sm:$0xff]
          %v630 = vld [vmem:[%s442 + $0x2c0] sm:$0xff]
          %v631 = vld [vmem:[%s442 + $0x2c8] sm:$0xff]
          %v632 = vld [vmem:[%s442 + $0x2d0] sm:$0xff]
          %v633 = vld [vmem:[%s442 + $0x2d8] sm:$0xff]
          %v634 = vld [vmem:[%s442 + $0x2e0] sm:$0xff]
          %v635 = vld [vmem:[%s442 + $0x2e8] sm:$0xff]
          %v636 = vld [vmem:[%s442 + $0x2f0] sm:$0xff]
          %v637 = vld [vmem:[%s442 + $0x2f8] sm:$0xff]
          %v638 = vld [vmem:[%s442 + $0x300] sm:$0xff]
          %v639 = vld [vmem:[%s442 + $0x308] sm:$0xff]
          %v640 = vld [vmem:[%s442 + $0x310] sm:$0xff]
          %v641 = vld [vmem:[%s442 + $0x318] sm:$0xff]
          %v642 = vld [vmem:[%s442 + $0x320] sm:$0xff]
          %v643 = vld [vmem:[%s442 + $0x328] sm:$0xff]
          %v644 = vld [vmem:[%s442 + $0x330] sm:$0xff]
          %v645 = vld [vmem:[%s442 + $0x338] sm:$0xff]
          %v646 = vld [vmem:[%s442 + $0x340] sm:$0xff]
          %v647 = vld [vmem:[%s442 + $0x348] sm:$0xff]
          %v648 = vld [vmem:[%s442 + $0x350] sm:$0xff]
          %v649 = vld [vmem:[%s442 + $0x358] sm:$0xff]
          %v650 = vld [vmem:[%s442 + $0x360] sm:$0xff]
          %v651 = vld [vmem:[%s442 + $0x368] sm:$0xff]
          %v652 = vld [vmem:[%s442 + $0x370] sm:$0xff]
          %v653 = vld [vmem:[%s442 + $0x378] sm:$0xff]
          %v654 = vld [vmem:[%s442 + $0x380] sm:$0xff]
          %v655 = vld [vmem:[%s442 + $0x388] sm:$0xff]
          %v656 = vld [vmem:[%s442 + $0x390] sm:$0xff]
          %v657 = vld [vmem:[%s442 + $0x398] sm:$0xff]
          %v658 = vld [vmem:[%s442 + $0x3a0] sm:$0xff]
          %v659 = vld [vmem:[%s442 + $0x3a8] sm:$0xff]
          %v660 = vld [vmem:[%s442 + $0x3b0] sm:$0xff]
          %v661 = vld [vmem:[%s442 + $0x3b8] sm:$0xff]
          %v662 = vld [vmem:[%s442 + $0x3c0] sm:$0xff]
          %v663 = vld [vmem:[%s442 + $0x3c8] sm:$0xff]
          %v664 = vld [vmem:[%s442 + $0x3d0] sm:$0xff]
          %v665 = vld [vmem:[%s442 + $0x3d8] sm:$0xff]
          %v666 = vld [vmem:[%s442 + $0x3e0] sm:$0xff]
          %v667 = vld [vmem:[%s442 + $0x3e8] sm:$0xff]
          %v668 = vld [vmem:[%s442 + $0x3f0] sm:$0xff]
          %v669 = vld [vmem:[%s442 + $0x3f8] sm:$0xff]
          %v670 = vmul.f32 %v542, %v542
          %v671 = vmul.f32 %v543, %v543
          %v672 = vmul.f32 %v544, %v544
          %v673 = vmul.f32 %v545, %v545
          %v674 = vmul.f32 %v546, %v546
          %v675 = vmul.f32 %v547, %v547
          %v676 = vmul.f32 %v548, %v548
          %v677 = vmul.f32 %v549, %v549
          %v678 = vmul.f32 %v550, %v550
          %v679 = vmul.f32 %v551, %v551
          %v680 = vmul.f32 %v552, %v552
          %v681 = vmul.f32 %v553, %v553
          %v682 = vmul.f32 %v554, %v554
          %v683 = vmul.f32 %v555, %v555
          %v684 = vmul.f32 %v556, %v556
          %v685 = vmul.f32 %v557, %v557
          %v686 = vmul.f32 %v558, %v558
          %v687 = vmul.f32 %v559, %v559
          %v688 = vmul.f32 %v560, %v560
          %v689 = vmul.f32 %v561, %v561
          %v690 = vmul.f32 %v562, %v562
          %v691 = vmul.f32 %v563, %v563
          %v692 = vmul.f32 %v564, %v564
          %v693 = vmul.f32 %v565, %v565
          %v694 = vmul.f32 %v566, %v566
          %v695 = vmul.f32 %v567, %v567
          %v696 = vmul.f32 %v568, %v568
          %v697 = vmul.f32 %v569, %v569
          %v698 = vmul.f32 %v570, %v570
          %v699 = vmul.f32 %v571, %v571
          %v700 = vmul.f32 %v572, %v572
          %v701 = vmul.f32 %v573, %v573
          %v702 = vmul.f32 %v574, %v574
          %v703 = vmul.f32 %v575, %v575
          %v704 = vmul.f32 %v576, %v576
          %v705 = vmul.f32 %v577, %v577
          %v706 = vmul.f32 %v578, %v578
          %v707 = vmul.f32 %v579, %v579
          %v708 = vmul.f32 %v580, %v580
          %v709 = vmul.f32 %v581, %v581
          %v710 = vmul.f32 %v582, %v582
          %v711 = vmul.f32 %v583, %v583
          %v712 = vmul.f32 %v584, %v584
          %v713 = vmul.f32 %v585, %v585
          %v714 = vmul.f32 %v586, %v586
          %v715 = vmul.f32 %v587, %v587
          %v716 = vmul.f32 %v588, %v588
          %v717 = vmul.f32 %v589, %v589
          %v718 = vmul.f32 %v590, %v590
          %v719 = vmul.f32 %v591, %v591
          %v720 = vmul.f32 %v592, %v592
          %v721 = vmul.f32 %v593, %v593
          %v722 = vmul.f32 %v594, %v594
          %v723 = vmul.f32 %v595, %v595
          %v724 = vmul.f32 %v596, %v596
          %v725 = vmul.f32 %v597, %v597
          %v726 = vmul.f32 %v598, %v598
          %v727 = vmul.f32 %v599, %v599
          %v728 = vmul.f32 %v600, %v600
          %v729 = vmul.f32 %v601, %v601
          %v730 = vmul.f32 %v602, %v602
          %v731 = vmul.f32 %v603, %v603
          %v732 = vmul.f32 %v604, %v604
          %v733 = vmul.f32 %v605, %v605
          %v734 = vmul.f32 %v606, %v606
          %v735 = vmul.f32 %v607, %v607
          %v736 = vmul.f32 %v608, %v608
          %v737 = vmul.f32 %v609, %v609
          %v738 = vmul.f32 %v610, %v610
          %v739 = vmul.f32 %v611, %v611
          %v740 = vmul.f32 %v612, %v612
          %v741 = vmul.f32 %v613, %v613
          %v742 = vmul.f32 %v614, %v614
          %v743 = vmul.f32 %v615, %v615
          %v744 = vmul.f32 %v616, %v616
          %v745 = vmul.f32 %v617, %v617
          %v746 = vmul.f32 %v618, %v618
          %v747 = vmul.f32 %v619, %v619
          %v748 = vmul.f32 %v620, %v620
          %v749 = vmul.f32 %v621, %v621
          %v750 = vmul.f32 %v622, %v622
          %v751 = vmul.f32 %v623, %v623
          %v752 = vmul.f32 %v624, %v624
          %v753 = vmul.f32 %v625, %v625
          %v754 = vmul.f32 %v626, %v626
          %v755 = vmul.f32 %v627, %v627
          %v756 = vmul.f32 %v628, %v628
          %v757 = vmul.f32 %v629, %v629
          %v758 = vmul.f32 %v630, %v630
          %v759 = vmul.f32 %v631, %v631
          %v760 = vmul.f32 %v632, %v632
          %v761 = vmul.f32 %v633, %v633
          %v762 = vmul.f32 %v634, %v634
          %v763 = vmul.f32 %v635, %v635
          %v764 = vmul.f32 %v636, %v636
          %v765 = vmul.f32 %v637, %v637
          %v766 = vmul.f32 %v638, %v638
          %v767 = vmul.f32 %v639, %v639
          %v768 = vmul.f32 %v640, %v640
          %v769 = vmul.f32 %v641, %v641
          %v770 = vmul.f32 %v642, %v642
          %v771 = vmul.f32 %v643, %v643
          %v772 = vmul.f32 %v644, %v644
          %v773 = vmul.f32 %v645, %v645
          %v774 = vmul.f32 %v646, %v646
          %v775 = vmul.f32 %v647, %v647
          %v776 = vmul.f32 %v648, %v648
          %v777 = vmul.f32 %v649, %v649
          %v778 = vmul.f32 %v650, %v650
          %v779 = vmul.f32 %v651, %v651
          %v780 = vmul.f32 %v652, %v652
          %v781 = vmul.f32 %v653, %v653
          %v782 = vmul.f32 %v654, %v654
          %v783 = vmul.f32 %v655, %v655
          %v784 = vmul.f32 %v656, %v656
          %v785 = vmul.f32 %v657, %v657
          %v786 = vmul.f32 %v658, %v658
          %v787 = vmul.f32 %v659, %v659
          %v788 = vmul.f32 %v660, %v660
          %v789 = vmul.f32 %v661, %v661
          %v790 = vmul.f32 %v662, %v662
          %v791 = vmul.f32 %v663, %v663
          %v792 = vmul.f32 %v664, %v664
          %v793 = vmul.f32 %v665, %v665
          %v794 = vmul.f32 %v666, %v666
          %v795 = vmul.f32 %v667, %v667
          %v796 = vmul.f32 %v668, %v668
          %v797 = vmul.f32 %v669, %v669
          %v798 = vadd.f32 %v670, %v671
          %v799 = vadd.f32 %v798, %v672
          %v800 = vadd.f32 %v799, %v673
          %v801 = vadd.f32 %v800, %v674
          %v802 = vadd.f32 %v801, %v675
          %v803 = vadd.f32 %v802, %v676
          %v804 = vadd.f32 %v803, %v677
          %805 = vadd.xlane.f32.xlu0 %v804
          %v806 = vpop.xlane.xlu0 %805
          %v807 = vadd.f32 %v678, %v679
          %v808 = vadd.f32 %v807, %v680
          %v809 = vadd.f32 %v808, %v681
          %v810 = vadd.f32 %v809, %v682
          %v811 = vadd.f32 %v810, %v683
          %v812 = vadd.f32 %v811, %v684
          %v813 = vadd.f32 %v812, %v685
          %814 = vadd.xlane.f32.xlu0 %v813
          %v815 = vpop.xlane.xlu0 %814
          %v816 = vadd.f32 %v686, %v687
          %v817 = vadd.f32 %v816, %v688
          %v818 = vadd.f32 %v817, %v689
          %v819 = vadd.f32 %v818, %v690
          %v820 = vadd.f32 %v819, %v691
          %v821 = vadd.f32 %v820, %v692
          %v822 = vadd.f32 %v821, %v693
          %823 = vadd.xlane.f32.xlu0 %v822
          %v824 = vpop.xlane.xlu0 %823
          %v825 = vadd.f32 %v694, %v695
          %v826 = vadd.f32 %v825, %v696
          %v827 = vadd.f32 %v826, %v697
          %v828 = vadd.f32 %v827, %v698
          %v829 = vadd.f32 %v828, %v699
          %v830 = vadd.f32 %v829, %v700
          %v831 = vadd.f32 %v830, %v701
          %832 = vadd.xlane.f32.xlu0 %v831
          %v833 = vpop.xlane.xlu0 %832
          %v834 = vadd.f32 %v702, %v703
          %v835 = vadd.f32 %v834, %v704
          %v836 = vadd.f32 %v835, %v705
          %v837 = vadd.f32 %v836, %v706
          %v838 = vadd.f32 %v837, %v707
          %v839 = vadd.f32 %v838, %v708
          %v840 = vadd.f32 %v839, %v709
          %841 = vadd.xlane.f32.xlu0 %v840
          %v842 = vpop.xlane.xlu0 %841
          %v843 = vadd.f32 %v710, %v711
          %v844 = vadd.f32 %v843, %v712
          %v845 = vadd.f32 %v844, %v713
          %v846 = vadd.f32 %v845, %v714
          %v847 = vadd.f32 %v846, %v715
          %v848 = vadd.f32 %v847, %v716
          %v849 = vadd.f32 %v848, %v717
          %850 = vadd.xlane.f32.xlu0 %v849
          %v851 = vpop.xlane.xlu0 %850
          %v852 = vadd.f32 %v718, %v719
          %v853 = vadd.f32 %v852, %v720
          %v854 = vadd.f32 %v853, %v721
          %v855 = vadd.f32 %v854, %v722
          %v856 = vadd.f32 %v855, %v723
          %v857 = vadd.f32 %v856, %v724
          %v858 = vadd.f32 %v857, %v725
          %859 = vadd.xlane.f32.xlu0 %v858
          %v860 = vpop.xlane.xlu0 %859
          %v861 = vadd.f32 %v726, %v727
          %v862 = vadd.f32 %v861, %v728
          %v863 = vadd.f32 %v862, %v729
          %v864 = vadd.f32 %v863, %v730
          %v865 = vadd.f32 %v864, %v731
          %v866 = vadd.f32 %v865, %v732
          %v867 = vadd.f32 %v866, %v733
          %868 = vadd.xlane.f32.xlu0 %v867
          %v869 = vpop.xlane.xlu0 %868
          %v870 = vadd.f32 %v734, %v735
          %v871 = vadd.f32 %v870, %v736
          %v872 = vadd.f32 %v871, %v737
          %v873 = vadd.f32 %v872, %v738
          %v874 = vadd.f32 %v873, %v739
          %v875 = vadd.f32 %v874, %v740
          %v876 = vadd.f32 %v875, %v741
          %877 = vadd.xlane.f32.xlu0 %v876
          %v878 = vpop.xlane.xlu0 %877
          %v879 = vadd.f32 %v742, %v743
          %v880 = vadd.f32 %v879, %v744
          %v881 = vadd.f32 %v880, %v745
          %v882 = vadd.f32 %v881, %v746
          %v883 = vadd.f32 %v882, %v747
          %v884 = vadd.f32 %v883, %v748
          %v885 = vadd.f32 %v884, %v749
          %886 = vadd.xlane.f32.xlu0 %v885
          %v887 = vpop.xlane.xlu0 %886
          %v888 = vadd.f32 %v750, %v751
          %v889 = vadd.f32 %v888, %v752
          %v890 = vadd.f32 %v889, %v753
          %v891 = vadd.f32 %v890, %v754
          %v892 = vadd.f32 %v891, %v755
          %v893 = vadd.f32 %v892, %v756
          %v894 = vadd.f32 %v893, %v757
          %895 = vadd.xlane.f32.xlu0 %v894
          %v896 = vpop.xlane.xlu0 %895
          %v897 = vadd.f32 %v758, %v759
          %v898 = vadd.f32 %v897, %v760
          %v899 = vadd.f32 %v898, %v761
          %v900 = vadd.f32 %v899, %v762
          %v901 = vadd.f32 %v900, %v763
          %v902 = vadd.f32 %v901, %v764
          %v903 = vadd.f32 %v902, %v765
          %904 = vadd.xlane.f32.xlu0 %v903
          %v905 = vpop.xlane.xlu0 %904
          %v906 = vadd.f32 %v766, %v767
          %v907 = vadd.f32 %v906, %v768
          %v908 = vadd.f32 %v907, %v769
          %v909 = vadd.f32 %v908, %v770
          %v910 = vadd.f32 %v909, %v771
          %v911 = vadd.f32 %v910, %v772
          %v912 = vadd.f32 %v911, %v773
          %913 = vadd.xlane.f32.xlu0 %v912
          %v914 = vpop.xlane.xlu0 %913
          %v915 = vadd.f32 %v774, %v775
          %v916 = vadd.f32 %v915, %v776
          %v917 = vadd.f32 %v916, %v777
          %v918 = vadd.f32 %v917, %v778
          %v919 = vadd.f32 %v918, %v779
          %v920 = vadd.f32 %v919, %v780
          %v921 = vadd.f32 %v920, %v781
          %922 = vadd.xlane.f32.xlu0 %v921
          %v923 = vpop.xlane.xlu0 %922
          %v924 = vadd.f32 %v782, %v783
          %v925 = vadd.f32 %v924, %v784
          %v926 = vadd.f32 %v925, %v785
          %v927 = vadd.f32 %v926, %v786
          %v928 = vadd.f32 %v927, %v787
          %v929 = vadd.f32 %v928, %v788
          %v930 = vadd.f32 %v929, %v789
          %931 = vadd.xlane.f32.xlu0 %v930
          %v932 = vpop.xlane.xlu0 %931
          %v933 = vadd.f32 %v790, %v791
          %v934 = vadd.f32 %v933, %v792
          %v935 = vadd.f32 %v934, %v793
          %v936 = vadd.f32 %v935, %v794
          %v937 = vadd.f32 %v936, %v795
          %v938 = vadd.f32 %v937, %v796
          %v939 = vadd.f32 %v938, %v797
          %940 = vadd.xlane.f32.xlu0 %v939
          %v941 = vpop.xlane.xlu0 %940
          %v942 = vmax.f32 %v806, 1e-24
          %v943 = vmax.f32 %v815, 1e-24
          %v944 = vmax.f32 %v824, 1e-24
          %v945 = vmax.f32 %v833, 1e-24
          %v946 = vmax.f32 %v842, 1e-24
          %v947 = vmax.f32 %v851, 1e-24
          %v948 = vmax.f32 %v860, 1e-24
          %v949 = vmax.f32 %v869, 1e-24
          %v950 = vmax.f32 %v878, 1e-24
          %v951 = vmax.f32 %v887, 1e-24
          %v952 = vmax.f32 %v896, 1e-24
          %v953 = vmax.f32 %v905, 1e-24
          %v954 = vmax.f32 %v914, 1e-24
          %v955 = vmax.f32 %v923, 1e-24
          %v956 = vmax.f32 %v932, 1e-24
          %v957 = vmax.f32 %v941, 1e-24
          %v958 = vrsqrt.pop %v942
          %v959 = vmul.f32 %v958, %v942
          %v960 = vmul.f32 %v959, %v958
          %v961 = vmul.f32 0.5, %v960
          %v962 = vsub.f32 1.5, %v961
          %v963 = vmul.f32 %v958, %v962
          %vm964 = vweird.f32 %v942
          %vm965 = vweird.f32 %v958
          %vm966 = vmor %vm964, %vm965
          %v967 = vsel %vm966, %v958, %v963
          %v968 = vrsqrt.pop %v943
          %v969 = vmul.f32 %v968, %v943
          %v970 = vmul.f32 %v969, %v968
          %v971 = vmul.f32 0.5, %v970
          %v972 = vsub.f32 1.5, %v971
          %v973 = vmul.f32 %v968, %v972
          %vm974 = vweird.f32 %v943
          %vm975 = vweird.f32 %v968
          %vm976 = vmor %vm974, %vm975
          %v977 = vsel %vm976, %v968, %v973
          %v978 = vrsqrt.pop %v944
          %v979 = vmul.f32 %v978, %v944
          %v980 = vmul.f32 %v979, %v978
          %v981 = vmul.f32 0.5, %v980
          %v982 = vsub.f32 1.5, %v981
          %v983 = vmul.f32 %v978, %v982
          %vm984 = vweird.f32 %v944
          %vm985 = vweird.f32 %v978
          %vm986 = vmor %vm984, %vm985
          %v987 = vsel %vm986, %v978, %v983
          %v988 = vrsqrt.pop %v945
          %v989 = vmul.f32 %v988, %v945
          %v990 = vmul.f32 %v989, %v988
          %v991 = vmul.f32 0.5, %v990
          %v992 = vsub.f32 1.5, %v991
          %v993 = vmul.f32 %v988, %v992
          %vm994 = vweird.f32 %v945
          %vm995 = vweird.f32 %v988
          %vm996 = vmor %vm994, %vm995
          %v997 = vsel %vm996, %v988, %v993
          %v998 = vrsqrt.pop %v946
          %v999 = vmul.f32 %v998, %v946
          %v1000 = vmul.f32 %v999, %v998
          %v1001 = vmul.f32 0.5, %v1000
          %v1002 = vsub.f32 1.5, %v1001
          %v1003 = vmul.f32 %v998, %v1002
          %vm1004 = vweird.f32 %v946
          %vm1005 = vweird.f32 %v998
          %vm1006 = vmor %vm1004, %vm1005
          %v1007 = vsel %vm1006, %v998, %v1003
          %v1008 = vrsqrt.pop %v947
          %v1009 = vmul.f32 %v1008, %v947
          %v1010 = vmul.f32 %v1009, %v1008
          %v1011 = vmul.f32 0.5, %v1010
          %v1012 = vsub.f32 1.5, %v1011
          %v1013 = vmul.f32 %v1008, %v1012
          %vm1014 = vweird.f32 %v947
          %vm1015 = vweird.f32 %v1008
          %vm1016 = vmor %vm1014, %vm1015
          %v1017 = vsel %vm1016, %v1008, %v1013
          %v1018 = vrsqrt.pop %v948
          %v1019 = vmul.f32 %v1018, %v948
          %v1020 = vmul.f32 %v1019, %v1018
          %v1021 = vmul.f32 0.5, %v1020
          %v1022 = vsub.f32 1.5, %v1021
          %v1023 = vmul.f32 %v1018, %v1022
          %vm1024 = vweird.f32 %v948
          %vm1025 = vweird.f32 %v1018
          %vm1026 = vmor %vm1024, %vm1025
          %v1027 = vsel %vm1026, %v1018, %v1023
          %v1028 = vrsqrt.pop %v949
          %v1029 = vmul.f32 %v1028, %v949
          %v1030 = vmul.f32 %v1029, %v1028
          %v1031 = vmul.f32 0.5, %v1030
          %v1032 = vsub.f32 1.5, %v1031
          %v1033 = vmul.f32 %v1028, %v1032
          %vm1034 = vweird.f32 %v949
          %vm1035 = vweird.f32 %v1028
          %vm1036 = vmor %vm1034, %vm1035
          %v1037 = vsel %vm1036, %v1028, %v1033
          %v1038 = vrsqrt.pop %v950
          %v1039 = vmul.f32 %v1038, %v950
          %v1040 = vmul.f32 %v1039, %v1038
          %v1041 = vmul.f32 0.5, %v1040
          %v1042 = vsub.f32 1.5, %v1041
          %v1043 = vmul.f32 %v1038, %v1042
          %vm1044 = vweird.f32 %v950
          %vm1045 = vweird.f32 %v1038
          %vm1046 = vmor %vm1044, %vm1045
          %v1047 = vsel %vm1046, %v1038, %v1043
          %v1048 = vrsqrt.pop %v951
          %v1049 = vmul.f32 %v1048, %v951
          %v1050 = vmul.f32 %v1049, %v1048
          %v1051 = vmul.f32 0.5, %v1050
          %v1052 = vsub.f32 1.5, %v1051
          %v1053 = vmul.f32 %v1048, %v1052
          %vm1054 = vweird.f32 %v951
          %vm1055 = vweird.f32 %v1048
          %vm1056 = vmor %vm1054, %vm1055
          %v1057 = vsel %vm1056, %v1048, %v1053
          %v1058 = vrsqrt.pop %v952
          %v1059 = vmul.f32 %v1058, %v952
          %v1060 = vmul.f32 %v1059, %v1058
          %v1061 = vmul.f32 0.5, %v1060
          %v1062 = vsub.f32 1.5, %v1061
          %v1063 = vmul.f32 %v1058, %v1062
          %vm1064 = vweird.f32 %v952
          %vm1065 = vweird.f32 %v1058
          %vm1066 = vmor %vm1064, %vm1065
          %v1067 = vsel %vm1066, %v1058, %v1063
          %v1068 = vrsqrt.pop %v953
          %v1069 = vmul.f32 %v1068, %v953
          %v1070 = vmul.f32 %v1069, %v1068
          %v1071 = vmul.f32 0.5, %v1070
          %v1072 = vsub.f32 1.5, %v1071
          %v1073 = vmul.f32 %v1068, %v1072
          %vm1074 = vweird.f32 %v953
          %vm1075 = vweird.f32 %v1068
          %vm1076 = vmor %vm1074, %vm1075
          %v1077 = vsel %vm1076, %v1068, %v1073
          %v1078 = vrsqrt.pop %v954
          %v1079 = vmul.f32 %v1078, %v954
          %v1080 = vmul.f32 %v1079, %v1078
          %v1081 = vmul.f32 0.5, %v1080
          %v1082 = vsub.f32 1.5, %v1081
          %v1083 = vmul.f32 %v1078, %v1082
          %vm1084 = vweird.f32 %v954
          %vm1085 = vweird.f32 %v1078
          %vm1086 = vmor %vm1084, %vm1085
          %v1087 = vsel %vm1086, %v1078, %v1083
          %v1088 = vrsqrt.pop %v955
          %v1089 = vmul.f32 %v1088, %v955
          %v1090 = vmul.f32 %v1089, %v1088
          %v1091 = vmul.f32 0.5, %v1090
          %v1092 = vsub.f32 1.5, %v1091
          %v1093 = vmul.f32 %v1088, %v1092
          %vm1094 = vweird.f32 %v955
          %vm1095 = vweird.f32 %v1088
          %vm1096 = vmor %vm1094, %vm1095
          %v1097 = vsel %vm1096, %v1088, %v1093
          %v1098 = vrsqrt.pop %v956
          %v1099 = vmul.f32 %v1098, %v956
          %v1100 = vmul.f32 %v1099, %v1098
          %v1101 = vmul.f32 0.5, %v1100
          %v1102 = vsub.f32 1.5, %v1101
          %v1103 = vmul.f32 %v1098, %v1102
          %vm1104 = vweird.f32 %v956
          %vm1105 = vweird.f32 %v1098
          %vm1106 = vmor %vm1104, %vm1105
          %v1107 = vsel %vm1106, %v1098, %v1103
          %v1108 = vrsqrt.pop %v957
          %v1109 = vmul.f32 %v1108, %v957
          %v1110 = vmul.f32 %v1109, %v1108
          %v1111 = vmul.f32 0.5, %v1110
          %v1112 = vsub.f32 1.5, %v1111
          %v1113 = vmul.f32 %v1108, %v1112
          %vm1114 = vweird.f32 %v957
          %vm1115 = vweird.f32 %v1108
          %vm1116 = vmor %vm1114, %vm1115
          %v1117 = vsel %vm1116, %v1108, %v1113
          %v1118 = vmul.f32 %v542, %v967
          %v1119 = vmul.f32 %v543, %v967
          %v1120 = vmul.f32 %v544, %v967
          %v1121 = vmul.f32 %v545, %v967
          %v1122 = vmul.f32 %v546, %v967
          %v1123 = vmul.f32 %v547, %v967
          %v1124 = vmul.f32 %v548, %v967
          %v1125 = vmul.f32 %v549, %v967
          %v1126 = vmul.f32 %v550, %v977
          %v1127 = vmul.f32 %v551, %v977
          %v1128 = vmul.f32 %v552, %v977
          %v1129 = vmul.f32 %v553, %v977
          %v1130 = vmul.f32 %v554, %v977
          %v1131 = vmul.f32 %v555, %v977
          %v1132 = vmul.f32 %v556, %v977
          %v1133 = vmul.f32 %v557, %v977
          %v1134 = vmul.f32 %v558, %v987
          %v1135 = vmul.f32 %v559, %v987
          %v1136 = vmul.f32 %v560, %v987
          %v1137 = vmul.f32 %v561, %v987
          %v1138 = vmul.f32 %v562, %v987
          %v1139 = vmul.f32 %v563, %v987
          %v1140 = vmul.f32 %v564, %v987
          %v1141 = vmul.f32 %v565, %v987
          %v1142 = vmul.f32 %v566, %v997
          %v1143 = vmul.f32 %v567, %v997
          %v1144 = vmul.f32 %v568, %v997
          %v1145 = vmul.f32 %v569, %v997
          %v1146 = vmul.f32 %v570, %v997
          %v1147 = vmul.f32 %v571, %v997
          %v1148 = vmul.f32 %v572, %v997
          %v1149 = vmul.f32 %v573, %v997
          %v1150 = vmul.f32 %v574, %v1007
          %v1151 = vmul.f32 %v575, %v1007
          %v1152 = vmul.f32 %v576, %v1007
          %v1153 = vmul.f32 %v577, %v1007
          %v1154 = vmul.f32 %v578, %v1007
          %v1155 = vmul.f32 %v579, %v1007
          %v1156 = vmul.f32 %v580, %v1007
          %v1157 = vmul.f32 %v581, %v1007
          %v1158 = vmul.f32 %v582, %v1017
          %v1159 = vmul.f32 %v583, %v1017
          %v1160 = vmul.f32 %v584, %v1017
          %v1161 = vmul.f32 %v585, %v1017
          %v1162 = vmul.f32 %v586, %v1017
          %v1163 = vmul.f32 %v587, %v1017
          %v1164 = vmul.f32 %v588, %v1017
          %v1165 = vmul.f32 %v589, %v1017
          %v1166 = vmul.f32 %v590, %v1027
          %v1167 = vmul.f32 %v591, %v1027
          %v1168 = vmul.f32 %v592, %v1027
          %v1169 = vmul.f32 %v593, %v1027
          %v1170 = vmul.f32 %v594, %v1027
          %v1171 = vmul.f32 %v595, %v1027
          %v1172 = vmul.f32 %v596, %v1027
          %v1173 = vmul.f32 %v597, %v1027
          %v1174 = vmul.f32 %v598, %v1037
          %v1175 = vmul.f32 %v599, %v1037
          %v1176 = vmul.f32 %v600, %v1037
          %v1177 = vmul.f32 %v601, %v1037
          %v1178 = vmul.f32 %v602, %v1037
          %v1179 = vmul.f32 %v603, %v1037
          %v1180 = vmul.f32 %v604, %v1037
          %v1181 = vmul.f32 %v605, %v1037
          %v1182 = vmul.f32 %v606, %v1047
          %v1183 = vmul.f32 %v607, %v1047
          %v1184 = vmul.f32 %v608, %v1047
          %v1185 = vmul.f32 %v609, %v1047
          %v1186 = vmul.f32 %v610, %v1047
          %v1187 = vmul.f32 %v611, %v1047
          %v1188 = vmul.f32 %v612, %v1047
          %v1189 = vmul.f32 %v613, %v1047
          %v1190 = vmul.f32 %v614, %v1057
          %v1191 = vmul.f32 %v615, %v1057
          %v1192 = vmul.f32 %v616, %v1057
          %v1193 = vmul.f32 %v617, %v1057
          %v1194 = vmul.f32 %v618, %v1057
          %v1195 = vmul.f32 %v619, %v1057
          %v1196 = vmul.f32 %v620, %v1057
          %v1197 = vmul.f32 %v621, %v1057
          %v1198 = vmul.f32 %v622, %v1067
          %v1199 = vmul.f32 %v623, %v1067
          %v1200 = vmul.f32 %v624, %v1067
          %v1201 = vmul.f32 %v625, %v1067
          %v1202 = vmul.f32 %v626, %v1067
          %v1203 = vmul.f32 %v627, %v1067
          %v1204 = vmul.f32 %v628, %v1067
          %v1205 = vmul.f32 %v629, %v1067
          %v1206 = vmul.f32 %v630, %v1077
          %v1207 = vmul.f32 %v631, %v1077
          %v1208 = vmul.f32 %v632, %v1077
          %v1209 = vmul.f32 %v633, %v1077
          %v1210 = vmul.f32 %v634, %v1077
          %v1211 = vmul.f32 %v635, %v1077
          %v1212 = vmul.f32 %v636, %v1077
          %v1213 = vmul.f32 %v637, %v1077
          %v1214 = vmul.f32 %v638, %v1087
          %v1215 = vmul.f32 %v639, %v1087
          %v1216 = vmul.f32 %v640, %v1087
          %v1217 = vmul.f32 %v641, %v1087
          %v1218 = vmul.f32 %v642, %v1087
          %v1219 = vmul.f32 %v643, %v1087
          %v1220 = vmul.f32 %v644, %v1087
          %v1221 = vmul.f32 %v645, %v1087
          %v1222 = vmul.f32 %v646, %v1097
          %v1223 = vmul.f32 %v647, %v1097
          %v1224 = vmul.f32 %v648, %v1097
          %v1225 = vmul.f32 %v649, %v1097
          %v1226 = vmul.f32 %v650, %v1097
          %v1227 = vmul.f32 %v651, %v1097
          %v1228 = vmul.f32 %v652, %v1097
          %v1229 = vmul.f32 %v653, %v1097
          %v1230 = vmul.f32 %v654, %v1107
          %v1231 = vmul.f32 %v655, %v1107
          %v1232 = vmul.f32 %v656, %v1107
          %v1233 = vmul.f32 %v657, %v1107
          %v1234 = vmul.f32 %v658, %v1107
          %v1235 = vmul.f32 %v659, %v1107
          %v1236 = vmul.f32 %v660, %v1107
          %v1237 = vmul.f32 %v661, %v1107
          %v1238 = vmul.f32 %v662, %v1117
          %v1239 = vmul.f32 %v663, %v1117
          %v1240 = vmul.f32 %v664, %v1117
          %v1241 = vmul.f32 %v665, %v1117
          %v1242 = vmul.f32 %v666, %v1117
          %v1243 = vmul.f32 %v667, %v1117
          %v1244 = vmul.f32 %v668, %v1117
          %v1245 = vmul.f32 %v669, %v1117
          %v1246 = vpack.c.bf16 %v1126, %v1118
          %v1247 = vpack.c.bf16 %v1127, %v1119
          %v1248 = vpack.c.bf16 %v1128, %v1120
          %v1249 = vpack.c.bf16 %v1129, %v1121
          %v1250 = vpack.c.bf16 %v1130, %v1122
          %v1251 = vpack.c.bf16 %v1131, %v1123
          %v1252 = vpack.c.bf16 %v1132, %v1124
          %v1253 = vpack.c.bf16 %v1133, %v1125
          %v1254 = vpack.c.bf16 %v1142, %v1134
          %v1255 = vpack.c.bf16 %v1143, %v1135
          %v1256 = vpack.c.bf16 %v1144, %v1136
          %v1257 = vpack.c.bf16 %v1145, %v1137
          %v1258 = vpack.c.bf16 %v1146, %v1138
          %v1259 = vpack.c.bf16 %v1147, %v1139
          %v1260 = vpack.c.bf16 %v1148, %v1140
          %v1261 = vpack.c.bf16 %v1149, %v1141
          %v1262 = vpack.c.bf16 %v1158, %v1150
          %v1263 = vpack.c.bf16 %v1159, %v1151
          %v1264 = vpack.c.bf16 %v1160, %v1152
          %v1265 = vpack.c.bf16 %v1161, %v1153
          %v1266 = vpack.c.bf16 %v1162, %v1154
          %v1267 = vpack.c.bf16 %v1163, %v1155
          %v1268 = vpack.c.bf16 %v1164, %v1156
          %v1269 = vpack.c.bf16 %v1165, %v1157
          %v1270 = vpack.c.bf16 %v1174, %v1166
          %v1271 = vpack.c.bf16 %v1175, %v1167
          %v1272 = vpack.c.bf16 %v1176, %v1168
          %v1273 = vpack.c.bf16 %v1177, %v1169
          %v1274 = vpack.c.bf16 %v1178, %v1170
          %v1275 = vpack.c.bf16 %v1179, %v1171
          %v1276 = vpack.c.bf16 %v1180, %v1172
          %v1277 = vpack.c.bf16 %v1181, %v1173
          %v1278 = vpack.c.bf16 %v1190, %v1182
          %v1279 = vpack.c.bf16 %v1191, %v1183
          %v1280 = vpack.c.bf16 %v1192, %v1184
          %v1281 = vpack.c.bf16 %v1193, %v1185
          %v1282 = vpack.c.bf16 %v1194, %v1186
          %v1283 = vpack.c.bf16 %v1195, %v1187
          %v1284 = vpack.c.bf16 %v1196, %v1188
          %v1285 = vpack.c.bf16 %v1197, %v1189
          %v1286 = vpack.c.bf16 %v1206, %v1198
          %v1287 = vpack.c.bf16 %v1207, %v1199
          %v1288 = vpack.c.bf16 %v1208, %v1200
          %v1289 = vpack.c.bf16 %v1209, %v1201
          %v1290 = vpack.c.bf16 %v1210, %v1202
          %v1291 = vpack.c.bf16 %v1211, %v1203
          %v1292 = vpack.c.bf16 %v1212, %v1204
          %v1293 = vpack.c.bf16 %v1213, %v1205
          %v1294 = vpack.c.bf16 %v1222, %v1214
          %v1295 = vpack.c.bf16 %v1223, %v1215
          %v1296 = vpack.c.bf16 %v1224, %v1216
          %v1297 = vpack.c.bf16 %v1225, %v1217
          %v1298 = vpack.c.bf16 %v1226, %v1218
          %v1299 = vpack.c.bf16 %v1227, %v1219
          %v1300 = vpack.c.bf16 %v1228, %v1220
          %v1301 = vpack.c.bf16 %v1229, %v1221
          %v1302 = vpack.c.bf16 %v1238, %v1230
          %v1303 = vpack.c.bf16 %v1239, %v1231
          %v1304 = vpack.c.bf16 %v1240, %v1232
          %v1305 = vpack.c.bf16 %v1241, %v1233
          %v1306 = vpack.c.bf16 %v1242, %v1234
          %v1307 = vpack.c.bf16 %v1243, %v1235
          %v1308 = vpack.c.bf16 %v1244, %v1236
          %v1309 = vpack.c.bf16 %v1245, %v1237
          %v1310 = vld [vmem:[#allocation6] sm:$0xff]
          %v1311 = vld [vmem:[#allocation6 + $0x8] sm:$0xff]
          %v1312 = vld [vmem:[#allocation6 + $0x10] sm:$0xff]
          %v1313 = vld [vmem:[#allocation6 + $0x18] sm:$0xff]
          %v1314 = vld [vmem:[#allocation6 + $0x20] sm:$0xff]
          %v1315 = vld [vmem:[#allocation6 + $0x28] sm:$0xff]
          %v1316 = vld [vmem:[#allocation6 + $0x30] sm:$0xff]
          %v1317 = vld [vmem:[#allocation6 + $0x38] sm:$0xff]
          %v1318 = vld [vmem:[#allocation6 + $0x40] sm:$0xff]
          %v1319 = vld [vmem:[#allocation6 + $0x48] sm:$0xff]
          %v1320 = vld [vmem:[#allocation6 + $0x50] sm:$0xff]
          %v1321 = vld [vmem:[#allocation6 + $0x58] sm:$0xff]
          %v1322 = vld [vmem:[#allocation6 + $0x60] sm:$0xff]
          %v1323 = vld [vmem:[#allocation6 + $0x68] sm:$0xff]
          %v1324 = vld [vmem:[#allocation6 + $0x70] sm:$0xff]
          %v1325 = vld [vmem:[#allocation6 + $0x78] sm:$0xff]
          %v1326 = vld [vmem:[#allocation6 + $0x80] sm:$0xff]
          %v1327 = vld [vmem:[#allocation6 + $0x88] sm:$0xff]
          %v1328 = vld [vmem:[#allocation6 + $0x90] sm:$0xff]
          %v1329 = vld [vmem:[#allocation6 + $0x98] sm:$0xff]
          %v1330 = vld [vmem:[#allocation6 + $0xa0] sm:$0xff]
          %v1331 = vld [vmem:[#allocation6 + $0xa8] sm:$0xff]
          %v1332 = vld [vmem:[#allocation6 + $0xb0] sm:$0xff]
          %v1333 = vld [vmem:[#allocation6 + $0xb8] sm:$0xff]
          %v1334 = vld [vmem:[#allocation6 + $0xc0] sm:$0xff]
          %v1335 = vld [vmem:[#allocation6 + $0xc8] sm:$0xff]
          %v1336 = vld [vmem:[#allocation6 + $0xd0] sm:$0xff]
          %v1337 = vld [vmem:[#allocation6 + $0xd8] sm:$0xff]
          %v1338 = vld [vmem:[#allocation6 + $0xe0] sm:$0xff]
          %v1339 = vld [vmem:[#allocation6 + $0xe8] sm:$0xff]
          %v1340 = vld [vmem:[#allocation6 + $0xf0] sm:$0xff]
          %v1341 = vld [vmem:[#allocation6 + $0xf8] sm:$0xff]
          %v1342 = vld [vmem:[#allocation6 + $0x100] sm:$0xff]
          %v1343 = vld [vmem:[#allocation6 + $0x108] sm:$0xff]
          %v1344 = vld [vmem:[#allocation6 + $0x110] sm:$0xff]
          %v1345 = vld [vmem:[#allocation6 + $0x118] sm:$0xff]
          %v1346 = vld [vmem:[#allocation6 + $0x120] sm:$0xff]
          %v1347 = vld [vmem:[#allocation6 + $0x128] sm:$0xff]
          %v1348 = vld [vmem:[#allocation6 + $0x130] sm:$0xff]
          %v1349 = vld [vmem:[#allocation6 + $0x138] sm:$0xff]
          %v1350 = vld [vmem:[#allocation6 + $0x140] sm:$0xff]
          %v1351 = vld [vmem:[#allocation6 + $0x148] sm:$0xff]
          %v1352 = vld [vmem:[#allocation6 + $0x150] sm:$0xff]
          %v1353 = vld [vmem:[#allocation6 + $0x158] sm:$0xff]
          %v1354 = vld [vmem:[#allocation6 + $0x160] sm:$0xff]
          %v1355 = vld [vmem:[#allocation6 + $0x168] sm:$0xff]
          %v1356 = vld [vmem:[#allocation6 + $0x170] sm:$0xff]
          %v1357 = vld [vmem:[#allocation6 + $0x178] sm:$0xff]
          %v1358 = vld [vmem:[#allocation6 + $0x180] sm:$0xff]
          %v1359 = vld [vmem:[#allocation6 + $0x188] sm:$0xff]
          %v1360 = vld [vmem:[#allocation6 + $0x190] sm:$0xff]
          %v1361 = vld [vmem:[#allocation6 + $0x198] sm:$0xff]
          %v1362 = vld [vmem:[#allocation6 + $0x1a0] sm:$0xff]
          %v1363 = vld [vmem:[#allocation6 + $0x1a8] sm:$0xff]
          %v1364 = vld [vmem:[#allocation6 + $0x1b0] sm:$0xff]
          %v1365 = vld [vmem:[#allocation6 + $0x1b8] sm:$0xff]
          %v1366 = vld [vmem:[#allocation6 + $0x1c0] sm:$0xff]
          %v1367 = vld [vmem:[#allocation6 + $0x1c8] sm:$0xff]
          %v1368 = vld [vmem:[#allocation6 + $0x1d0] sm:$0xff]
          %v1369 = vld [vmem:[#allocation6 + $0x1d8] sm:$0xff]
          %v1370 = vld [vmem:[#allocation6 + $0x1e0] sm:$0xff]
          %v1371 = vld [vmem:[#allocation6 + $0x1e8] sm:$0xff]
          %v1372 = vld [vmem:[#allocation6 + $0x1f0] sm:$0xff]
          %v1373 = vld [vmem:[#allocation6 + $0x1f8] sm:$0xff]
          %v1374 = vld [vmem:[#allocation6 + $0x200] sm:$0xff]
          %v1375 = vld [vmem:[#allocation6 + $0x208] sm:$0xff]
          %v1376 = vld [vmem:[#allocation6 + $0x210] sm:$0xff]
          %v1377 = vld [vmem:[#allocation6 + $0x218] sm:$0xff]
          %v1378 = vld [vmem:[#allocation6 + $0x220] sm:$0xff]
          %v1379 = vld [vmem:[#allocation6 + $0x228] sm:$0xff]
          %v1380 = vld [vmem:[#allocation6 + $0x230] sm:$0xff]
          %v1381 = vld [vmem:[#allocation6 + $0x238] sm:$0xff]
          %v1382 = vld [vmem:[#allocation6 + $0x240] sm:$0xff]
          %v1383 = vld [vmem:[#allocation6 + $0x248] sm:$0xff]
          %v1384 = vld [vmem:[#allocation6 + $0x250] sm:$0xff]
          %v1385 = vld [vmem:[#allocation6 + $0x258] sm:$0xff]
          %v1386 = vld [vmem:[#allocation6 + $0x260] sm:$0xff]
          %v1387 = vld [vmem:[#allocation6 + $0x268] sm:$0xff]
          %v1388 = vld [vmem:[#allocation6 + $0x270] sm:$0xff]
          %v1389 = vld [vmem:[#allocation6 + $0x278] sm:$0xff]
          %v1390 = vld [vmem:[#allocation6 + $0x280] sm:$0xff]
          %v1391 = vld [vmem:[#allocation6 + $0x288] sm:$0xff]
          %v1392 = vld [vmem:[#allocation6 + $0x290] sm:$0xff]
          %v1393 = vld [vmem:[#allocation6 + $0x298] sm:$0xff]
          %v1394 = vld [vmem:[#allocation6 + $0x2a0] sm:$0xff]
          %v1395 = vld [vmem:[#allocation6 + $0x2a8] sm:$0xff]
          %v1396 = vld [vmem:[#allocation6 + $0x2b0] sm:$0xff]
          %v1397 = vld [vmem:[#allocation6 + $0x2b8] sm:$0xff]
          %v1398 = vld [vmem:[#allocation6 + $0x2c0] sm:$0xff]
          %v1399 = vld [vmem:[#allocation6 + $0x2c8] sm:$0xff]
          %v1400 = vld [vmem:[#allocation6 + $0x2d0] sm:$0xff]
          %v1401 = vld [vmem:[#allocation6 + $0x2d8] sm:$0xff]
          %v1402 = vld [vmem:[#allocation6 + $0x2e0] sm:$0xff]
          %v1403 = vld [vmem:[#allocation6 + $0x2e8] sm:$0xff]
          %v1404 = vld [vmem:[#allocation6 + $0x2f0] sm:$0xff]
          %v1405 = vld [vmem:[#allocation6 + $0x2f8] sm:$0xff]
          %v1406 = vld [vmem:[#allocation6 + $0x300] sm:$0xff]
          %v1407 = vld [vmem:[#allocation6 + $0x308] sm:$0xff]
          %v1408 = vld [vmem:[#allocation6 + $0x310] sm:$0xff]
          %v1409 = vld [vmem:[#allocation6 + $0x318] sm:$0xff]
          %v1410 = vld [vmem:[#allocation6 + $0x320] sm:$0xff]
          %v1411 = vld [vmem:[#allocation6 + $0x328] sm:$0xff]
          %v1412 = vld [vmem:[#allocation6 + $0x330] sm:$0xff]
          %v1413 = vld [vmem:[#allocation6 + $0x338] sm:$0xff]
          %v1414 = vld [vmem:[#allocation6 + $0x340] sm:$0xff]
          %v1415 = vld [vmem:[#allocation6 + $0x348] sm:$0xff]
          %v1416 = vld [vmem:[#allocation6 + $0x350] sm:$0xff]
          %v1417 = vld [vmem:[#allocation6 + $0x358] sm:$0xff]
          %v1418 = vld [vmem:[#allocation6 + $0x360] sm:$0xff]
          %v1419 = vld [vmem:[#allocation6 + $0x368] sm:$0xff]
          %v1420 = vld [vmem:[#allocation6 + $0x370] sm:$0xff]
          %v1421 = vld [vmem:[#allocation6 + $0x378] sm:$0xff]
          %v1422 = vld [vmem:[#allocation6 + $0x380] sm:$0xff]
          %v1423 = vld [vmem:[#allocation6 + $0x388] sm:$0xff]
          %v1424 = vld [vmem:[#allocation6 + $0x390] sm:$0xff]
          %v1425 = vld [vmem:[#allocation6 + $0x398] sm:$0xff]
          %v1426 = vld [vmem:[#allocation6 + $0x3a0] sm:$0xff]
          %v1427 = vld [vmem:[#allocation6 + $0x3a8] sm:$0xff]
          %v1428 = vld [vmem:[#allocation6 + $0x3b0] sm:$0xff]
          %v1429 = vld [vmem:[#allocation6 + $0x3b8] sm:$0xff]
          %v1430 = vld [vmem:[#allocation6 + $0x3c0] sm:$0xff]
          %v1431 = vld [vmem:[#allocation6 + $0x3c8] sm:$0xff]
          %v1432 = vld [vmem:[#allocation6 + $0x3d0] sm:$0xff]
          %v1433 = vld [vmem:[#allocation6 + $0x3d8] sm:$0xff]
          %v1434 = vld [vmem:[#allocation6 + $0x3e0] sm:$0xff]
          %v1435 = vld [vmem:[#allocation6 + $0x3e8] sm:$0xff]
          %v1436 = vld [vmem:[#allocation6 + $0x3f0] sm:$0xff]
          %v1437 = vld [vmem:[#allocation6 + $0x3f8] sm:$0xff]
          %v1438 = vld [vmem:[%s3] sm:$0x3]
          %v1440 = vperm.slane %v1438, 0
          %v1441 = vperm.slane %v1438, 1
          %v1572 = vunpack.c.l.b16 %v1310
          %v1573 = vunpack.c.h.b16 %v1310
          %v1574 = vunpack.c.l.b16 %v1311
          %v1575 = vunpack.c.h.b16 %v1311
          %v1576 = vunpack.c.l.b16 %v1312
          %v1577 = vunpack.c.h.b16 %v1312
          %v1578 = vunpack.c.l.b16 %v1313
          %v1579 = vunpack.c.h.b16 %v1313
          %v1580 = vunpack.c.l.b16 %v1314
          %v1581 = vunpack.c.h.b16 %v1314
          %v1582 = vunpack.c.l.b16 %v1315
          %v1583 = vunpack.c.h.b16 %v1315
          %v1584 = vunpack.c.l.b16 %v1316
          %v1585 = vunpack.c.h.b16 %v1316
          %v1586 = vunpack.c.l.b16 %v1317
          %v1587 = vunpack.c.h.b16 %v1317
          %v1588 = vunpack.c.l.b16 %v1318
          %v1589 = vunpack.c.h.b16 %v1318
          %v1590 = vunpack.c.l.b16 %v1319
          %v1591 = vunpack.c.h.b16 %v1319
          %v1592 = vunpack.c.l.b16 %v1320
          %v1593 = vunpack.c.h.b16 %v1320
          %v1594 = vunpack.c.l.b16 %v1321
          %v1595 = vunpack.c.h.b16 %v1321
          %v1596 = vunpack.c.l.b16 %v1322
          %v1597 = vunpack.c.h.b16 %v1322
          %v1598 = vunpack.c.l.b16 %v1323
          %v1599 = vunpack.c.h.b16 %v1323
          %v1600 = vunpack.c.l.b16 %v1324
          %v1601 = vunpack.c.h.b16 %v1324
          %v1602 = vunpack.c.l.b16 %v1325
          %v1603 = vunpack.c.h.b16 %v1325
          %v1604 = vunpack.c.l.b16 %v1326
          %v1605 = vunpack.c.h.b16 %v1326
          %v1606 = vunpack.c.l.b16 %v1327
          %v1607 = vunpack.c.h.b16 %v1327
          %v1608 = vunpack.c.l.b16 %v1328
          %v1609 = vunpack.c.h.b16 %v1328
          %v1610 = vunpack.c.l.b16 %v1329
          %v1611 = vunpack.c.h.b16 %v1329
          %v1612 = vunpack.c.l.b16 %v1330
          %v1613 = vunpack.c.h.b16 %v1330
          %v1614 = vunpack.c.l.b16 %v1331
          %v1615 = vunpack.c.h.b16 %v1331
          %v1616 = vunpack.c.l.b16 %v1332
          %v1617 = vunpack.c.h.b16 %v1332
          %v1618 = vunpack.c.l.b16 %v1333
          %v1619 = vunpack.c.h.b16 %v1333
          %v1620 = vunpack.c.l.b16 %v1334
          %v1621 = vunpack.c.h.b16 %v1334
          %v1622 = vunpack.c.l.b16 %v1335
          %v1623 = vunpack.c.h.b16 %v1335
          %v1624 = vunpack.c.l.b16 %v1336
          %v1625 = vunpack.c.h.b16 %v1336
          %v1626 = vunpack.c.l.b16 %v1337
          %v1627 = vunpack.c.h.b16 %v1337
          %v1628 = vunpack.c.l.b16 %v1338
          %v1629 = vunpack.c.h.b16 %v1338
          %v1630 = vunpack.c.l.b16 %v1339
          %v1631 = vunpack.c.h.b16 %v1339
          %v1632 = vunpack.c.l.b16 %v1340
          %v1633 = vunpack.c.h.b16 %v1340
          %v1634 = vunpack.c.l.b16 %v1341
          %v1635 = vunpack.c.h.b16 %v1341
          %v1636 = vunpack.c.l.b16 %v1342
          %v1637 = vunpack.c.h.b16 %v1342
          %v1638 = vunpack.c.l.b16 %v1343
          %v1639 = vunpack.c.h.b16 %v1343
          %v1640 = vunpack.c.l.b16 %v1344
          %v1641 = vunpack.c.h.b16 %v1344
          %v1642 = vunpack.c.l.b16 %v1345
          %v1643 = vunpack.c.h.b16 %v1345
          %v1644 = vunpack.c.l.b16 %v1346
          %v1645 = vunpack.c.h.b16 %v1346
          %v1646 = vunpack.c.l.b16 %v1347
          %v1647 = vunpack.c.h.b16 %v1347
          %v1648 = vunpack.c.l.b16 %v1348
          %v1649 = vunpack.c.h.b16 %v1348
          %v1650 = vunpack.c.l.b16 %v1349
          %v1651 = vunpack.c.h.b16 %v1349
          %v1652 = vunpack.c.l.b16 %v1350
          %v1653 = vunpack.c.h.b16 %v1350
          %v1654 = vunpack.c.l.b16 %v1351
          %v1655 = vunpack.c.h.b16 %v1351
          %v1656 = vunpack.c.l.b16 %v1352
          %v1657 = vunpack.c.h.b16 %v1352
          %v1658 = vunpack.c.l.b16 %v1353
          %v1659 = vunpack.c.h.b16 %v1353
          %v1660 = vunpack.c.l.b16 %v1354
          %v1661 = vunpack.c.h.b16 %v1354
          %v1662 = vunpack.c.l.b16 %v1355
          %v1663 = vunpack.c.h.b16 %v1355
          %v1664 = vunpack.c.l.b16 %v1356
          %v1665 = vunpack.c.h.b16 %v1356
          %v1666 = vunpack.c.l.b16 %v1357
          %v1667 = vunpack.c.h.b16 %v1357
          %v1668 = vunpack.c.l.b16 %v1358
          %v1669 = vunpack.c.h.b16 %v1358
          %v1670 = vunpack.c.l.b16 %v1359
          %v1671 = vunpack.c.h.b16 %v1359
          %v1672 = vunpack.c.l.b16 %v1360
          %v1673 = vunpack.c.h.b16 %v1360
          %v1674 = vunpack.c.l.b16 %v1361
          %v1675 = vunpack.c.h.b16 %v1361
          %v1676 = vunpack.c.l.b16 %v1362
          %v1677 = vunpack.c.h.b16 %v1362
          %v1678 = vunpack.c.l.b16 %v1363
          %v1679 = vunpack.c.h.b16 %v1363
          %v1680 = vunpack.c.l.b16 %v1364
          %v1681 = vunpack.c.h.b16 %v1364
          %v1682 = vunpack.c.l.b16 %v1365
          %v1683 = vunpack.c.h.b16 %v1365
          %v1684 = vunpack.c.l.b16 %v1366
          %v1685 = vunpack.c.h.b16 %v1366
          %v1686 = vunpack.c.l.b16 %v1367
          %v1687 = vunpack.c.h.b16 %v1367
          %v1688 = vunpack.c.l.b16 %v1368
          %v1689 = vunpack.c.h.b16 %v1368
          %v1690 = vunpack.c.l.b16 %v1369
          %v1691 = vunpack.c.h.b16 %v1369
          %v1692 = vunpack.c.l.b16 %v1370
          %v1693 = vunpack.c.h.b16 %v1370
          %v1694 = vunpack.c.l.b16 %v1371
          %v1695 = vunpack.c.h.b16 %v1371
          %v1696 = vunpack.c.l.b16 %v1372
          %v1697 = vunpack.c.h.b16 %v1372
          %v1698 = vunpack.c.l.b16 %v1373
          %v1699 = vunpack.c.h.b16 %v1373
          %v1700 = vunpack.c.l.b16 %v1374
          %v1701 = vunpack.c.h.b16 %v1374
          %v1702 = vunpack.c.l.b16 %v1375
          %v1703 = vunpack.c.h.b16 %v1375
          %v1704 = vunpack.c.l.b16 %v1376
          %v1705 = vunpack.c.h.b16 %v1376
          %v1706 = vunpack.c.l.b16 %v1377
          %v1707 = vunpack.c.h.b16 %v1377
          %v1708 = vunpack.c.l.b16 %v1378
          %v1709 = vunpack.c.h.b16 %v1378
          %v1710 = vunpack.c.l.b16 %v1379
          %v1711 = vunpack.c.h.b16 %v1379
          %v1712 = vunpack.c.l.b16 %v1380
          %v1713 = vunpack.c.h.b16 %v1380
          %v1714 = vunpack.c.l.b16 %v1381
          %v1715 = vunpack.c.h.b16 %v1381
          %v1716 = vunpack.c.l.b16 %v1382
          %v1717 = vunpack.c.h.b16 %v1382
          %v1718 = vunpack.c.l.b16 %v1383
          %v1719 = vunpack.c.h.b16 %v1383
          %v1720 = vunpack.c.l.b16 %v1384
          %v1721 = vunpack.c.h.b16 %v1384
          %v1722 = vunpack.c.l.b16 %v1385
          %v1723 = vunpack.c.h.b16 %v1385
          %v1724 = vunpack.c.l.b16 %v1386
          %v1725 = vunpack.c.h.b16 %v1386
          %v1726 = vunpack.c.l.b16 %v1387
          %v1727 = vunpack.c.h.b16 %v1387
          %v1728 = vunpack.c.l.b16 %v1388
          %v1729 = vunpack.c.h.b16 %v1388
          %v1730 = vunpack.c.l.b16 %v1389
          %v1731 = vunpack.c.h.b16 %v1389
          %v1732 = vunpack.c.l.b16 %v1390
          %v1733 = vunpack.c.h.b16 %v1390
          %v1734 = vunpack.c.l.b16 %v1391
          %v1735 = vunpack.c.h.b16 %v1391
          %v1736 = vunpack.c.l.b16 %v1392
          %v1737 = vunpack.c.h.b16 %v1392
          %v1738 = vunpack.c.l.b16 %v1393
          %v1739 = vunpack.c.h.b16 %v1393
          %v1740 = vunpack.c.l.b16 %v1394
          %v1741 = vunpack.c.h.b16 %v1394
          %v1742 = vunpack.c.l.b16 %v1395
          %v1743 = vunpack.c.h.b16 %v1395
          %v1744 = vunpack.c.l.b16 %v1396
          %v1745 = vunpack.c.h.b16 %v1396
          %v1746 = vunpack.c.l.b16 %v1397
          %v1747 = vunpack.c.h.b16 %v1397
          %v1748 = vunpack.c.l.b16 %v1398
          %v1749 = vunpack.c.h.b16 %v1398
          %v1750 = vunpack.c.l.b16 %v1399
          %v1751 = vunpack.c.h.b16 %v1399
          %v1752 = vunpack.c.l.b16 %v1400
          %v1753 = vunpack.c.h.b16 %v1400
          %v1754 = vunpack.c.l.b16 %v1401
          %v1755 = vunpack.c.h.b16 %v1401
          %v1756 = vunpack.c.l.b16 %v1402
          %v1757 = vunpack.c.h.b16 %v1402
          %v1758 = vunpack.c.l.b16 %v1403
          %v1759 = vunpack.c.h.b16 %v1403
          %v1760 = vunpack.c.l.b16 %v1404
          %v1761 = vunpack.c.h.b16 %v1404
          %v1762 = vunpack.c.l.b16 %v1405
          %v1763 = vunpack.c.h.b16 %v1405
          %v1764 = vunpack.c.l.b16 %v1406
          %v1765 = vunpack.c.h.b16 %v1406
          %v1766 = vunpack.c.l.b16 %v1407
          %v1767 = vunpack.c.h.b16 %v1407
          %v1768 = vunpack.c.l.b16 %v1408
          %v1769 = vunpack.c.h.b16 %v1408
          %v1770 = vunpack.c.l.b16 %v1409
          %v1771 = vunpack.c.h.b16 %v1409
          %v1772 = vunpack.c.l.b16 %v1410
          %v1773 = vunpack.c.h.b16 %v1410
          %v1774 = vunpack.c.l.b16 %v1411
          %v1775 = vunpack.c.h.b16 %v1411
          %v1776 = vunpack.c.l.b16 %v1412
          %v1777 = vunpack.c.h.b16 %v1412
          %v1778 = vunpack.c.l.b16 %v1413
          %v1779 = vunpack.c.h.b16 %v1413
          %v1780 = vunpack.c.l.b16 %v1414
          %v1781 = vunpack.c.h.b16 %v1414
          %v1782 = vunpack.c.l.b16 %v1415
          %v1783 = vunpack.c.h.b16 %v1415
          %v1784 = vunpack.c.l.b16 %v1416
          %v1785 = vunpack.c.h.b16 %v1416
          %v1786 = vunpack.c.l.b16 %v1417
          %v1787 = vunpack.c.h.b16 %v1417
          %v1788 = vunpack.c.l.b16 %v1418
          %v1789 = vunpack.c.h.b16 %v1418
          %v1790 = vunpack.c.l.b16 %v1419
          %v1791 = vunpack.c.h.b16 %v1419
          %v1792 = vunpack.c.l.b16 %v1420
          %v1793 = vunpack.c.h.b16 %v1420
          %v1794 = vunpack.c.l.b16 %v1421
          %v1795 = vunpack.c.h.b16 %v1421
          %v1796 = vunpack.c.l.b16 %v1422
          %v1797 = vunpack.c.h.b16 %v1422
          %v1798 = vunpack.c.l.b16 %v1423
          %v1799 = vunpack.c.h.b16 %v1423
          %v1800 = vunpack.c.l.b16 %v1424
          %v1801 = vunpack.c.h.b16 %v1424
          %v1802 = vunpack.c.l.b16 %v1425
          %v1803 = vunpack.c.h.b16 %v1425
          %v1804 = vunpack.c.l.b16 %v1426
          %v1805 = vunpack.c.h.b16 %v1426
          %v1806 = vunpack.c.l.b16 %v1427
          %v1807 = vunpack.c.h.b16 %v1427
          %v1808 = vunpack.c.l.b16 %v1428
          %v1809 = vunpack.c.h.b16 %v1428
          %v1810 = vunpack.c.l.b16 %v1429
          %v1811 = vunpack.c.h.b16 %v1429
          %v1812 = vunpack.c.l.b16 %v1430
          %v1813 = vunpack.c.h.b16 %v1430
          %v1814 = vunpack.c.l.b16 %v1431
          %v1815 = vunpack.c.h.b16 %v1431
          %v1816 = vunpack.c.l.b16 %v1432
          %v1817 = vunpack.c.h.b16 %v1432
          %v1818 = vunpack.c.l.b16 %v1433
          %v1819 = vunpack.c.h.b16 %v1433
          %v1820 = vunpack.c.l.b16 %v1434
          %v1821 = vunpack.c.h.b16 %v1434
          %v1822 = vunpack.c.l.b16 %v1435
          %v1823 = vunpack.c.h.b16 %v1435
          %v1824 = vunpack.c.l.b16 %v1436
          %v1825 = vunpack.c.h.b16 %v1436
          %v1826 = vunpack.c.l.b16 %v1437
          %v1827 = vunpack.c.h.b16 %v1437
          %v1828 = vpack.c.b16 %v1574, %v1572
          %v1829 = vpack.c.b16 %v1575, %v1573
          %v1830 = vpack.c.b16 %v1578, %v1576
          %v1831 = vpack.c.b16 %v1579, %v1577
          %v1832 = vpack.c.b16 %v1582, %v1580
          %v1833 = vpack.c.b16 %v1583, %v1581
          %v1834 = vpack.c.b16 %v1586, %v1584
          %v1835 = vpack.c.b16 %v1587, %v1585
          %v1836 = vpack.c.b16 %v1590, %v1588
          %v1837 = vpack.c.b16 %v1591, %v1589
          %v1838 = vpack.c.b16 %v1594, %v1592
          %v1839 = vpack.c.b16 %v1595, %v1593
          %v1840 = vpack.c.b16 %v1598, %v1596
          %v1841 = vpack.c.b16 %v1599, %v1597
          %v1842 = vpack.c.b16 %v1602, %v1600
          %v1843 = vpack.c.b16 %v1603, %v1601
          %v1844 = vpack.c.b16 %v1606, %v1604
          %v1845 = vpack.c.b16 %v1607, %v1605
          %v1846 = vpack.c.b16 %v1610, %v1608
          %v1847 = vpack.c.b16 %v1611, %v1609
          %v1848 = vpack.c.b16 %v1614, %v1612
          %v1849 = vpack.c.b16 %v1615, %v1613
          %v1850 = vpack.c.b16 %v1618, %v1616
          %v1851 = vpack.c.b16 %v1619, %v1617
          %v1852 = vpack.c.b16 %v1622, %v1620
          %v1853 = vpack.c.b16 %v1623, %v1621
          %v1854 = vpack.c.b16 %v1626, %v1624
          %v1855 = vpack.c.b16 %v1627, %v1625
          %v1856 = vpack.c.b16 %v1630, %v1628
          %v1857 = vpack.c.b16 %v1631, %v1629
          %v1858 = vpack.c.b16 %v1634, %v1632
          %v1859 = vpack.c.b16 %v1635, %v1633
          %v1860 = vpack.c.b16 %v1638, %v1636
          %v1861 = vpack.c.b16 %v1639, %v1637
          %v1862 = vpack.c.b16 %v1642, %v1640
          %v1863 = vpack.c.b16 %v1643, %v1641
          %v1864 = vpack.c.b16 %v1646, %v1644
          %v1865 = vpack.c.b16 %v1647, %v1645
          %v1866 = vpack.c.b16 %v1650, %v1648
          %v1867 = vpack.c.b16 %v1651, %v1649
          %v1868 = vpack.c.b16 %v1654, %v1652
          %v1869 = vpack.c.b16 %v1655, %v1653
          %v1870 = vpack.c.b16 %v1658, %v1656
          %v1871 = vpack.c.b16 %v1659, %v1657
          %v1872 = vpack.c.b16 %v1662, %v1660
          %v1873 = vpack.c.b16 %v1663, %v1661
          %v1874 = vpack.c.b16 %v1666, %v1664
          %v1875 = vpack.c.b16 %v1667, %v1665
          %v1876 = vpack.c.b16 %v1670, %v1668
          %v1877 = vpack.c.b16 %v1671, %v1669
          %v1878 = vpack.c.b16 %v1674, %v1672
          %v1879 = vpack.c.b16 %v1675, %v1673
          %v1880 = vpack.c.b16 %v1678, %v1676
          %v1881 = vpack.c.b16 %v1679, %v1677
          %v1882 = vpack.c.b16 %v1682, %v1680
          %v1883 = vpack.c.b16 %v1683, %v1681
          %v1884 = vpack.c.b16 %v1686, %v1684
          %v1885 = vpack.c.b16 %v1687, %v1685
          %v1886 = vpack.c.b16 %v1690, %v1688
          %v1887 = vpack.c.b16 %v1691, %v1689
          %v1888 = vpack.c.b16 %v1694, %v1692
          %v1889 = vpack.c.b16 %v1695, %v1693
          %v1890 = vpack.c.b16 %v1698, %v1696
          %v1891 = vpack.c.b16 %v1699, %v1697
          %v1892 = vpack.c.b16 %v1702, %v1700
          %v1893 = vpack.c.b16 %v1703, %v1701
          %v1894 = vpack.c.b16 %v1706, %v1704
          %v1895 = vpack.c.b16 %v1707, %v1705
          %v1896 = vpack.c.b16 %v1710, %v1708
          %v1897 = vpack.c.b16 %v1711, %v1709
          %v1898 = vpack.c.b16 %v1714, %v1712
          %v1899 = vpack.c.b16 %v1715, %v1713
          %v1900 = vpack.c.b16 %v1718, %v1716
          %v1901 = vpack.c.b16 %v1719, %v1717
          %v1902 = vpack.c.b16 %v1722, %v1720
          %v1903 = vpack.c.b16 %v1723, %v1721
          %v1904 = vpack.c.b16 %v1726, %v1724
          %v1905 = vpack.c.b16 %v1727, %v1725
          %v1906 = vpack.c.b16 %v1730, %v1728
          %v1907 = vpack.c.b16 %v1731, %v1729
          %v1908 = vpack.c.b16 %v1734, %v1732
          %v1909 = vpack.c.b16 %v1735, %v1733
          %v1910 = vpack.c.b16 %v1738, %v1736
          %v1911 = vpack.c.b16 %v1739, %v1737
          %v1912 = vpack.c.b16 %v1742, %v1740
          %v1913 = vpack.c.b16 %v1743, %v1741
          %v1914 = vpack.c.b16 %v1746, %v1744
          %v1915 = vpack.c.b16 %v1747, %v1745
          %v1916 = vpack.c.b16 %v1750, %v1748
          %v1917 = vpack.c.b16 %v1751, %v1749
          %v1918 = vpack.c.b16 %v1754, %v1752
          %v1919 = vpack.c.b16 %v1755, %v1753
          %v1920 = vpack.c.b16 %v1758, %v1756
          %v1921 = vpack.c.b16 %v1759, %v1757
          %v1922 = vpack.c.b16 %v1762, %v1760
          %v1923 = vpack.c.b16 %v1763, %v1761
          %v1924 = vpack.c.b16 %v1766, %v1764
          %v1925 = vpack.c.b16 %v1767, %v1765
          %v1926 = vpack.c.b16 %v1770, %v1768
          %v1927 = vpack.c.b16 %v1771, %v1769
          %v1928 = vpack.c.b16 %v1774, %v1772
          %v1929 = vpack.c.b16 %v1775, %v1773
          %v1930 = vpack.c.b16 %v1778, %v1776
          %v1931 = vpack.c.b16 %v1779, %v1777
          %v1932 = vpack.c.b16 %v1782, %v1780
          %v1933 = vpack.c.b16 %v1783, %v1781
          %v1934 = vpack.c.b16 %v1786, %v1784
          %v1935 = vpack.c.b16 %v1787, %v1785
          %v1936 = vpack.c.b16 %v1790, %v1788
          %v1937 = vpack.c.b16 %v1791, %v1789
          %v1938 = vpack.c.b16 %v1794, %v1792
          %v1939 = vpack.c.b16 %v1795, %v1793
          %v1940 = vpack.c.b16 %v1798, %v1796
          %v1941 = vpack.c.b16 %v1799, %v1797
          %v1942 = vpack.c.b16 %v1802, %v1800
          %v1943 = vpack.c.b16 %v1803, %v1801
          %v1944 = vpack.c.b16 %v1806, %v1804
          %v1945 = vpack.c.b16 %v1807, %v1805
          %v1946 = vpack.c.b16 %v1810, %v1808
          %v1947 = vpack.c.b16 %v1811, %v1809
          %v1948 = vpack.c.b16 %v1814, %v1812
          %v1949 = vpack.c.b16 %v1815, %v1813
          %v1950 = vpack.c.b16 %v1818, %v1816
          %v1951 = vpack.c.b16 %v1819, %v1817
          %v1952 = vpack.c.b16 %v1822, %v1820
          %v1953 = vpack.c.b16 %v1823, %v1821
          %v1954 = vpack.c.b16 %v1826, %v1824
          %v1955 = vpack.c.b16 %v1827, %v1825
          %2084 = vmatpush.bf16.msra.mxu0 %v1842
          %2085 = vmatpush.bf16.msra.mxu0 %v1840
          %2086 = vmatpush.bf16.msra.mxu0 %v1838
          %2087 = vmatpush.bf16.msra.mxu0 %v1836
          %2088 = vmatpush.bf16.msra.mxu0 %v1834
          %2089 = vmatpush.bf16.msra.mxu0 %v1832
          %2090 = vmatpush.bf16.msra.mxu0 %v1830
          %2091 = vmatpush.bf16.msra.mxu0 %v1828
          %2092 = vmatmul.bf16.gmra.mxu0 %v1246
          %v2093 = vpop.f32.mrf.mxu0
          %v2094 = vadd.f32 %v1440, %v2093
          %v2095 = vpop.f32.mrf.mxu0
          %v2096 = vadd.f32 %v1440, %v2095
          %2097 = vmatmul.bf16.gmra.mxu0 %v1254
          %v2098 = vpop.f32.mrf.mxu0
          %v2099 = vadd.f32 %v1440, %v2098
          %v2100 = vpop.f32.mrf.mxu0
          %v2101 = vadd.f32 %v1440, %v2100
          %2102 = vmatmul.bf16.gmra.mxu0 %v1262
          %v2103 = vpop.f32.mrf.mxu0
          %v2104 = vadd.f32 %v1440, %v2103
          %v2105 = vpop.f32.mrf.mxu0
          %v2106 = vadd.f32 %v1440, %v2105
          %2107 = vmatmul.bf16.gmra.mxu0 %v1270
          %v2108 = vpop.f32.mrf.mxu0
          %v2109 = vadd.f32 %v1440, %v2108
          %v2110 = vpop.f32.mrf.mxu0
          %v2111 = vadd.f32 %v1440, %v2110
          %2112 = vmatmul.bf16.gmra.mxu0 %v1278
          %v2113 = vpop.f32.mrf.mxu0
          %v2114 = vadd.f32 %v1440, %v2113
          %v2115 = vpop.f32.mrf.mxu0
          %v2116 = vadd.f32 %v1440, %v2115
          %2117 = vmatmul.bf16.gmra.mxu0 %v1286
          %v2118 = vpop.f32.mrf.mxu0
          %v2119 = vadd.f32 %v1440, %v2118
          %v2120 = vpop.f32.mrf.mxu0
          %v2121 = vadd.f32 %v1440, %v2120
          %2122 = vmatmul.bf16.gmra.mxu0 %v1294
          %v2123 = vpop.f32.mrf.mxu0
          %v2124 = vadd.f32 %v1440, %v2123
          %v2125 = vpop.f32.mrf.mxu0
          %v2126 = vadd.f32 %v1440, %v2125
          %2127 = vmatmul.bf16.gmra.mxu0 %v1302
          %v2128 = vpop.f32.mrf.mxu0
          %v2129 = vadd.f32 %v1440, %v2128
          %v2130 = vpop.f32.mrf.mxu0
          %v2131 = vadd.f32 %v1440, %v2130
          %2132 = vdwg.mxu0
          %2133 = vmatpush.bf16.msra.mxu0 %v1858
          %2134 = vmatpush.bf16.msra.mxu0 %v1856
          %2135 = vmatpush.bf16.msra.mxu0 %v1854
          %2136 = vmatpush.bf16.msra.mxu0 %v1852
          %2137 = vmatpush.bf16.msra.mxu0 %v1850
          %2138 = vmatpush.bf16.msra.mxu0 %v1848
          %2139 = vmatpush.bf16.msra.mxu0 %v1846
          %2140 = vmatpush.bf16.msra.mxu0 %v1844
          %2141 = vmatmul.bf16.gmra.mxu0 %v1247
          %v2142 = vpop.f32.mrf.mxu0
          %v2143 = vadd.f32 %v2094, %v2142
          %v2144 = vpop.f32.mrf.mxu0
          %v2145 = vadd.f32 %v2096, %v2144
          %2146 = vmatmul.bf16.gmra.mxu0 %v1255
          %v2147 = vpop.f32.mrf.mxu0
          %v2148 = vadd.f32 %v2099, %v2147
          %v2149 = vpop.f32.mrf.mxu0
          %v2150 = vadd.f32 %v2101, %v2149
          %2151 = vmatmul.bf16.gmra.mxu0 %v1263
          %v2152 = vpop.f32.mrf.mxu0
          %v2153 = vadd.f32 %v2104, %v2152
          %v2154 = vpop.f32.mrf.mxu0
          %v2155 = vadd.f32 %v2106, %v2154
          %2156 = vmatmul.bf16.gmra.mxu0 %v1271
          %v2157 = vpop.f32.mrf.mxu0
          %v2158 = vadd.f32 %v2109, %v2157
          %v2159 = vpop.f32.mrf.mxu0
          %v2160 = vadd.f32 %v2111, %v2159
          %2161 = vmatmul.bf16.gmra.mxu0 %v1279
          %v2162 = vpop.f32.mrf.mxu0
          %v2163 = vadd.f32 %v2114, %v2162
          %v2164 = vpop.f32.mrf.mxu0
          %v2165 = vadd.f32 %v2116, %v2164
          %2166 = vmatmul.bf16.gmra.mxu0 %v1287
          %v2167 = vpop.f32.mrf.mxu0
          %v2168 = vadd.f32 %v2119, %v2167
          %v2169 = vpop.f32.mrf.mxu0
          %v2170 = vadd.f32 %v2121, %v2169
          %2171 = vmatmul.bf16.gmra.mxu0 %v1295
          %v2172 = vpop.f32.mrf.mxu0
          %v2173 = vadd.f32 %v2124, %v2172
          %v2174 = vpop.f32.mrf.mxu0
          %v2175 = vadd.f32 %v2126, %v2174
          %2176 = vmatmul.bf16.gmra.mxu0 %v1303
          %v2177 = vpop.f32.mrf.mxu0
          %v2178 = vadd.f32 %v2129, %v2177
          %v2179 = vpop.f32.mrf.mxu0
          %v2180 = vadd.f32 %v2131, %v2179
          %2181 = vdwg.mxu0
          %2182 = vmatpush.bf16.msra.mxu0 %v1874
          %2183 = vmatpush.bf16.msra.mxu0 %v1872
          %2184 = vmatpush.bf16.msra.mxu0 %v1870
          %2185 = vmatpush.bf16.msra.mxu0 %v1868
          %2186 = vmatpush.bf16.msra.mxu0 %v1866
          %2187 = vmatpush.bf16.msra.mxu0 %v1864
          %2188 = vmatpush.bf16.msra.mxu0 %v1862
          %2189 = vmatpush.bf16.msra.mxu0 %v1860
          %2190 = vmatmul.bf16.gmra.mxu0 %v1248
          %v2191 = vpop.f32.mrf.mxu0
          %v2192 = vadd.f32 %v2143, %v2191
          %v2193 = vpop.f32.mrf.mxu0
          %v2194 = vadd.f32 %v2145, %v2193
          %2195 = vmatmul.bf16.gmra.mxu0 %v1256
          %v2196 = vpop.f32.mrf.mxu0
          %v2197 = vadd.f32 %v2148, %v2196
          %v2198 = vpop.f32.mrf.mxu0
          %v2199 = vadd.f32 %v2150, %v2198
          %2200 = vmatmul.bf16.gmra.mxu0 %v1264
          %v2201 = vpop.f32.mrf.mxu0
          %v2202 = vadd.f32 %v2153, %v2201
          %v2203 = vpop.f32.mrf.mxu0
          %v2204 = vadd.f32 %v2155, %v2203
          %2205 = vmatmul.bf16.gmra.mxu0 %v1272
          %v2206 = vpop.f32.mrf.mxu0
          %v2207 = vadd.f32 %v2158, %v2206
          %v2208 = vpop.f32.mrf.mxu0
          %v2209 = vadd.f32 %v2160, %v2208
          %2210 = vmatmul.bf16.gmra.mxu0 %v1280
          %v2211 = vpop.f32.mrf.mxu0
          %v2212 = vadd.f32 %v2163, %v2211
          %v2213 = vpop.f32.mrf.mxu0
          %v2214 = vadd.f32 %v2165, %v2213
          %2215 = vmatmul.bf16.gmra.mxu0 %v1288
          %v2216 = vpop.f32.mrf.mxu0
          %v2217 = vadd.f32 %v2168, %v2216
          %v2218 = vpop.f32.mrf.mxu0
          %v2219 = vadd.f32 %v2170, %v2218
          %2220 = vmatmul.bf16.gmra.mxu0 %v1296
          %v2221 = vpop.f32.mrf.mxu0
          %v2222 = vadd.f32 %v2173, %v2221
          %v2223 = vpop.f32.mrf.mxu0
          %v2224 = vadd.f32 %v2175, %v2223
          %2225 = vmatmul.bf16.gmra.mxu0 %v1304
          %v2226 = vpop.f32.mrf.mxu0
          %v2227 = vadd.f32 %v2178, %v2226
          %v2228 = vpop.f32.mrf.mxu0
          %v2229 = vadd.f32 %v2180, %v2228
          %2230 = vdwg.mxu0
          %2231 = vmatpush.bf16.msra.mxu0 %v1890
          %2232 = vmatpush.bf16.msra.mxu0 %v1888
          %2233 = vmatpush.bf16.msra.mxu0 %v1886
          %2234 = vmatpush.bf16.msra.mxu0 %v1884
          %2235 = vmatpush.bf16.msra.mxu0 %v1882
          %2236 = vmatpush.bf16.msra.mxu0 %v1880
          %2237 = vmatpush.bf16.msra.mxu0 %v1878
          %2238 = vmatpush.bf16.msra.mxu0 %v1876
          %2239 = vmatmul.bf16.gmra.mxu0 %v1249
          %v2240 = vpop.f32.mrf.mxu0
          %v2241 = vadd.f32 %v2192, %v2240
          %v2242 = vpop.f32.mrf.mxu0
          %v2243 = vadd.f32 %v2194, %v2242
          %2244 = vmatmul.bf16.gmra.mxu0 %v1257
          %v2245 = vpop.f32.mrf.mxu0
          %v2246 = vadd.f32 %v2197, %v2245
          %v2247 = vpop.f32.mrf.mxu0
          %v2248 = vadd.f32 %v2199, %v2247
          %2249 = vmatmul.bf16.gmra.mxu0 %v1265
          %v2250 = vpop.f32.mrf.mxu0
          %v2251 = vadd.f32 %v2202, %v2250
          %v2252 = vpop.f32.mrf.mxu0
          %v2253 = vadd.f32 %v2204, %v2252
          %2254 = vmatmul.bf16.gmra.mxu0 %v1273
          %v2255 = vpop.f32.mrf.mxu0
          %v2256 = vadd.f32 %v2207, %v2255
          %v2257 = vpop.f32.mrf.mxu0
          %v2258 = vadd.f32 %v2209, %v2257
          %2259 = vmatmul.bf16.gmra.mxu0 %v1281
          %v2260 = vpop.f32.mrf.mxu0
          %v2261 = vadd.f32 %v2212, %v2260
          %v2262 = vpop.f32.mrf.mxu0
          %v2263 = vadd.f32 %v2214, %v2262
          %2264 = vmatmul.bf16.gmra.mxu0 %v1289
          %v2265 = vpop.f32.mrf.mxu0
          %v2266 = vadd.f32 %v2217, %v2265
          %v2267 = vpop.f32.mrf.mxu0
          %v2268 = vadd.f32 %v2219, %v2267
          %2269 = vmatmul.bf16.gmra.mxu0 %v1297
          %v2270 = vpop.f32.mrf.mxu0
          %v2271 = vadd.f32 %v2222, %v2270
          %v2272 = vpop.f32.mrf.mxu0
          %v2273 = vadd.f32 %v2224, %v2272
          %2274 = vmatmul.bf16.gmra.mxu0 %v1305
          %v2275 = vpop.f32.mrf.mxu0
          %v2276 = vadd.f32 %v2227, %v2275
          %v2277 = vpop.f32.mrf.mxu0
          %v2278 = vadd.f32 %v2229, %v2277
          %2279 = vdwg.mxu0
          %2280 = vmatpush.bf16.msra.mxu0 %v1906
          %2281 = vmatpush.bf16.msra.mxu0 %v1904
          %2282 = vmatpush.bf16.msra.mxu0 %v1902
          %2283 = vmatpush.bf16.msra.mxu0 %v1900
          %2284 = vmatpush.bf16.msra.mxu0 %v1898
          %2285 = vmatpush.bf16.msra.mxu0 %v1896
          %2286 = vmatpush.bf16.msra.mxu0 %v1894
          %2287 = vmatpush.bf16.msra.mxu0 %v1892
          %2288 = vmatmul.bf16.gmra.mxu0 %v1250
          %v2289 = vpop.f32.mrf.mxu0
          %v2290 = vadd.f32 %v2241, %v2289
          %v2291 = vpop.f32.mrf.mxu0
          %v2292 = vadd.f32 %v2243, %v2291
          %2293 = vmatmul.bf16.gmra.mxu0 %v1258
          %v2294 = vpop.f32.mrf.mxu0
          %v2295 = vadd.f32 %v2246, %v2294
          %v2296 = vpop.f32.mrf.mxu0
          %v2297 = vadd.f32 %v2248, %v2296
          %2298 = vmatmul.bf16.gmra.mxu0 %v1266
          %v2299 = vpop.f32.mrf.mxu0
          %v2300 = vadd.f32 %v2251, %v2299
          %v2301 = vpop.f32.mrf.mxu0
          %v2302 = vadd.f32 %v2253, %v2301
          %2303 = vmatmul.bf16.gmra.mxu0 %v1274
          %v2304 = vpop.f32.mrf.mxu0
          %v2305 = vadd.f32 %v2256, %v2304
          %v2306 = vpop.f32.mrf.mxu0
          %v2307 = vadd.f32 %v2258, %v2306
          %2308 = vmatmul.bf16.gmra.mxu0 %v1282
          %v2309 = vpop.f32.mrf.mxu0
          %v2310 = vadd.f32 %v2261, %v2309
          %v2311 = vpop.f32.mrf.mxu0
          %v2312 = vadd.f32 %v2263, %v2311
          %2313 = vmatmul.bf16.gmra.mxu0 %v1290
          %v2314 = vpop.f32.mrf.mxu0
          %v2315 = vadd.f32 %v2266, %v2314
          %v2316 = vpop.f32.mrf.mxu0
          %v2317 = vadd.f32 %v2268, %v2316
          %2318 = vmatmul.bf16.gmra.mxu0 %v1298
          %v2319 = vpop.f32.mrf.mxu0
          %v2320 = vadd.f32 %v2271, %v2319
          %v2321 = vpop.f32.mrf.mxu0
          %v2322 = vadd.f32 %v2273, %v2321
          %2323 = vmatmul.bf16.gmra.mxu0 %v1306
          %v2324 = vpop.f32.mrf.mxu0
          %v2325 = vadd.f32 %v2276, %v2324
          %v2326 = vpop.f32.mrf.mxu0
          %v2327 = vadd.f32 %v2278, %v2326
          %2328 = vdwg.mxu0
          %2329 = vmatpush.bf16.msra.mxu0 %v1922
          %2330 = vmatpush.bf16.msra.mxu0 %v1920
          %2331 = vmatpush.bf16.msra.mxu0 %v1918
          %2332 = vmatpush.bf16.msra.mxu0 %v1916
          %2333 = vmatpush.bf16.msra.mxu0 %v1914
          %2334 = vmatpush.bf16.msra.mxu0 %v1912
          %2335 = vmatpush.bf16.msra.mxu0 %v1910
          %2336 = vmatpush.bf16.msra.mxu0 %v1908
          %2337 = vmatmul.bf16.gmra.mxu0 %v1251
          %v2338 = vpop.f32.mrf.mxu0
          %v2339 = vadd.f32 %v2290, %v2338
          %v2340 = vpop.f32.mrf.mxu0
          %v2341 = vadd.f32 %v2292, %v2340
          %2342 = vmatmul.bf16.gmra.mxu0 %v1259
          %v2343 = vpop.f32.mrf.mxu0
          %v2344 = vadd.f32 %v2295, %v2343
          %v2345 = vpop.f32.mrf.mxu0
          %v2346 = vadd.f32 %v2297, %v2345
          %2347 = vmatmul.bf16.gmra.mxu0 %v1267
          %v2348 = vpop.f32.mrf.mxu0
          %v2349 = vadd.f32 %v2300, %v2348
          %v2350 = vpop.f32.mrf.mxu0
          %v2351 = vadd.f32 %v2302, %v2350
          %2352 = vmatmul.bf16.gmra.mxu0 %v1275
          %v2353 = vpop.f32.mrf.mxu0
          %v2354 = vadd.f32 %v2305, %v2353
          %v2355 = vpop.f32.mrf.mxu0
          %v2356 = vadd.f32 %v2307, %v2355
          %2357 = vmatmul.bf16.gmra.mxu0 %v1283
          %v2358 = vpop.f32.mrf.mxu0
          %v2359 = vadd.f32 %v2310, %v2358
          %v2360 = vpop.f32.mrf.mxu0
          %v2361 = vadd.f32 %v2312, %v2360
          %2362 = vmatmul.bf16.gmra.mxu0 %v1291
          %v2363 = vpop.f32.mrf.mxu0
          %v2364 = vadd.f32 %v2315, %v2363
          %v2365 = vpop.f32.mrf.mxu0
          %v2366 = vadd.f32 %v2317, %v2365
          %2367 = vmatmul.bf16.gmra.mxu0 %v1299
          %v2368 = vpop.f32.mrf.mxu0
          %v2369 = vadd.f32 %v2320, %v2368
          %v2370 = vpop.f32.mrf.mxu0
          %v2371 = vadd.f32 %v2322, %v2370
          %2372 = vmatmul.bf16.gmra.mxu0 %v1307
          %v2373 = vpop.f32.mrf.mxu0
          %v2374 = vadd.f32 %v2325, %v2373
          %v2375 = vpop.f32.mrf.mxu0
          %v2376 = vadd.f32 %v2327, %v2375
          %2377 = vdwg.mxu0
          %2378 = vmatpush.bf16.msra.mxu0 %v1938
          %2379 = vmatpush.bf16.msra.mxu0 %v1936
          %2380 = vmatpush.bf16.msra.mxu0 %v1934
          %2381 = vmatpush.bf16.msra.mxu0 %v1932
          %2382 = vmatpush.bf16.msra.mxu0 %v1930
          %2383 = vmatpush.bf16.msra.mxu0 %v1928
          %2384 = vmatpush.bf16.msra.mxu0 %v1926
          %2385 = vmatpush.bf16.msra.mxu0 %v1924
          %2386 = vmatmul.bf16.gmra.mxu0 %v1252
          %v2387 = vpop.f32.mrf.mxu0
          %v2388 = vadd.f32 %v2339, %v2387
          %v2389 = vpop.f32.mrf.mxu0
          %v2390 = vadd.f32 %v2341, %v2389
          %2391 = vmatmul.bf16.gmra.mxu0 %v1260
          %v2392 = vpop.f32.mrf.mxu0
          %v2393 = vadd.f32 %v2344, %v2392
          %v2394 = vpop.f32.mrf.mxu0
          %v2395 = vadd.f32 %v2346, %v2394
          %2396 = vmatmul.bf16.gmra.mxu0 %v1268
          %v2397 = vpop.f32.mrf.mxu0
          %v2398 = vadd.f32 %v2349, %v2397
          %v2399 = vpop.f32.mrf.mxu0
          %v2400 = vadd.f32 %v2351, %v2399
          %2401 = vmatmul.bf16.gmra.mxu0 %v1276
          %v2402 = vpop.f32.mrf.mxu0
          %v2403 = vadd.f32 %v2354, %v2402
          %v2404 = vpop.f32.mrf.mxu0
          %v2405 = vadd.f32 %v2356, %v2404
          %2406 = vmatmul.bf16.gmra.mxu0 %v1284
          %v2407 = vpop.f32.mrf.mxu0
          %v2408 = vadd.f32 %v2359, %v2407
          %v2409 = vpop.f32.mrf.mxu0
          %v2410 = vadd.f32 %v2361, %v2409
          %2411 = vmatmul.bf16.gmra.mxu0 %v1292
          %v2412 = vpop.f32.mrf.mxu0
          %v2413 = vadd.f32 %v2364, %v2412
          %v2414 = vpop.f32.mrf.mxu0
          %v2415 = vadd.f32 %v2366, %v2414
          %2416 = vmatmul.bf16.gmra.mxu0 %v1300
          %v2417 = vpop.f32.mrf.mxu0
          %v2418 = vadd.f32 %v2369, %v2417
          %v2419 = vpop.f32.mrf.mxu0
          %v2420 = vadd.f32 %v2371, %v2419
          %2421 = vmatmul.bf16.gmra.mxu0 %v1308
          %v2422 = vpop.f32.mrf.mxu0
          %v2423 = vadd.f32 %v2374, %v2422
          %v2424 = vpop.f32.mrf.mxu0
          %v2425 = vadd.f32 %v2376, %v2424
          %2426 = vdwg.mxu0
          %2427 = vmatpush.bf16.msra.mxu0 %v1954
          %2428 = vmatpush.bf16.msra.mxu0 %v1952
          %2429 = vmatpush.bf16.msra.mxu0 %v1950
          %2430 = vmatpush.bf16.msra.mxu0 %v1948
          %2431 = vmatpush.bf16.msra.mxu0 %v1946
          %2432 = vmatpush.bf16.msra.mxu0 %v1944
          %2433 = vmatpush.bf16.msra.mxu0 %v1942
          %2434 = vmatpush.bf16.msra.mxu0 %v1940
          %2435 = vmatmul.bf16.gmra.mxu0 %v1253
          %v2436 = vpop.f32.mrf.mxu0
          %v2437 = vadd.f32 %v2388, %v2436
          %v2438 = vpop.f32.mrf.mxu0
          %v2439 = vadd.f32 %v2390, %v2438
          %2440 = vmatmul.bf16.gmra.mxu0 %v1261
          %v2441 = vpop.f32.mrf.mxu0
          %v2442 = vadd.f32 %v2393, %v2441
          %v2443 = vpop.f32.mrf.mxu0
          %v2444 = vadd.f32 %v2395, %v2443
          %2445 = vmatmul.bf16.gmra.mxu0 %v1269
          %v2446 = vpop.f32.mrf.mxu0
          %v2447 = vadd.f32 %v2398, %v2446
          %v2448 = vpop.f32.mrf.mxu0
          %v2449 = vadd.f32 %v2400, %v2448
          %2450 = vmatmul.bf16.gmra.mxu0 %v1277
          %v2451 = vpop.f32.mrf.mxu0
          %v2452 = vadd.f32 %v2403, %v2451
          %v2453 = vpop.f32.mrf.mxu0
          %v2454 = vadd.f32 %v2405, %v2453
          %2455 = vmatmul.bf16.gmra.mxu0 %v1285
          %v2456 = vpop.f32.mrf.mxu0
          %v2457 = vadd.f32 %v2408, %v2456
          %v2458 = vpop.f32.mrf.mxu0
          %v2459 = vadd.f32 %v2410, %v2458
          %2460 = vmatmul.bf16.gmra.mxu0 %v1293
          %v2461 = vpop.f32.mrf.mxu0
          %v2462 = vadd.f32 %v2413, %v2461
          %v2463 = vpop.f32.mrf.mxu0
          %v2464 = vadd.f32 %v2415, %v2463
          %2465 = vmatmul.bf16.gmra.mxu0 %v1301
          %v2466 = vpop.f32.mrf.mxu0
          %v2467 = vadd.f32 %v2418, %v2466
          %v2468 = vpop.f32.mrf.mxu0
          %v2469 = vadd.f32 %v2420, %v2468
          %2470 = vmatmul.bf16.gmra.mxu0 %v1309
          %v2471 = vpop.f32.mrf.mxu0
          %v2472 = vadd.f32 %v2423, %v2471
          %v2473 = vpop.f32.mrf.mxu0
          %v2474 = vadd.f32 %v2425, %v2473
          %2475 = vdwg.mxu0
          %2476 = vmatpush.bf16.msra.mxu0 %v1843
          %2477 = vmatpush.bf16.msra.mxu0 %v1841
          %2478 = vmatpush.bf16.msra.mxu0 %v1839
          %2479 = vmatpush.bf16.msra.mxu0 %v1837
          %2480 = vmatpush.bf16.msra.mxu0 %v1835
          %2481 = vmatpush.bf16.msra.mxu0 %v1833
          %2482 = vmatpush.bf16.msra.mxu0 %v1831
          %2483 = vmatpush.bf16.msra.mxu0 %v1829
          %2484 = vmatmul.bf16.gmra.mxu0 %v1246
          %v2485 = vpop.f32.mrf.mxu0
          %v2486 = vadd.f32 %v1441, %v2485
          %v2487 = vpop.f32.mrf.mxu0
          %v2488 = vadd.f32 %v1441, %v2487
          %2489 = vmatmul.bf16.gmra.mxu0 %v1254
          %v2490 = vpop.f32.mrf.mxu0
          %v2491 = vadd.f32 %v1441, %v2490
          %v2492 = vpop.f32.mrf.mxu0
          %v2493 = vadd.f32 %v1441, %v2492
          %2494 = vmatmul.bf16.gmra.mxu0 %v1262
          %v2495 = vpop.f32.mrf.mxu0
          %v2496 = vadd.f32 %v1441, %v2495
          %v2497 = vpop.f32.mrf.mxu0
          %v2498 = vadd.f32 %v1441, %v2497
          %2499 = vmatmul.bf16.gmra.mxu0 %v1270
          %v2500 = vpop.f32.mrf.mxu0
          %v2501 = vadd.f32 %v1441, %v2500
          %v2502 = vpop.f32.mrf.mxu0
          %v2503 = vadd.f32 %v1441, %v2502
          %2504 = vmatmul.bf16.gmra.mxu0 %v1278
          %v2505 = vpop.f32.mrf.mxu0
          %v2506 = vadd.f32 %v1441, %v2505
          %v2507 = vpop.f32.mrf.mxu0
          %v2508 = vadd.f32 %v1441, %v2507
          %2509 = vmatmul.bf16.gmra.mxu0 %v1286
          %v2510 = vpop.f32.mrf.mxu0
          %v2511 = vadd.f32 %v1441, %v2510
          %v2512 = vpop.f32.mrf.mxu0
          %v2513 = vadd.f32 %v1441, %v2512
          %2514 = vmatmul.bf16.gmra.mxu0 %v1294
          %v2515 = vpop.f32.mrf.mxu0
          %v2516 = vadd.f32 %v1441, %v2515
          %v2517 = vpop.f32.mrf.mxu0
          %v2518 = vadd.f32 %v1441, %v2517
          %2519 = vmatmul.bf16.gmra.mxu0 %v1302
          %v2520 = vpop.f32.mrf.mxu0
          %v2521 = vadd.f32 %v1441, %v2520
          %v2522 = vpop.f32.mrf.mxu0
          %v2523 = vadd.f32 %v1441, %v2522
          %2524 = vdwg.mxu0
          %2525 = vmatpush.bf16.msra.mxu0 %v1859
          %2526 = vmatpush.bf16.msra.mxu0 %v1857
          %2527 = vmatpush.bf16.msra.mxu0 %v1855
          %2528 = vmatpush.bf16.msra.mxu0 %v1853
          %2529 = vmatpush.bf16.msra.mxu0 %v1851
          %2530 = vmatpush.bf16.msra.mxu0 %v1849
          %2531 = vmatpush.bf16.msra.mxu0 %v1847
          %2532 = vmatpush.bf16.msra.mxu0 %v1845
          %2533 = vmatmul.bf16.gmra.mxu0 %v1247
          %v2534 = vpop.f32.mrf.mxu0
          %v2535 = vadd.f32 %v2486, %v2534
          %v2536 = vpop.f32.mrf.mxu0
          %v2537 = vadd.f32 %v2488, %v2536
          %2538 = vmatmul.bf16.gmra.mxu0 %v1255
          %v2539 = vpop.f32.mrf.mxu0
          %v2540 = vadd.f32 %v2491, %v2539
          %v2541 = vpop.f32.mrf.mxu0
          %v2542 = vadd.f32 %v2493, %v2541
          %2543 = vmatmul.bf16.gmra.mxu0 %v1263
          %v2544 = vpop.f32.mrf.mxu0
          %v2545 = vadd.f32 %v2496, %v2544
          %v2546 = vpop.f32.mrf.mxu0
          %v2547 = vadd.f32 %v2498, %v2546
          %2548 = vmatmul.bf16.gmra.mxu0 %v1271
          %v2549 = vpop.f32.mrf.mxu0
          %v2550 = vadd.f32 %v2501, %v2549
          %v2551 = vpop.f32.mrf.mxu0
          %v2552 = vadd.f32 %v2503, %v2551
          %2553 = vmatmul.bf16.gmra.mxu0 %v1279
          %v2554 = vpop.f32.mrf.mxu0
          %v2555 = vadd.f32 %v2506, %v2554
          %v2556 = vpop.f32.mrf.mxu0
          %v2557 = vadd.f32 %v2508, %v2556
          %2558 = vmatmul.bf16.gmra.mxu0 %v1287
          %v2559 = vpop.f32.mrf.mxu0
          %v2560 = vadd.f32 %v2511, %v2559
          %v2561 = vpop.f32.mrf.mxu0
          %v2562 = vadd.f32 %v2513, %v2561
          %2563 = vmatmul.bf16.gmra.mxu0 %v1295
          %v2564 = vpop.f32.mrf.mxu0
          %v2565 = vadd.f32 %v2516, %v2564
          %v2566 = vpop.f32.mrf.mxu0
          %v2567 = vadd.f32 %v2518, %v2566
          %2568 = vmatmul.bf16.gmra.mxu0 %v1303
          %v2569 = vpop.f32.mrf.mxu0
          %v2570 = vadd.f32 %v2521, %v2569
          %v2571 = vpop.f32.mrf.mxu0
          %v2572 = vadd.f32 %v2523, %v2571
          %2573 = vdwg.mxu0
          %2574 = vmatpush.bf16.msra.mxu0 %v1875
          %2575 = vmatpush.bf16.msra.mxu0 %v1873
          %2576 = vmatpush.bf16.msra.mxu0 %v1871
          %2577 = vmatpush.bf16.msra.mxu0 %v1869
          %2578 = vmatpush.bf16.msra.mxu0 %v1867
          %2579 = vmatpush.bf16.msra.mxu0 %v1865
          %2580 = vmatpush.bf16.msra.mxu0 %v1863
          %2581 = vmatpush.bf16.msra.mxu0 %v1861
          %2582 = vmatmul.bf16.gmra.mxu0 %v1248
          %v2583 = vpop.f32.mrf.mxu0
          %v2584 = vadd.f32 %v2535, %v2583
          %v2585 = vpop.f32.mrf.mxu0
          %v2586 = vadd.f32 %v2537, %v2585
          %2587 = vmatmul.bf16.gmra.mxu0 %v1256
          %v2588 = vpop.f32.mrf.mxu0
          %v2589 = vadd.f32 %v2540, %v2588
          %v2590 = vpop.f32.mrf.mxu0
          %v2591 = vadd.f32 %v2542, %v2590
          %2592 = vmatmul.bf16.gmra.mxu0 %v1264
          %v2593 = vpop.f32.mrf.mxu0
          %v2594 = vadd.f32 %v2545, %v2593
          %v2595 = vpop.f32.mrf.mxu0
          %v2596 = vadd.f32 %v2547, %v2595
          %2597 = vmatmul.bf16.gmra.mxu0 %v1272
          %v2598 = vpop.f32.mrf.mxu0
          %v2599 = vadd.f32 %v2550, %v2598
          %v2600 = vpop.f32.mrf.mxu0
          %v2601 = vadd.f32 %v2552, %v2600
          %2602 = vmatmul.bf16.gmra.mxu0 %v1280
          %v2603 = vpop.f32.mrf.mxu0
          %v2604 = vadd.f32 %v2555, %v2603
          %v2605 = vpop.f32.mrf.mxu0
          %v2606 = vadd.f32 %v2557, %v2605
          %2607 = vmatmul.bf16.gmra.mxu0 %v1288
          %v2608 = vpop.f32.mrf.mxu0
          %v2609 = vadd.f32 %v2560, %v2608
          %v2610 = vpop.f32.mrf.mxu0
          %v2611 = vadd.f32 %v2562, %v2610
          %2612 = vmatmul.bf16.gmra.mxu0 %v1296
          %v2613 = vpop.f32.mrf.mxu0
          %v2614 = vadd.f32 %v2565, %v2613
          %v2615 = vpop.f32.mrf.mxu0
          %v2616 = vadd.f32 %v2567, %v2615
          %2617 = vmatmul.bf16.gmra.mxu0 %v1304
          %v2618 = vpop.f32.mrf.mxu0
          %v2619 = vadd.f32 %v2570, %v2618
          %v2620 = vpop.f32.mrf.mxu0
          %v2621 = vadd.f32 %v2572, %v2620
          %2622 = vdwg.mxu0
          %2623 = vmatpush.bf16.msra.mxu0 %v1891
          %2624 = vmatpush.bf16.msra.mxu0 %v1889
          %2625 = vmatpush.bf16.msra.mxu0 %v1887
          %2626 = vmatpush.bf16.msra.mxu0 %v1885
          %2627 = vmatpush.bf16.msra.mxu0 %v1883
          %2628 = vmatpush.bf16.msra.mxu0 %v1881
          %2629 = vmatpush.bf16.msra.mxu0 %v1879
          %2630 = vmatpush.bf16.msra.mxu0 %v1877
          %2631 = vmatmul.bf16.gmra.mxu0 %v1249
          %v2632 = vpop.f32.mrf.mxu0
          %v2633 = vadd.f32 %v2584, %v2632
          %v2634 = vpop.f32.mrf.mxu0
          %v2635 = vadd.f32 %v2586, %v2634
          %2636 = vmatmul.bf16.gmra.mxu0 %v1257
          %v2637 = vpop.f32.mrf.mxu0
          %v2638 = vadd.f32 %v2589, %v2637
          %v2639 = vpop.f32.mrf.mxu0
          %v2640 = vadd.f32 %v2591, %v2639
          %2641 = vmatmul.bf16.gmra.mxu0 %v1265
          %v2642 = vpop.f32.mrf.mxu0
          %v2643 = vadd.f32 %v2594, %v2642
          %v2644 = vpop.f32.mrf.mxu0
          %v2645 = vadd.f32 %v2596, %v2644
          %2646 = vmatmul.bf16.gmra.mxu0 %v1273
          %v2647 = vpop.f32.mrf.mxu0
          %v2648 = vadd.f32 %v2599, %v2647
          %v2649 = vpop.f32.mrf.mxu0
          %v2650 = vadd.f32 %v2601, %v2649
          %2651 = vmatmul.bf16.gmra.mxu0 %v1281
          %v2652 = vpop.f32.mrf.mxu0
          %v2653 = vadd.f32 %v2604, %v2652
          %v2654 = vpop.f32.mrf.mxu0
          %v2655 = vadd.f32 %v2606, %v2654
          %2656 = vmatmul.bf16.gmra.mxu0 %v1289
          %v2657 = vpop.f32.mrf.mxu0
          %v2658 = vadd.f32 %v2609, %v2657
          %v2659 = vpop.f32.mrf.mxu0
          %v2660 = vadd.f32 %v2611, %v2659
          %2661 = vmatmul.bf16.gmra.mxu0 %v1297
          %v2662 = vpop.f32.mrf.mxu0
          %v2663 = vadd.f32 %v2614, %v2662
          %v2664 = vpop.f32.mrf.mxu0
          %v2665 = vadd.f32 %v2616, %v2664
          %2666 = vmatmul.bf16.gmra.mxu0 %v1305
          %v2667 = vpop.f32.mrf.mxu0
          %v2668 = vadd.f32 %v2619, %v2667
          %v2669 = vpop.f32.mrf.mxu0
          %v2670 = vadd.f32 %v2621, %v2669
          %2671 = vdwg.mxu0
          %2672 = vmatpush.bf16.msra.mxu0 %v1907
          %2673 = vmatpush.bf16.msra.mxu0 %v1905
          %2674 = vmatpush.bf16.msra.mxu0 %v1903
          %2675 = vmatpush.bf16.msra.mxu0 %v1901
          %2676 = vmatpush.bf16.msra.mxu0 %v1899
          %2677 = vmatpush.bf16.msra.mxu0 %v1897
          %2678 = vmatpush.bf16.msra.mxu0 %v1895
          %2679 = vmatpush.bf16.msra.mxu0 %v1893
          %2680 = vmatmul.bf16.gmra.mxu0 %v1250
          %v2681 = vpop.f32.mrf.mxu0
          %v2682 = vadd.f32 %v2633, %v2681
          %v2683 = vpop.f32.mrf.mxu0
          %v2684 = vadd.f32 %v2635, %v2683
          %2685 = vmatmul.bf16.gmra.mxu0 %v1258
          %v2686 = vpop.f32.mrf.mxu0
          %v2687 = vadd.f32 %v2638, %v2686
          %v2688 = vpop.f32.mrf.mxu0
          %v2689 = vadd.f32 %v2640, %v2688
          %2690 = vmatmul.bf16.gmra.mxu0 %v1266
          %v2691 = vpop.f32.mrf.mxu0
          %v2692 = vadd.f32 %v2643, %v2691
          %v2693 = vpop.f32.mrf.mxu0
          %v2694 = vadd.f32 %v2645, %v2693
          %2695 = vmatmul.bf16.gmra.mxu0 %v1274
          %v2696 = vpop.f32.mrf.mxu0
          %v2697 = vadd.f32 %v2648, %v2696
          %v2698 = vpop.f32.mrf.mxu0
          %v2699 = vadd.f32 %v2650, %v2698
          %2700 = vmatmul.bf16.gmra.mxu0 %v1282
          %v2701 = vpop.f32.mrf.mxu0
          %v2702 = vadd.f32 %v2653, %v2701
          %v2703 = vpop.f32.mrf.mxu0
          %v2704 = vadd.f32 %v2655, %v2703
          %2705 = vmatmul.bf16.gmra.mxu0 %v1290
          %v2706 = vpop.f32.mrf.mxu0
          %v2707 = vadd.f32 %v2658, %v2706
          %v2708 = vpop.f32.mrf.mxu0
          %v2709 = vadd.f32 %v2660, %v2708
          %2710 = vmatmul.bf16.gmra.mxu0 %v1298
          %v2711 = vpop.f32.mrf.mxu0
          %v2712 = vadd.f32 %v2663, %v2711
          %v2713 = vpop.f32.mrf.mxu0
          %v2714 = vadd.f32 %v2665, %v2713
          %2715 = vmatmul.bf16.gmra.mxu0 %v1306
          %v2716 = vpop.f32.mrf.mxu0
          %v2717 = vadd.f32 %v2668, %v2716
          %v2718 = vpop.f32.mrf.mxu0
          %v2719 = vadd.f32 %v2670, %v2718
          %2720 = vdwg.mxu0
          %2721 = vmatpush.bf16.msra.mxu0 %v1923
          %2722 = vmatpush.bf16.msra.mxu0 %v1921
          %2723 = vmatpush.bf16.msra.mxu0 %v1919
          %2724 = vmatpush.bf16.msra.mxu0 %v1917
          %2725 = vmatpush.bf16.msra.mxu0 %v1915
          %2726 = vmatpush.bf16.msra.mxu0 %v1913
          %2727 = vmatpush.bf16.msra.mxu0 %v1911
          %2728 = vmatpush.bf16.msra.mxu0 %v1909
          %2729 = vmatmul.bf16.gmra.mxu0 %v1251
          %v2730 = vpop.f32.mrf.mxu0
          %v2731 = vadd.f32 %v2682, %v2730
          %v2732 = vpop.f32.mrf.mxu0
          %v2733 = vadd.f32 %v2684, %v2732
          %2734 = vmatmul.bf16.gmra.mxu0 %v1259
          %v2735 = vpop.f32.mrf.mxu0
          %v2736 = vadd.f32 %v2687, %v2735
          %v2737 = vpop.f32.mrf.mxu0
          %v2738 = vadd.f32 %v2689, %v2737
          %2739 = vmatmul.bf16.gmra.mxu0 %v1267
          %v2740 = vpop.f32.mrf.mxu0
          %v2741 = vadd.f32 %v2692, %v2740
          %v2742 = vpop.f32.mrf.mxu0
          %v2743 = vadd.f32 %v2694, %v2742
          %2744 = vmatmul.bf16.gmra.mxu0 %v1275
          %v2745 = vpop.f32.mrf.mxu0
          %v2746 = vadd.f32 %v2697, %v2745
          %v2747 = vpop.f32.mrf.mxu0
          %v2748 = vadd.f32 %v2699, %v2747
          %2749 = vmatmul.bf16.gmra.mxu0 %v1283
          %v2750 = vpop.f32.mrf.mxu0
          %v2751 = vadd.f32 %v2702, %v2750
          %v2752 = vpop.f32.mrf.mxu0
          %v2753 = vadd.f32 %v2704, %v2752
          %2754 = vmatmul.bf16.gmra.mxu0 %v1291
          %v2755 = vpop.f32.mrf.mxu0
          %v2756 = vadd.f32 %v2707, %v2755
          %v2757 = vpop.f32.mrf.mxu0
          %v2758 = vadd.f32 %v2709, %v2757
          %2759 = vmatmul.bf16.gmra.mxu0 %v1299
          %v2760 = vpop.f32.mrf.mxu0
          %v2761 = vadd.f32 %v2712, %v2760
          %v2762 = vpop.f32.mrf.mxu0
          %v2763 = vadd.f32 %v2714, %v2762
          %2764 = vmatmul.bf16.gmra.mxu0 %v1307
          %v2765 = vpop.f32.mrf.mxu0
          %v2766 = vadd.f32 %v2717, %v2765
          %v2767 = vpop.f32.mrf.mxu0
          %v2768 = vadd.f32 %v2719, %v2767
          %2769 = vdwg.mxu0
          %2770 = vmatpush.bf16.msra.mxu0 %v1939
          %2771 = vmatpush.bf16.msra.mxu0 %v1937
          %2772 = vmatpush.bf16.msra.mxu0 %v1935
          %2773 = vmatpush.bf16.msra.mxu0 %v1933
          %2774 = vmatpush.bf16.msra.mxu0 %v1931
          %2775 = vmatpush.bf16.msra.mxu0 %v1929
          %2776 = vmatpush.bf16.msra.mxu0 %v1927
          %2777 = vmatpush.bf16.msra.mxu0 %v1925
          %2778 = vmatmul.bf16.gmra.mxu0 %v1252
          %v2779 = vpop.f32.mrf.mxu0
          %v2780 = vadd.f32 %v2731, %v2779
          %v2781 = vpop.f32.mrf.mxu0
          %v2782 = vadd.f32 %v2733, %v2781
          %2783 = vmatmul.bf16.gmra.mxu0 %v1260
          %v2784 = vpop.f32.mrf.mxu0
          %v2785 = vadd.f32 %v2736, %v2784
          %v2786 = vpop.f32.mrf.mxu0
          %v2787 = vadd.f32 %v2738, %v2786
          %2788 = vmatmul.bf16.gmra.mxu0 %v1268
          %v2789 = vpop.f32.mrf.mxu0
          %v2790 = vadd.f32 %v2741, %v2789
          %v2791 = vpop.f32.mrf.mxu0
          %v2792 = vadd.f32 %v2743, %v2791
          %2793 = vmatmul.bf16.gmra.mxu0 %v1276
          %v2794 = vpop.f32.mrf.mxu0
          %v2795 = vadd.f32 %v2746, %v2794
          %v2796 = vpop.f32.mrf.mxu0
          %v2797 = vadd.f32 %v2748, %v2796
          %2798 = vmatmul.bf16.gmra.mxu0 %v1284
          %v2799 = vpop.f32.mrf.mxu0
          %v2800 = vadd.f32 %v2751, %v2799
          %v2801 = vpop.f32.mrf.mxu0
          %v2802 = vadd.f32 %v2753, %v2801
          %2803 = vmatmul.bf16.gmra.mxu0 %v1292
          %v2804 = vpop.f32.mrf.mxu0
          %v2805 = vadd.f32 %v2756, %v2804
          %v2806 = vpop.f32.mrf.mxu0
          %v2807 = vadd.f32 %v2758, %v2806
          %2808 = vmatmul.bf16.gmra.mxu0 %v1300
          %v2809 = vpop.f32.mrf.mxu0
          %v2810 = vadd.f32 %v2761, %v2809
          %v2811 = vpop.f32.mrf.mxu0
          %v2812 = vadd.f32 %v2763, %v2811
          %2813 = vmatmul.bf16.gmra.mxu0 %v1308
          %v2814 = vpop.f32.mrf.mxu0
          %v2815 = vadd.f32 %v2766, %v2814
          %v2816 = vpop.f32.mrf.mxu0
          %v2817 = vadd.f32 %v2768, %v2816
          %2818 = vdwg.mxu0
          %2819 = vmatpush.bf16.msra.mxu0 %v1955
          %2820 = vmatpush.bf16.msra.mxu0 %v1953
          %2821 = vmatpush.bf16.msra.mxu0 %v1951
          %2822 = vmatpush.bf16.msra.mxu0 %v1949
          %2823 = vmatpush.bf16.msra.mxu0 %v1947
          %2824 = vmatpush.bf16.msra.mxu0 %v1945
          %2825 = vmatpush.bf16.msra.mxu0 %v1943
          %2826 = vmatpush.bf16.msra.mxu0 %v1941
          %2827 = vmatmul.bf16.gmra.mxu0 %v1253
          %v2828 = vpop.f32.mrf.mxu0
          %v2829 = vadd.f32 %v2780, %v2828
          %v2830 = vpop.f32.mrf.mxu0
          %v2831 = vadd.f32 %v2782, %v2830
          %2832 = vmatmul.bf16.gmra.mxu0 %v1261
          %v2833 = vpop.f32.mrf.mxu0
          %v2834 = vadd.f32 %v2785, %v2833
          %v2835 = vpop.f32.mrf.mxu0
          %v2836 = vadd.f32 %v2787, %v2835
          %2837 = vmatmul.bf16.gmra.mxu0 %v1269
          %v2838 = vpop.f32.mrf.mxu0
          %v2839 = vadd.f32 %v2790, %v2838
          %v2840 = vpop.f32.mrf.mxu0
          %v2841 = vadd.f32 %v2792, %v2840
          %2842 = vmatmul.bf16.gmra.mxu0 %v1277
          %v2843 = vpop.f32.mrf.mxu0
          %v2844 = vadd.f32 %v2795, %v2843
          %v2845 = vpop.f32.mrf.mxu0
          %v2846 = vadd.f32 %v2797, %v2845
          %2847 = vmatmul.bf16.gmra.mxu0 %v1285
          %v2848 = vpop.f32.mrf.mxu0
          %v2849 = vadd.f32 %v2800, %v2848
          %v2850 = vpop.f32.mrf.mxu0
          %v2851 = vadd.f32 %v2802, %v2850
          %2852 = vmatmul.bf16.gmra.mxu0 %v1293
          %v2853 = vpop.f32.mrf.mxu0
          %v2854 = vadd.f32 %v2805, %v2853
          %v2855 = vpop.f32.mrf.mxu0
          %v2856 = vadd.f32 %v2807, %v2855
          %2857 = vmatmul.bf16.gmra.mxu0 %v1301
          %v2858 = vpop.f32.mrf.mxu0
          %v2859 = vadd.f32 %v2810, %v2858
          %v2860 = vpop.f32.mrf.mxu0
          %v2861 = vadd.f32 %v2812, %v2860
          %2862 = vmatmul.bf16.gmra.mxu0 %v1309
          %v2863 = vpop.f32.mrf.mxu0
          %v2864 = vadd.f32 %v2815, %v2863
          %v2865 = vpop.f32.mrf.mxu0
          %v2866 = vadd.f32 %v2817, %v2865
          %2867 = vdwg.mxu0
          %v2868 = vmax.f32 %v2437, 0.0
          %v2869 = vmax.f32 %v2829, 0.0
          %v2870 = vmax.f32 %v2439, 0.0
          %v2871 = vmax.f32 %v2831, 0.0
          %v2872 = vmax.f32 %v2442, 0.0
          %v2873 = vmax.f32 %v2834, 0.0
          %v2874 = vmax.f32 %v2444, 0.0
          %v2875 = vmax.f32 %v2836, 0.0
          %v2876 = vmax.f32 %v2447, 0.0
          %v2877 = vmax.f32 %v2839, 0.0
          %v2878 = vmax.f32 %v2449, 0.0
          %v2879 = vmax.f32 %v2841, 0.0
          %v2880 = vmax.f32 %v2452, 0.0
          %v2881 = vmax.f32 %v2844, 0.0
          %v2882 = vmax.f32 %v2454, 0.0
          %v2883 = vmax.f32 %v2846, 0.0
          %v2884 = vmax.f32 %v2457, 0.0
          %v2885 = vmax.f32 %v2849, 0.0
          %v2886 = vmax.f32 %v2459, 0.0
          %v2887 = vmax.f32 %v2851, 0.0
          %v2888 = vmax.f32 %v2462, 0.0
          %v2889 = vmax.f32 %v2854, 0.0
          %v2890 = vmax.f32 %v2464, 0.0
          %v2891 = vmax.f32 %v2856, 0.0
          %v2892 = vmax.f32 %v2467, 0.0
          %v2893 = vmax.f32 %v2859, 0.0
          %v2894 = vmax.f32 %v2469, 0.0
          %v2895 = vmax.f32 %v2861, 0.0
          %v2896 = vmax.f32 %v2472, 0.0
          %v2897 = vmax.f32 %v2864, 0.0
          %v2898 = vmax.f32 %v2474, 0.0
          %v2899 = vmax.f32 %v2866, 0.0
          %v2900 = vpack.c.bf16 %v2870, %v2868
          %v2901 = vpack.c.bf16 %v2871, %v2869
          %v2902 = vpack.c.bf16 %v2874, %v2872
          %v2903 = vpack.c.bf16 %v2875, %v2873
          %v2904 = vpack.c.bf16 %v2878, %v2876
          %v2905 = vpack.c.bf16 %v2879, %v2877
          %v2906 = vpack.c.bf16 %v2882, %v2880
          %v2907 = vpack.c.bf16 %v2883, %v2881
          %v2908 = vpack.c.bf16 %v2886, %v2884
          %v2909 = vpack.c.bf16 %v2887, %v2885
          %v2910 = vpack.c.bf16 %v2890, %v2888
          %v2911 = vpack.c.bf16 %v2891, %v2889
          %v2912 = vpack.c.bf16 %v2894, %v2892
          %v2913 = vpack.c.bf16 %v2895, %v2893
          %v2914 = vpack.c.bf16 %v2898, %v2896
          %v2915 = vpack.c.bf16 %v2899, %v2897
          %v2916 = vld [vmem:[%s4] sm:$0xf]
          %v2917 = vld [vmem:[%s4 + $0x4] sm:$0xf]
          %v2918 = vld [vmem:[%s4 + $0x8] sm:$0xf]
          %v2919 = vld [vmem:[%s4 + $0xc] sm:$0xf]
          %v2920 = vld [vmem:[%s4 + $0x10] sm:$0xf]
          %v2921 = vld [vmem:[%s4 + $0x14] sm:$0xf]
          %v2922 = vld [vmem:[%s4 + $0x18] sm:$0xf]
          %v2923 = vld [vmem:[%s4 + $0x1c] sm:$0xf]
          %v2924 = vld [vmem:[%s4 + $0x20] sm:$0xf]
          %v2925 = vld [vmem:[%s4 + $0x24] sm:$0xf]
          %v2926 = vld [vmem:[%s4 + $0x28] sm:$0xf]
          %v2927 = vld [vmem:[%s4 + $0x2c] sm:$0xf]
          %v2928 = vld [vmem:[%s4 + $0x30] sm:$0xf]
          %v2929 = vld [vmem:[%s4 + $0x34] sm:$0xf]
          %v2930 = vld [vmem:[%s4 + $0x38] sm:$0xf]
          %v2931 = vld [vmem:[%s4 + $0x3c] sm:$0xf]
          %v2932 = vld [vmem:[%s4 + $0x40] sm:$0xf]
          %v2933 = vld [vmem:[%s4 + $0x44] sm:$0xf]
          %v2934 = vld [vmem:[%s4 + $0x48] sm:$0xf]
          %v2935 = vld [vmem:[%s4 + $0x4c] sm:$0xf]
          %v2936 = vld [vmem:[%s4 + $0x50] sm:$0xf]
          %v2937 = vld [vmem:[%s4 + $0x54] sm:$0xf]
          %v2938 = vld [vmem:[%s4 + $0x58] sm:$0xf]
          %v2939 = vld [vmem:[%s4 + $0x5c] sm:$0xf]
          %v2940 = vld [vmem:[%s4 + $0x60] sm:$0xf]
          %v2941 = vld [vmem:[%s4 + $0x64] sm:$0xf]
          %v2942 = vld [vmem:[%s4 + $0x68] sm:$0xf]
          %v2943 = vld [vmem:[%s4 + $0x6c] sm:$0xf]
          %v2944 = vld [vmem:[%s4 + $0x70] sm:$0xf]
          %v2945 = vld [vmem:[%s4 + $0x74] sm:$0xf]
          %v2946 = vld [vmem:[%s4 + $0x78] sm:$0xf]
          %v2947 = vld [vmem:[%s4 + $0x7c] sm:$0xf]
          %v2948 = vld [vmem:[%s5] sm:$0x1]
          %v2950 = vperm.slane %v2948, 0
          %v2984 = vunpack.c.l.b16 %v2916
          %v2985 = vunpack.c.l.b16 %v2917
          %v2986 = vunpack.c.l.b16 %v2918
          %v2987 = vunpack.c.l.b16 %v2919
          %v2988 = vunpack.c.l.b16 %v2920
          %v2989 = vunpack.c.l.b16 %v2921
          %v2990 = vunpack.c.l.b16 %v2922
          %v2991 = vunpack.c.l.b16 %v2923
          %v2992 = vunpack.c.l.b16 %v2924
          %v2993 = vunpack.c.l.b16 %v2925
          %v2994 = vunpack.c.l.b16 %v2926
          %v2995 = vunpack.c.l.b16 %v2927
          %v2996 = vunpack.c.l.b16 %v2928
          %v2997 = vunpack.c.l.b16 %v2929
          %v2998 = vunpack.c.l.b16 %v2930
          %v2999 = vunpack.c.l.b16 %v2931
          %v3000 = vunpack.c.l.b16 %v2932
          %v3001 = vunpack.c.l.b16 %v2933
          %v3002 = vunpack.c.l.b16 %v2934
          %v3003 = vunpack.c.l.b16 %v2935
          %v3004 = vunpack.c.l.b16 %v2936
          %v3005 = vunpack.c.l.b16 %v2937
          %v3006 = vunpack.c.l.b16 %v2938
          %v3007 = vunpack.c.l.b16 %v2939
          %v3008 = vunpack.c.l.b16 %v2940
          %v3009 = vunpack.c.l.b16 %v2941
          %v3010 = vunpack.c.l.b16 %v2942
          %v3011 = vunpack.c.l.b16 %v2943
          %v3012 = vunpack.c.l.b16 %v2944
          %v3013 = vunpack.c.l.b16 %v2945
          %v3014 = vunpack.c.l.b16 %v2946
          %v3015 = vunpack.c.l.b16 %v2947
          %v3016 = vpack.c.b16 %v2985, %v2984
          %v3017 = vpack.c.b16 %v2987, %v2986
          %v3018 = vpack.c.b16 %v2989, %v2988
          %v3019 = vpack.c.b16 %v2991, %v2990
          %v3020 = vpack.c.b16 %v2993, %v2992
          %v3021 = vpack.c.b16 %v2995, %v2994
          %v3022 = vpack.c.b16 %v2997, %v2996
          %v3023 = vpack.c.b16 %v2999, %v2998
          %v3024 = vpack.c.b16 %v3001, %v3000
          %v3025 = vpack.c.b16 %v3003, %v3002
          %v3026 = vpack.c.b16 %v3005, %v3004
          %v3027 = vpack.c.b16 %v3007, %v3006
          %v3028 = vpack.c.b16 %v3009, %v3008
          %v3029 = vpack.c.b16 %v3011, %v3010
          %v3030 = vpack.c.b16 %v3013, %v3012
          %v3031 = vpack.c.b16 %v3015, %v3014
          %3048 = vmatpush.bf16.msra.mxu0 %v3023
          %3049 = vmatpush.bf16.msra.mxu0 %v3022
          %3050 = vmatpush.bf16.msra.mxu0 %v3021
          %3051 = vmatpush.bf16.msra.mxu0 %v3020
          %3052 = vmatpush.bf16.msra.mxu0 %v3019
          %3053 = vmatpush.bf16.msra.mxu0 %v3018
          %3054 = vmatpush.bf16.msra.mxu0 %v3017
          %3055 = vmatpush.bf16.msra.mxu0 %v3016
          %3056 = vmatmul.bf16.gmra.mxu0 %v2900
          %v3057 = vpop.f32.mrf.mxu0
          %v3058 = vadd.f32 %v2950, %v3057
          %v3059 = vpop.f32.mrf.mxu0
          %v3060 = vadd.f32 %v2950, %v3059
          %3061 = vmatmul.bf16.gmra.mxu0 %v2902
          %v3062 = vpop.f32.mrf.mxu0
          %v3063 = vadd.f32 %v2950, %v3062
          %v3064 = vpop.f32.mrf.mxu0
          %v3065 = vadd.f32 %v2950, %v3064
          %3066 = vmatmul.bf16.gmra.mxu0 %v2904
          %v3067 = vpop.f32.mrf.mxu0
          %v3068 = vadd.f32 %v2950, %v3067
          %v3069 = vpop.f32.mrf.mxu0
          %v3070 = vadd.f32 %v2950, %v3069
          %3071 = vmatmul.bf16.gmra.mxu0 %v2906
          %v3072 = vpop.f32.mrf.mxu0
          %v3073 = vadd.f32 %v2950, %v3072
          %v3074 = vpop.f32.mrf.mxu0
          %v3075 = vadd.f32 %v2950, %v3074
          %3076 = vmatmul.bf16.gmra.mxu0 %v2908
          %v3077 = vpop.f32.mrf.mxu0
          %v3078 = vadd.f32 %v2950, %v3077
          %v3079 = vpop.f32.mrf.mxu0
          %v3080 = vadd.f32 %v2950, %v3079
          %3081 = vmatmul.bf16.gmra.mxu0 %v2910
          %v3082 = vpop.f32.mrf.mxu0
          %v3083 = vadd.f32 %v2950, %v3082
          %v3084 = vpop.f32.mrf.mxu0
          %v3085 = vadd.f32 %v2950, %v3084
          %3086 = vmatmul.bf16.gmra.mxu0 %v2912
          %v3087 = vpop.f32.mrf.mxu0
          %v3088 = vadd.f32 %v2950, %v3087
          %v3089 = vpop.f32.mrf.mxu0
          %v3090 = vadd.f32 %v2950, %v3089
          %3091 = vmatmul.bf16.gmra.mxu0 %v2914
          %v3092 = vpop.f32.mrf.mxu0
          %v3093 = vadd.f32 %v2950, %v3092
          %v3094 = vpop.f32.mrf.mxu0
          %v3095 = vadd.f32 %v2950, %v3094
          %3096 = vdwg.mxu0
          %3097 = vmatpush.bf16.msra.mxu0 %v3031
          %3098 = vmatpush.bf16.msra.mxu0 %v3030
          %3099 = vmatpush.bf16.msra.mxu0 %v3029
          %3100 = vmatpush.bf16.msra.mxu0 %v3028
          %3101 = vmatpush.bf16.msra.mxu0 %v3027
          %3102 = vmatpush.bf16.msra.mxu0 %v3026
          %3103 = vmatpush.bf16.msra.mxu0 %v3025
          %3104 = vmatpush.bf16.msra.mxu0 %v3024
          %3105 = vmatmul.bf16.gmra.mxu0 %v2901
          %v3106 = vpop.f32.mrf.mxu0
          %v3107 = vadd.f32 %v3058, %v3106
          %v3108 = vpop.f32.mrf.mxu0
          %v3109 = vadd.f32 %v3060, %v3108
          %3110 = vmatmul.bf16.gmra.mxu0 %v2903
          %v3111 = vpop.f32.mrf.mxu0
          %v3112 = vadd.f32 %v3063, %v3111
          %v3113 = vpop.f32.mrf.mxu0
          %v3114 = vadd.f32 %v3065, %v3113
          %3115 = vmatmul.bf16.gmra.mxu0 %v2905
          %v3116 = vpop.f32.mrf.mxu0
          %v3117 = vadd.f32 %v3068, %v3116
          %v3118 = vpop.f32.mrf.mxu0
          %v3119 = vadd.f32 %v3070, %v3118
          %3120 = vmatmul.bf16.gmra.mxu0 %v2907
          %v3121 = vpop.f32.mrf.mxu0
          %v3122 = vadd.f32 %v3073, %v3121
          %v3123 = vpop.f32.mrf.mxu0
          %v3124 = vadd.f32 %v3075, %v3123
          %3125 = vmatmul.bf16.gmra.mxu0 %v2909
          %v3126 = vpop.f32.mrf.mxu0
          %v3127 = vadd.f32 %v3078, %v3126
          %v3128 = vpop.f32.mrf.mxu0
          %v3129 = vadd.f32 %v3080, %v3128
          %3130 = vmatmul.bf16.gmra.mxu0 %v2911
          %v3131 = vpop.f32.mrf.mxu0
          %v3132 = vadd.f32 %v3083, %v3131
          %v3133 = vpop.f32.mrf.mxu0
          %v3134 = vadd.f32 %v3085, %v3133
          %3135 = vmatmul.bf16.gmra.mxu0 %v2913
          %v3136 = vpop.f32.mrf.mxu0
          %v3137 = vadd.f32 %v3088, %v3136
          %v3138 = vpop.f32.mrf.mxu0
          %v3139 = vadd.f32 %v3090, %v3138
          %3140 = vmatmul.bf16.gmra.mxu0 %v2915
          %v3141 = vpop.f32.mrf.mxu0
          %v3142 = vadd.f32 %v3093, %v3141
          %v3143 = vpop.f32.mrf.mxu0
          %v3144 = vadd.f32 %v3095, %v3143
          %3145 = vdwg.mxu0
          %v3146 = vmul.f32 %v3107, 0.5
          %v3147 = vmul.f32 %v3109, 0.5
          %v3148 = vmul.f32 %v3112, 0.5
          %v3149 = vmul.f32 %v3114, 0.5
          %v3150 = vmul.f32 %v3117, 0.5
          %v3151 = vmul.f32 %v3119, 0.5
          %v3152 = vmul.f32 %v3122, 0.5
          %v3153 = vmul.f32 %v3124, 0.5
          %v3154 = vmul.f32 %v3127, 0.5
          %v3155 = vmul.f32 %v3129, 0.5
          %v3156 = vmul.f32 %v3132, 0.5
          %v3157 = vmul.f32 %v3134, 0.5
          %v3158 = vmul.f32 %v3137, 0.5
          %v3159 = vmul.f32 %v3139, 0.5
          %v3160 = vmul.f32 %v3142, 0.5
          %v3161 = vmul.f32 %v3144, 0.5
          %v3162 = vmul.f32 %v3146, 1.442695
          %v3163 = vpow.pop %v3162
          %v3164 = vmul.f32 %v3147, 1.442695
          %v3165 = vpow.pop %v3164
          %v3166 = vmul.f32 %v3148, 1.442695
          %v3167 = vpow.pop %v3166
          %v3168 = vmul.f32 %v3149, 1.442695
          %v3169 = vpow.pop %v3168
          %v3170 = vmul.f32 %v3150, 1.442695
          %v3171 = vpow.pop %v3170
          %v3172 = vmul.f32 %v3151, 1.442695
          %v3173 = vpow.pop %v3172
          %v3174 = vmul.f32 %v3152, 1.442695
          %v3175 = vpow.pop %v3174
          %v3176 = vmul.f32 %v3153, 1.442695
          %v3177 = vpow.pop %v3176
          %v3178 = vmul.f32 %v3154, 1.442695
          %v3179 = vpow.pop %v3178
          %v3180 = vmul.f32 %v3155, 1.442695
          %v3181 = vpow.pop %v3180
          %v3182 = vmul.f32 %v3156, 1.442695
          %v3183 = vpow.pop %v3182
          %v3184 = vmul.f32 %v3157, 1.442695
          %v3185 = vpow.pop %v3184
          %v3186 = vmul.f32 %v3158, 1.442695
          %v3187 = vpow.pop %v3186
          %v3188 = vmul.f32 %v3159, 1.442695
          %v3189 = vpow.pop %v3188
          %v3190 = vmul.f32 %v3160, 1.442695
          %v3191 = vpow.pop %v3190
          %v3192 = vmul.f32 %v3161, 1.442695
          %v3193 = vpow.pop %v3192
          %v3194 = vld [vmem:[%s521] sm:$0xff]
          %v3195 = vld [vmem:[%s521 + $0x8] sm:$0xff]
          %v3196 = vld [vmem:[%s521 + $0x10] sm:$0xff]
          %v3197 = vld [vmem:[%s521 + $0x18] sm:$0xff]
          %v3198 = vld [vmem:[%s521 + $0x20] sm:$0xff]
          %v3199 = vld [vmem:[%s521 + $0x28] sm:$0xff]
          %v3200 = vld [vmem:[%s521 + $0x30] sm:$0xff]
          %v3201 = vld [vmem:[%s521 + $0x38] sm:$0xff]
          %v3202 = vld [vmem:[%s521 + $0x40] sm:$0xff]
          %v3203 = vld [vmem:[%s521 + $0x48] sm:$0xff]
          %v3204 = vld [vmem:[%s521 + $0x50] sm:$0xff]
          %v3205 = vld [vmem:[%s521 + $0x58] sm:$0xff]
          %v3206 = vld [vmem:[%s521 + $0x60] sm:$0xff]
          %v3207 = vld [vmem:[%s521 + $0x68] sm:$0xff]
          %v3208 = vld [vmem:[%s521 + $0x70] sm:$0xff]
          %v3209 = vld [vmem:[%s521 + $0x78] sm:$0xff]
          %3226 = vrot.lane.b32.xlu0 %v3163, 64
          %v3227 = vpop.permute.xlu0 %3226
          %3228 = vrot.lane.b32.xlu0 %v3165, 64
          %v3229 = vpop.permute.xlu0 %3228
          %3230 = vrot.lane.b32.xlu0 %v3167, 64
          %v3231 = vpop.permute.xlu0 %3230
          %3232 = vrot.lane.b32.xlu0 %v3169, 64
          %v3233 = vpop.permute.xlu0 %3232
          %3234 = vrot.lane.b32.xlu0 %v3171, 64
          %v3235 = vpop.permute.xlu0 %3234
          %3236 = vrot.lane.b32.xlu0 %v3173, 64
          %v3237 = vpop.permute.xlu0 %3236
          %3238 = vrot.lane.b32.xlu0 %v3175, 64
          %v3239 = vpop.permute.xlu0 %3238
          %3240 = vrot.lane.b32.xlu0 %v3177, 64
          %v3241 = vpop.permute.xlu0 %3240
          %3242 = vrot.lane.b32.xlu0 %v3179, 64
          %v3243 = vpop.permute.xlu0 %3242
          %3244 = vrot.lane.b32.xlu0 %v3181, 64
          %v3245 = vpop.permute.xlu0 %3244
          %3246 = vrot.lane.b32.xlu0 %v3183, 64
          %v3247 = vpop.permute.xlu0 %3246
          %3248 = vrot.lane.b32.xlu0 %v3185, 64
          %v3249 = vpop.permute.xlu0 %3248
          %3250 = vrot.lane.b32.xlu0 %v3187, 64
          %v3251 = vpop.permute.xlu0 %3250
          %3252 = vrot.lane.b32.xlu0 %v3189, 64
          %v3253 = vpop.permute.xlu0 %3252
          %3254 = vrot.lane.b32.xlu0 %v3191, 64
          %v3255 = vpop.permute.xlu0 %3254
          %3256 = vrot.lane.b32.xlu0 %v3193, 64
          %v3257 = vpop.permute.xlu0 %3256
          %v3274 = vmul.f32 %v3194, %v3227
          %v3275 = vmul.f32 %v3195, %v3229
          %v3276 = vmul.f32 %v3196, %v3231
          %v3277 = vmul.f32 %v3197, %v3233
          %v3278 = vmul.f32 %v3198, %v3235
          %v3279 = vmul.f32 %v3199, %v3237
          %v3280 = vmul.f32 %v3200, %v3239
          %v3281 = vmul.f32 %v3201, %v3241
          %v3282 = vmul.f32 %v3202, %v3243
          %v3283 = vmul.f32 %v3203, %v3245
          %v3284 = vmul.f32 %v3204, %v3247
          %v3285 = vmul.f32 %v3205, %v3249
          %v3286 = vmul.f32 %v3206, %v3251
          %v3287 = vmul.f32 %v3207, %v3253
          %v3288 = vmul.f32 %v3208, %v3255
          %v3289 = vmul.f32 %v3209, %v3257
          %v3290 = vadd.f32 %v3107, %v3274
          %v3291 = vadd.f32 %v3109, %v3275
          %v3292 = vadd.f32 %v3112, %v3276
          %v3293 = vadd.f32 %v3114, %v3277
          %v3294 = vadd.f32 %v3117, %v3278
          %v3295 = vadd.f32 %v3119, %v3279
          %v3296 = vadd.f32 %v3122, %v3280
          %v3297 = vadd.f32 %v3124, %v3281
          %v3298 = vadd.f32 %v3127, %v3282
          %v3299 = vadd.f32 %v3129, %v3283
          %v3300 = vadd.f32 %v3132, %v3284
          %v3301 = vadd.f32 %v3134, %v3285
          %v3302 = vadd.f32 %v3137, %v3286
          %v3303 = vadd.f32 %v3139, %v3287
          %v3304 = vadd.f32 %v3142, %v3288
          %v3305 = vadd.f32 %v3144, %v3289
          %v3306 = vpack.c.bf16 %v3291, %v3290
          %v3307 = vpack.c.bf16 %v3293, %v3292
          %v3308 = vpack.c.bf16 %v3295, %v3294
          %v3309 = vpack.c.bf16 %v3297, %v3296
          %v3310 = vpack.c.bf16 %v3299, %v3298
          %v3311 = vpack.c.bf16 %v3301, %v3300
          %v3312 = vpack.c.bf16 %v3303, %v3302
          %v3313 = vpack.c.bf16 %v3305, %v3304
          %v3314 = vld [vmem:[%s6] sm:$0xff]
          %v3315 = vld [vmem:[%s6 + $0x8] sm:$0xff]
          %v3316 = vld [vmem:[%s6 + $0x10] sm:$0xff]
          %v3317 = vld [vmem:[%s6 + $0x18] sm:$0xff]
          %v3318 = vld [vmem:[%s6 + $0x20] sm:$0xff]
          %v3319 = vld [vmem:[%s6 + $0x28] sm:$0xff]
          %v3320 = vld [vmem:[%s6 + $0x30] sm:$0xff]
          %v3321 = vld [vmem:[%s6 + $0x38] sm:$0xff]
          %v3322 = vld [vmem:[%s7] sm:$0x3]
          %v3324 = vperm.slane %v3322, 0
          %v3325 = vperm.slane %v3322, 1
          %v3336 = vunpack.c.l.b16 %v3314
          %v3337 = vunpack.c.h.b16 %v3314
          %v3338 = vunpack.c.l.b16 %v3315
          %v3339 = vunpack.c.h.b16 %v3315
          %v3340 = vunpack.c.l.b16 %v3316
          %v3341 = vunpack.c.h.b16 %v3316
          %v3342 = vunpack.c.l.b16 %v3317
          %v3343 = vunpack.c.h.b16 %v3317
          %v3344 = vunpack.c.l.b16 %v3318
          %v3345 = vunpack.c.h.b16 %v3318
          %v3346 = vunpack.c.l.b16 %v3319
          %v3347 = vunpack.c.h.b16 %v3319
          %v3348 = vunpack.c.l.b16 %v3320
          %v3349 = vunpack.c.h.b16 %v3320
          %v3350 = vunpack.c.l.b16 %v3321
          %v3351 = vunpack.c.h.b16 %v3321
          %v3352 = vpack.c.b16 %v3338, %v3336
          %v3353 = vpack.c.b16 %v3339, %v3337
          %v3354 = vpack.c.b16 %v3342, %v3340
          %v3355 = vpack.c.b16 %v3343, %v3341
          %v3356 = vpack.c.b16 %v3346, %v3344
          %v3357 = vpack.c.b16 %v3347, %v3345
          %v3358 = vpack.c.b16 %v3350, %v3348
          %v3359 = vpack.c.b16 %v3351, %v3349
          %vm3368 = vcmask 523264
          %v3370 = vsel %vm3368, %v3306, 0
          %v3373 = vsel %vm3368, %v3307, 0
          %v3376 = vsel %vm3368, %v3308, 0
          %v3379 = vsel %vm3368, %v3309, 0
          %v3382 = vsel %vm3368, %v3310, 0
          %v3385 = vsel %vm3368, %v3311, 0
          %v3388 = vsel %vm3368, %v3312, 0
          %v3391 = vsel %vm3368, %v3313, 0
          %3393 = vmatpush.bf16.msra.mxu0 0
          %3394 = vmatpush.bf16.msra.mxu0 0
          %3395 = vmatpush.bf16.msra.mxu0 0
          %3396 = vmatpush.bf16.msra.mxu0 0
          %3397 = vmatpush.bf16.msra.mxu0 %v3358
          %3398 = vmatpush.bf16.msra.mxu0 %v3356
          %3399 = vmatpush.bf16.msra.mxu0 %v3354
          %3400 = vmatpush.bf16.msra.mxu0 %v3352
          %3401 = vmatmul.bf16.gmra.mxu0 %v3370
          %v3402 = vpop.f32.mrf.mxu0
          %v3403 = vadd.f32 %v3324, %v3402
          %v3404 = vpop.f32.mrf.mxu0
          %v3405 = vadd.f32 %v3324, %v3404
          %3406 = vmatmul.bf16.gmra.mxu0 %v3373
          %v3407 = vpop.f32.mrf.mxu0
          %v3408 = vadd.f32 %v3324, %v3407
          %v3409 = vpop.f32.mrf.mxu0
          %v3410 = vadd.f32 %v3324, %v3409
          %3411 = vmatmul.bf16.gmra.mxu0 %v3376
          %v3412 = vpop.f32.mrf.mxu0
          %v3413 = vadd.f32 %v3324, %v3412
          %v3414 = vpop.f32.mrf.mxu0
          %v3415 = vadd.f32 %v3324, %v3414
          %3416 = vmatmul.bf16.gmra.mxu0 %v3379
          %v3417 = vpop.f32.mrf.mxu0
          %v3418 = vadd.f32 %v3324, %v3417
          %v3419 = vpop.f32.mrf.mxu0
          %v3420 = vadd.f32 %v3324, %v3419
          %3421 = vmatmul.bf16.gmra.mxu0 %v3382
          %v3422 = vpop.f32.mrf.mxu0
          %v3423 = vadd.f32 %v3324, %v3422
          %v3424 = vpop.f32.mrf.mxu0
          %v3425 = vadd.f32 %v3324, %v3424
          %3426 = vmatmul.bf16.gmra.mxu0 %v3385
          %v3427 = vpop.f32.mrf.mxu0
          %v3428 = vadd.f32 %v3324, %v3427
          %v3429 = vpop.f32.mrf.mxu0
          %v3430 = vadd.f32 %v3324, %v3429
          %3431 = vmatmul.bf16.gmra.mxu0 %v3388
          %v3432 = vpop.f32.mrf.mxu0
          %v3433 = vadd.f32 %v3324, %v3432
          %v3434 = vpop.f32.mrf.mxu0
          %v3435 = vadd.f32 %v3324, %v3434
          %3436 = vmatmul.bf16.gmra.mxu0 %v3391
          %v3437 = vpop.f32.mrf.mxu0
          %v3438 = vadd.f32 %v3324, %v3437
          %v3439 = vpop.f32.mrf.mxu0
          %v3440 = vadd.f32 %v3324, %v3439
          %3441 = vdwg.mxu0
          %3442 = vmatpush.bf16.msra.mxu0 0
          %3443 = vmatpush.bf16.msra.mxu0 0
          %3444 = vmatpush.bf16.msra.mxu0 0
          %3445 = vmatpush.bf16.msra.mxu0 0
          %3446 = vmatpush.bf16.msra.mxu0 %v3359
          %3447 = vmatpush.bf16.msra.mxu0 %v3357
          %3448 = vmatpush.bf16.msra.mxu0 %v3355
          %3449 = vmatpush.bf16.msra.mxu0 %v3353
          %3450 = vmatmul.bf16.gmra.mxu0 %v3370
          %v3451 = vpop.f32.mrf.mxu0
          %v3452 = vadd.f32 %v3325, %v3451
          %v3453 = vpop.f32.mrf.mxu0
          %v3454 = vadd.f32 %v3325, %v3453
          %3455 = vmatmul.bf16.gmra.mxu0 %v3373
          %v3456 = vpop.f32.mrf.mxu0
          %v3457 = vadd.f32 %v3325, %v3456
          %v3458 = vpop.f32.mrf.mxu0
          %v3459 = vadd.f32 %v3325, %v3458
          %3460 = vmatmul.bf16.gmra.mxu0 %v3376
          %v3461 = vpop.f32.mrf.mxu0
          %v3462 = vadd.f32 %v3325, %v3461
          %v3463 = vpop.f32.mrf.mxu0
          %v3464 = vadd.f32 %v3325, %v3463
          %3465 = vmatmul.bf16.gmra.mxu0 %v3379
          %v3466 = vpop.f32.mrf.mxu0
          %v3467 = vadd.f32 %v3325, %v3466
          %v3468 = vpop.f32.mrf.mxu0
          %v3469 = vadd.f32 %v3325, %v3468
          %3470 = vmatmul.bf16.gmra.mxu0 %v3382
          %v3471 = vpop.f32.mrf.mxu0
          %v3472 = vadd.f32 %v3325, %v3471
          %v3473 = vpop.f32.mrf.mxu0
          %v3474 = vadd.f32 %v3325, %v3473
          %3475 = vmatmul.bf16.gmra.mxu0 %v3385
          %v3476 = vpop.f32.mrf.mxu0
          %v3477 = vadd.f32 %v3325, %v3476
          %v3478 = vpop.f32.mrf.mxu0
          %v3479 = vadd.f32 %v3325, %v3478
          %3480 = vmatmul.bf16.gmra.mxu0 %v3388
          %v3481 = vpop.f32.mrf.mxu0
          %v3482 = vadd.f32 %v3325, %v3481
          %v3483 = vpop.f32.mrf.mxu0
          %v3484 = vadd.f32 %v3325, %v3483
          %3485 = vmatmul.bf16.gmra.mxu0 %v3391
          %v3486 = vpop.f32.mrf.mxu0
          %v3487 = vadd.f32 %v3325, %v3486
          %v3488 = vpop.f32.mrf.mxu0
          %v3489 = vadd.f32 %v3325, %v3488
          %3490 = vdwg.mxu0
          %v3491 = vmax.f32 %v3403, 0.0
          %v3492 = vmax.f32 %v3452, 0.0
          %v3493 = vmax.f32 %v3405, 0.0
          %v3494 = vmax.f32 %v3454, 0.0
          %v3495 = vmax.f32 %v3408, 0.0
          %v3496 = vmax.f32 %v3457, 0.0
          %v3497 = vmax.f32 %v3410, 0.0
          %v3498 = vmax.f32 %v3459, 0.0
          %v3499 = vmax.f32 %v3413, 0.0
          %v3500 = vmax.f32 %v3462, 0.0
          %v3501 = vmax.f32 %v3415, 0.0
          %v3502 = vmax.f32 %v3464, 0.0
          %v3503 = vmax.f32 %v3418, 0.0
          %v3504 = vmax.f32 %v3467, 0.0
          %v3505 = vmax.f32 %v3420, 0.0
          %v3506 = vmax.f32 %v3469, 0.0
          %v3507 = vmax.f32 %v3423, 0.0
          %v3508 = vmax.f32 %v3472, 0.0
          %v3509 = vmax.f32 %v3425, 0.0
          %v3510 = vmax.f32 %v3474, 0.0
          %v3511 = vmax.f32 %v3428, 0.0
          %v3512 = vmax.f32 %v3477, 0.0
          %v3513 = vmax.f32 %v3430, 0.0
          %v3514 = vmax.f32 %v3479, 0.0
          %v3515 = vmax.f32 %v3433, 0.0
          %v3516 = vmax.f32 %v3482, 0.0
          %v3517 = vmax.f32 %v3435, 0.0
          %v3518 = vmax.f32 %v3484, 0.0
          %v3519 = vmax.f32 %v3438, 0.0
          %v3520 = vmax.f32 %v3487, 0.0
          %v3521 = vmax.f32 %v3440, 0.0
          %v3522 = vmax.f32 %v3489, 0.0
          %v3523 = vpack.c.bf16 %v3492, %v3491
          %v3524 = vpack.c.bf16 %v3494, %v3493
          %v3525 = vpack.c.bf16 %v3496, %v3495
          %v3526 = vpack.c.bf16 %v3498, %v3497
          %v3527 = vpack.c.bf16 %v3500, %v3499
          %v3528 = vpack.c.bf16 %v3502, %v3501
          %v3529 = vpack.c.bf16 %v3504, %v3503
          %v3530 = vpack.c.bf16 %v3506, %v3505
          %v3531 = vpack.c.bf16 %v3508, %v3507
          %v3532 = vpack.c.bf16 %v3510, %v3509
          %v3533 = vpack.c.bf16 %v3512, %v3511
          %v3534 = vpack.c.bf16 %v3514, %v3513
          %v3535 = vpack.c.bf16 %v3516, %v3515
          %v3536 = vpack.c.bf16 %v3518, %v3517
          %v3537 = vpack.c.bf16 %v3520, %v3519
          %v3538 = vpack.c.bf16 %v3522, %v3521
          %3539 = vst [vmem:[#allocation2] sm:$0xff] %v3523
          %3540 = vst [vmem:[#allocation2 + $0x8] sm:$0xff] %v3524
          %3541 = vst [vmem:[#allocation2 + $0x10] sm:$0xff] %v3525
          %3542 = vst [vmem:[#allocation2 + $0x18] sm:$0xff] %v3526
          %3543 = vst [vmem:[#allocation2 + $0x20] sm:$0xff] %v3527
          %3544 = vst [vmem:[#allocation2 + $0x28] sm:$0xff] %v3528
          %3545 = vst [vmem:[#allocation2 + $0x30] sm:$0xff] %v3529
          %3546 = vst [vmem:[#allocation2 + $0x38] sm:$0xff] %v3530
          %3547 = vst [vmem:[#allocation2 + $0x40] sm:$0xff] %v3531
          %3548 = vst [vmem:[#allocation2 + $0x48] sm:$0xff] %v3532
          %3549 = vst [vmem:[#allocation2 + $0x50] sm:$0xff] %v3533
          %3550 = vst [vmem:[#allocation2 + $0x58] sm:$0xff] %v3534
          %3551 = vst [vmem:[#allocation2 + $0x60] sm:$0xff] %v3535
          %3552 = vst [vmem:[#allocation2 + $0x68] sm:$0xff] %v3536
          %3553 = vst [vmem:[#allocation2 + $0x70] sm:$0xff] %v3537
          %3554 = vst [vmem:[#allocation2 + $0x78] sm:$0xff] %v3538
          %3555 = vst [vmem:[%s535] sm:$0xff] %v3107
          %3556 = vst [vmem:[%s535 + $0x8] sm:$0xff] %v3109
          %3557 = vst [vmem:[%s535 + $0x10] sm:$0xff] %v3112
          %3558 = vst [vmem:[%s535 + $0x18] sm:$0xff] %v3114
          %3559 = vst [vmem:[%s535 + $0x20] sm:$0xff] %v3117
          %3560 = vst [vmem:[%s535 + $0x28] sm:$0xff] %v3119
          %3561 = vst [vmem:[%s535 + $0x30] sm:$0xff] %v3122
          %3562 = vst [vmem:[%s535 + $0x38] sm:$0xff] %v3124
          %3563 = vst [vmem:[%s535 + $0x40] sm:$0xff] %v3127
          %3564 = vst [vmem:[%s535 + $0x48] sm:$0xff] %v3129
          %3565 = vst [vmem:[%s535 + $0x50] sm:$0xff] %v3132
          %3566 = vst [vmem:[%s535 + $0x58] sm:$0xff] %v3134
          %3567 = vst [vmem:[%s535 + $0x60] sm:$0xff] %v3137
          %3568 = vst [vmem:[%s535 + $0x68] sm:$0xff] %v3139
          %3569 = vst [vmem:[%s535 + $0x70] sm:$0xff] %v3142
          %3570 = vst [vmem:[%s535 + $0x78] sm:$0xff] %v3144
        $region76: #{multivae_forward.1} parent=59 // pred_fallthru
          _
        %v3571 = vld [vmem:[#allocation2] sm:$0xff]
        %v3572 = vld [vmem:[#allocation2 + $0x8] sm:$0xff]
        %v3573 = vld [vmem:[#allocation2 + $0x10] sm:$0xff]
        %v3574 = vld [vmem:[#allocation2 + $0x18] sm:$0xff]
        %v3575 = vld [vmem:[#allocation2 + $0x20] sm:$0xff]
        %v3576 = vld [vmem:[#allocation2 + $0x28] sm:$0xff]
        %v3577 = vld [vmem:[#allocation2 + $0x30] sm:$0xff]
        %v3578 = vld [vmem:[#allocation2 + $0x38] sm:$0xff]
        %v3579 = vld [vmem:[#allocation2 + $0x40] sm:$0xff]
        %v3580 = vld [vmem:[#allocation2 + $0x48] sm:$0xff]
        %v3581 = vld [vmem:[#allocation2 + $0x50] sm:$0xff]
        %v3582 = vld [vmem:[#allocation2 + $0x58] sm:$0xff]
        %v3583 = vld [vmem:[#allocation2 + $0x60] sm:$0xff]
        %v3584 = vld [vmem:[#allocation2 + $0x68] sm:$0xff]
        %v3585 = vld [vmem:[#allocation2 + $0x70] sm:$0xff]
        %v3586 = vld [vmem:[#allocation2 + $0x78] sm:$0xff]
        %v3587 = vld [vmem:[%s457] sm:$0xff]
        %v3588 = vld [vmem:[%s457 + $0x8] sm:$0xff]
        %v3589 = vld [vmem:[%s457 + $0x10] sm:$0xff]
        %v3590 = vld [vmem:[%s457 + $0x18] sm:$0xff]
        %v3591 = vld [vmem:[%s457 + $0x20] sm:$0xff]
        %v3592 = vld [vmem:[%s457 + $0x28] sm:$0xff]
        %v3593 = vld [vmem:[%s457 + $0x30] sm:$0xff]
        %v3594 = vld [vmem:[%s457 + $0x38] sm:$0xff]
        %v3595 = vld [vmem:[%s457 + $0x40] sm:$0xff]
        %v3596 = vld [vmem:[%s457 + $0x48] sm:$0xff]
        %v3597 = vld [vmem:[%s457 + $0x50] sm:$0xff]
        %v3598 = vld [vmem:[%s457 + $0x58] sm:$0xff]
        %v3599 = vld [vmem:[%s457 + $0x60] sm:$0xff]
        %v3600 = vld [vmem:[%s457 + $0x68] sm:$0xff]
        %v3601 = vld [vmem:[%s457 + $0x70] sm:$0xff]
        %v3602 = vld [vmem:[%s457 + $0x78] sm:$0xff]
        %v3603 = vld [vmem:[%s457 + $0x80] sm:$0xff]
        %v3604 = vld [vmem:[%s457 + $0x88] sm:$0xff]
        %v3605 = vld [vmem:[%s457 + $0x90] sm:$0xff]
        %v3606 = vld [vmem:[%s457 + $0x98] sm:$0xff]
        %v3607 = vld [vmem:[%s457 + $0xa0] sm:$0xff]
        %v3608 = vld [vmem:[%s457 + $0xa8] sm:$0xff]
        %v3609 = vld [vmem:[%s457 + $0xb0] sm:$0xff]
        %v3610 = vld [vmem:[%s457 + $0xb8] sm:$0xff]
        %v3611 = vld [vmem:[%s457 + $0xc0] sm:$0xff]
        %v3612 = vld [vmem:[%s457 + $0xc8] sm:$0xff]
        %v3613 = vld [vmem:[%s457 + $0xd0] sm:$0xff]
        %v3614 = vld [vmem:[%s457 + $0xd8] sm:$0xff]
        %v3615 = vld [vmem:[%s457 + $0xe0] sm:$0xff]
        %v3616 = vld [vmem:[%s457 + $0xe8] sm:$0xff]
        %v3617 = vld [vmem:[%s457 + $0xf0] sm:$0xff]
        %v3618 = vld [vmem:[%s457 + $0xf8] sm:$0xff]
        %v3619 = vld [vmem:[%s457 + $0x100] sm:$0xff]
        %v3620 = vld [vmem:[%s457 + $0x108] sm:$0xff]
        %v3621 = vld [vmem:[%s457 + $0x110] sm:$0xff]
        %v3622 = vld [vmem:[%s457 + $0x118] sm:$0xff]
        %v3623 = vld [vmem:[%s457 + $0x120] sm:$0xff]
        %v3624 = vld [vmem:[%s457 + $0x128] sm:$0xff]
        %v3625 = vld [vmem:[%s457 + $0x130] sm:$0xff]
        %v3626 = vld [vmem:[%s457 + $0x138] sm:$0xff]
        %v3627 = vld [vmem:[%s457 + $0x140] sm:$0xff]
        %v3628 = vld [vmem:[%s457 + $0x148] sm:$0xff]
        %v3629 = vld [vmem:[%s457 + $0x150] sm:$0xff]
        %v3630 = vld [vmem:[%s457 + $0x158] sm:$0xff]
        %v3631 = vld [vmem:[%s457 + $0x160] sm:$0xff]
        %v3632 = vld [vmem:[%s457 + $0x168] sm:$0xff]
        %v3633 = vld [vmem:[%s457 + $0x170] sm:$0xff]
        %v3634 = vld [vmem:[%s457 + $0x178] sm:$0xff]
        %v3635 = vld [vmem:[%s457 + $0x180] sm:$0xff]
        %v3636 = vld [vmem:[%s457 + $0x188] sm:$0xff]
        %v3637 = vld [vmem:[%s457 + $0x190] sm:$0xff]
        %v3638 = vld [vmem:[%s457 + $0x198] sm:$0xff]
        %v3639 = vld [vmem:[%s457 + $0x1a0] sm:$0xff]
        %v3640 = vld [vmem:[%s457 + $0x1a8] sm:$0xff]
        %v3641 = vld [vmem:[%s457 + $0x1b0] sm:$0xff]
        %v3642 = vld [vmem:[%s457 + $0x1b8] sm:$0xff]
        %v3643 = vld [vmem:[%s457 + $0x1c0] sm:$0xff]
        %v3644 = vld [vmem:[%s457 + $0x1c8] sm:$0xff]
        %v3645 = vld [vmem:[%s457 + $0x1d0] sm:$0xff]
        %v3646 = vld [vmem:[%s457 + $0x1d8] sm:$0xff]
        %v3647 = vld [vmem:[%s457 + $0x1e0] sm:$0xff]
        %v3648 = vld [vmem:[%s457 + $0x1e8] sm:$0xff]
        %v3649 = vld [vmem:[%s457 + $0x1f0] sm:$0xff]
        %v3650 = vld [vmem:[%s457 + $0x1f8] sm:$0xff]
        %v3651 = vld [vmem:[%s527] sm:$0xf]
        %v3653 = vperm.slane %v3651, 0
        %v3654 = vperm.slane %v3651, 1
        %v3655 = vperm.slane %v3651, 2
        %v3656 = vperm.slane %v3651, 3
        %v3677 = vunpack.c.l.b16 %v3571
        %v3678 = vunpack.c.h.b16 %v3571
        %v3679 = vunpack.c.l.b16 %v3572
        %v3680 = vunpack.c.h.b16 %v3572
        %v3681 = vunpack.c.l.b16 %v3573
        %v3682 = vunpack.c.h.b16 %v3573
        %v3683 = vunpack.c.l.b16 %v3574
        %v3684 = vunpack.c.h.b16 %v3574
        %v3685 = vunpack.c.l.b16 %v3575
        %v3686 = vunpack.c.h.b16 %v3575
        %v3687 = vunpack.c.l.b16 %v3576
        %v3688 = vunpack.c.h.b16 %v3576
        %v3689 = vunpack.c.l.b16 %v3577
        %v3690 = vunpack.c.h.b16 %v3577
        %v3691 = vunpack.c.l.b16 %v3578
        %v3692 = vunpack.c.h.b16 %v3578
        %v3693 = vunpack.c.l.b16 %v3579
        %v3694 = vunpack.c.h.b16 %v3579
        %v3695 = vunpack.c.l.b16 %v3580
        %v3696 = vunpack.c.h.b16 %v3580
        %v3697 = vunpack.c.l.b16 %v3581
        %v3698 = vunpack.c.h.b16 %v3581
        %v3699 = vunpack.c.l.b16 %v3582
        %v3700 = vunpack.c.h.b16 %v3582
        %v3701 = vunpack.c.l.b16 %v3583
        %v3702 = vunpack.c.h.b16 %v3583
        %v3703 = vunpack.c.l.b16 %v3584
        %v3704 = vunpack.c.h.b16 %v3584
        %v3705 = vunpack.c.l.b16 %v3585
        %v3706 = vunpack.c.h.b16 %v3585
        %v3707 = vunpack.c.l.b16 %v3586
        %v3708 = vunpack.c.h.b16 %v3586
        %v3709 = vpack.c.b16 %v3679, %v3677
        %v3710 = vpack.c.b16 %v3680, %v3678
        %v3711 = vpack.c.b16 %v3683, %v3681
        %v3712 = vpack.c.b16 %v3684, %v3682
        %v3713 = vpack.c.b16 %v3687, %v3685
        %v3714 = vpack.c.b16 %v3688, %v3686
        %v3715 = vpack.c.b16 %v3691, %v3689
        %v3716 = vpack.c.b16 %v3692, %v3690
        %v3717 = vpack.c.b16 %v3695, %v3693
        %v3718 = vpack.c.b16 %v3696, %v3694
        %v3719 = vpack.c.b16 %v3699, %v3697
        %v3720 = vpack.c.b16 %v3700, %v3698
        %v3721 = vpack.c.b16 %v3703, %v3701
        %v3722 = vpack.c.b16 %v3704, %v3702
        %v3723 = vpack.c.b16 %v3707, %v3705
        %v3724 = vpack.c.b16 %v3708, %v3706
        %v3805 = vunpack.c.l.b16 %v3587
        %v3806 = vunpack.c.h.b16 %v3587
        %v3807 = vunpack.c.l.b16 %v3588
        %v3808 = vunpack.c.h.b16 %v3588
        %v3809 = vunpack.c.l.b16 %v3589
        %v3810 = vunpack.c.h.b16 %v3589
        %v3811 = vunpack.c.l.b16 %v3590
        %v3812 = vunpack.c.h.b16 %v3590
        %v3813 = vunpack.c.l.b16 %v3591
        %v3814 = vunpack.c.h.b16 %v3591
        %v3815 = vunpack.c.l.b16 %v3592
        %v3816 = vunpack.c.h.b16 %v3592
        %v3817 = vunpack.c.l.b16 %v3593
        %v3818 = vunpack.c.h.b16 %v3593
        %v3819 = vunpack.c.l.b16 %v3594
        %v3820 = vunpack.c.h.b16 %v3594
        %v3821 = vunpack.c.l.b16 %v3595
        %v3822 = vunpack.c.h.b16 %v3595
        %v3823 = vunpack.c.l.b16 %v3596
        %v3824 = vunpack.c.h.b16 %v3596
        %v3825 = vunpack.c.l.b16 %v3597
        %v3826 = vunpack.c.h.b16 %v3597
        %v3827 = vunpack.c.l.b16 %v3598
        %v3828 = vunpack.c.h.b16 %v3598
        %v3829 = vunpack.c.l.b16 %v3599
        %v3830 = vunpack.c.h.b16 %v3599
        %v3831 = vunpack.c.l.b16 %v3600
        %v3832 = vunpack.c.h.b16 %v3600
        %v3833 = vunpack.c.l.b16 %v3601
        %v3834 = vunpack.c.h.b16 %v3601
        %v3835 = vunpack.c.l.b16 %v3602
        %v3836 = vunpack.c.h.b16 %v3602
        %v3837 = vunpack.c.l.b16 %v3603
        %v3838 = vunpack.c.h.b16 %v3603
        %v3839 = vunpack.c.l.b16 %v3604
        %v3840 = vunpack.c.h.b16 %v3604
        %v3841 = vunpack.c.l.b16 %v3605
        %v3842 = vunpack.c.h.b16 %v3605
        %v3843 = vunpack.c.l.b16 %v3606
        %v3844 = vunpack.c.h.b16 %v3606
        %v3845 = vunpack.c.l.b16 %v3607
        %v3846 = vunpack.c.h.b16 %v3607
        %v3847 = vunpack.c.l.b16 %v3608
        %v3848 = vunpack.c.h.b16 %v3608
        %v3849 = vunpack.c.l.b16 %v3609
        %v3850 = vunpack.c.h.b16 %v3609
        %v3851 = vunpack.c.l.b16 %v3610
        %v3852 = vunpack.c.h.b16 %v3610
        %v3853 = vunpack.c.l.b16 %v3611
        %v3854 = vunpack.c.h.b16 %v3611
        %v3855 = vunpack.c.l.b16 %v3612
        %v3856 = vunpack.c.h.b16 %v3612
        %v3857 = vunpack.c.l.b16 %v3613
        %v3858 = vunpack.c.h.b16 %v3613
        %v3859 = vunpack.c.l.b16 %v3614
        %v3860 = vunpack.c.h.b16 %v3614
        %v3861 = vunpack.c.l.b16 %v3615
        %v3862 = vunpack.c.h.b16 %v3615
        %v3863 = vunpack.c.l.b16 %v3616
        %v3864 = vunpack.c.h.b16 %v3616
        %v3865 = vunpack.c.l.b16 %v3617
        %v3866 = vunpack.c.h.b16 %v3617
        %v3867 = vunpack.c.l.b16 %v3618
        %v3868 = vunpack.c.h.b16 %v3618
        %v3869 = vunpack.c.l.b16 %v3619
        %v3870 = vunpack.c.h.b16 %v3619
        %v3871 = vunpack.c.l.b16 %v3620
        %v3872 = vunpack.c.h.b16 %v3620
        %v3873 = vunpack.c.l.b16 %v3621
        %v3874 = vunpack.c.h.b16 %v3621
        %v3875 = vunpack.c.l.b16 %v3622
        %v3876 = vunpack.c.h.b16 %v3622
        %v3877 = vunpack.c.l.b16 %v3623
        %v3878 = vunpack.c.h.b16 %v3623
        %v3879 = vunpack.c.l.b16 %v3624
        %v3880 = vunpack.c.h.b16 %v3624
        %v3881 = vunpack.c.l.b16 %v3625
        %v3882 = vunpack.c.h.b16 %v3625
        %v3883 = vunpack.c.l.b16 %v3626
        %v3884 = vunpack.c.h.b16 %v3626
        %v3885 = vunpack.c.l.b16 %v3627
        %v3886 = vunpack.c.h.b16 %v3627
        %v3887 = vunpack.c.l.b16 %v3628
        %v3888 = vunpack.c.h.b16 %v3628
        %v3889 = vunpack.c.l.b16 %v3629
        %v3890 = vunpack.c.h.b16 %v3629
        %v3891 = vunpack.c.l.b16 %v3630
        %v3892 = vunpack.c.h.b16 %v3630
        %v3893 = vunpack.c.l.b16 %v3631
        %v3894 = vunpack.c.h.b16 %v3631
        %v3895 = vunpack.c.l.b16 %v3632
        %v3896 = vunpack.c.h.b16 %v3632
        %v3897 = vunpack.c.l.b16 %v3633
        %v3898 = vunpack.c.h.b16 %v3633
        %v3899 = vunpack.c.l.b16 %v3634
        %v3900 = vunpack.c.h.b16 %v3634
        %v3901 = vunpack.c.l.b16 %v3635
        %v3902 = vunpack.c.h.b16 %v3635
        %v3903 = vunpack.c.l.b16 %v3636
        %v3904 = vunpack.c.h.b16 %v3636
        %v3905 = vunpack.c.l.b16 %v3637
        %v3906 = vunpack.c.h.b16 %v3637
        %v3907 = vunpack.c.l.b16 %v3638
        %v3908 = vunpack.c.h.b16 %v3638
        %v3909 = vunpack.c.l.b16 %v3639
        %v3910 = vunpack.c.h.b16 %v3639
        %v3911 = vunpack.c.l.b16 %v3640
        %v3912 = vunpack.c.h.b16 %v3640
        %v3913 = vunpack.c.l.b16 %v3641
        %v3914 = vunpack.c.h.b16 %v3641
        %v3915 = vunpack.c.l.b16 %v3642
        %v3916 = vunpack.c.h.b16 %v3642
        %v3917 = vunpack.c.l.b16 %v3643
        %v3918 = vunpack.c.h.b16 %v3643
        %v3919 = vunpack.c.l.b16 %v3644
        %v3920 = vunpack.c.h.b16 %v3644
        %v3921 = vunpack.c.l.b16 %v3645
        %v3922 = vunpack.c.h.b16 %v3645
        %v3923 = vunpack.c.l.b16 %v3646
        %v3924 = vunpack.c.h.b16 %v3646
        %v3925 = vunpack.c.l.b16 %v3647
        %v3926 = vunpack.c.h.b16 %v3647
        %v3927 = vunpack.c.l.b16 %v3648
        %v3928 = vunpack.c.h.b16 %v3648
        %v3929 = vunpack.c.l.b16 %v3649
        %v3930 = vunpack.c.h.b16 %v3649
        %v3931 = vunpack.c.l.b16 %v3650
        %v3932 = vunpack.c.h.b16 %v3650
        %v3933 = vpack.c.b16 %v3809, %v3805
        %v3934 = vpack.c.b16 %v3810, %v3806
        %v3935 = vpack.c.b16 %v3811, %v3807
        %v3936 = vpack.c.b16 %v3812, %v3808
        %v3937 = vpack.c.b16 %v3817, %v3813
        %v3938 = vpack.c.b16 %v3818, %v3814
        %v3939 = vpack.c.b16 %v3819, %v3815
        %v3940 = vpack.c.b16 %v3820, %v3816
        %v3941 = vpack.c.b16 %v3825, %v3821
        %v3942 = vpack.c.b16 %v3826, %v3822
        %v3943 = vpack.c.b16 %v3827, %v3823
        %v3944 = vpack.c.b16 %v3828, %v3824
        %v3945 = vpack.c.b16 %v3833, %v3829
        %v3946 = vpack.c.b16 %v3834, %v3830
        %v3947 = vpack.c.b16 %v3835, %v3831
        %v3948 = vpack.c.b16 %v3836, %v3832
        %v3949 = vpack.c.b16 %v3841, %v3837
        %v3950 = vpack.c.b16 %v3842, %v3838
        %v3951 = vpack.c.b16 %v3843, %v3839
        %v3952 = vpack.c.b16 %v3844, %v3840
        %v3953 = vpack.c.b16 %v3849, %v3845
        %v3954 = vpack.c.b16 %v3850, %v3846
        %v3955 = vpack.c.b16 %v3851, %v3847
        %v3956 = vpack.c.b16 %v3852, %v3848
        %v3957 = vpack.c.b16 %v3857, %v3853
        %v3958 = vpack.c.b16 %v3858, %v3854
        %v3959 = vpack.c.b16 %v3859, %v3855
        %v3960 = vpack.c.b16 %v3860, %v3856
        %v3961 = vpack.c.b16 %v3865, %v3861
        %v3962 = vpack.c.b16 %v3866, %v3862
        %v3963 = vpack.c.b16 %v3867, %v3863
        %v3964 = vpack.c.b16 %v3868, %v3864
        %v3965 = vpack.c.b16 %v3873, %v3869
        %v3966 = vpack.c.b16 %v3874, %v3870
        %v3967 = vpack.c.b16 %v3875, %v3871
        %v3968 = vpack.c.b16 %v3876, %v3872
        %v3969 = vpack.c.b16 %v3881, %v3877
        %v3970 = vpack.c.b16 %v3882, %v3878
        %v3971 = vpack.c.b16 %v3883, %v3879
        %v3972 = vpack.c.b16 %v3884, %v3880
        %v3973 = vpack.c.b16 %v3889, %v3885
        %v3974 = vpack.c.b16 %v3890, %v3886
        %v3975 = vpack.c.b16 %v3891, %v3887
        %v3976 = vpack.c.b16 %v3892, %v3888
        %v3977 = vpack.c.b16 %v3897, %v3893
        %v3978 = vpack.c.b16 %v3898, %v3894
        %v3979 = vpack.c.b16 %v3899, %v3895
        %v3980 = vpack.c.b16 %v3900, %v3896
        %v3981 = vpack.c.b16 %v3905, %v3901
        %v3982 = vpack.c.b16 %v3906, %v3902
        %v3983 = vpack.c.b16 %v3907, %v3903
        %v3984 = vpack.c.b16 %v3908, %v3904
        %v3985 = vpack.c.b16 %v3913, %v3909
        %v3986 = vpack.c.b16 %v3914, %v3910
        %v3987 = vpack.c.b16 %v3915, %v3911
        %v3988 = vpack.c.b16 %v3916, %v3912
        %v3989 = vpack.c.b16 %v3921, %v3917
        %v3990 = vpack.c.b16 %v3922, %v3918
        %v3991 = vpack.c.b16 %v3923, %v3919
        %v3992 = vpack.c.b16 %v3924, %v3920
        %v3993 = vpack.c.b16 %v3929, %v3925
        %v3994 = vpack.c.b16 %v3930, %v3926
        %v3995 = vpack.c.b16 %v3931, %v3927
        %v3996 = vpack.c.b16 %v3932, %v3928
        %4061 = vmatpush.bf16.msra.mxu0 %v3961
        %4062 = vmatpush.bf16.msra.mxu0 %v3957
        %4063 = vmatpush.bf16.msra.mxu0 %v3953
        %4064 = vmatpush.bf16.msra.mxu0 %v3949
        %4065 = vmatpush.bf16.msra.mxu0 %v3945
        %4066 = vmatpush.bf16.msra.mxu0 %v3941
        %4067 = vmatpush.bf16.msra.mxu0 %v3937
        %4068 = vmatpush.bf16.msra.mxu0 %v3933
        %4069 = vmatmul.bf16.gmra.mxu0 %v3709
        %v4070 = vpop.f32.mrf.mxu0
        %v4071 = vadd.f32 %v3653, %v4070
        %v4072 = vpop.f32.mrf.mxu0
        %v4073 = vadd.f32 %v3653, %v4072
        %4074 = vmatmul.bf16.gmra.mxu0 %v3711
        %v4075 = vpop.f32.mrf.mxu0
        %v4076 = vadd.f32 %v3653, %v4075
        %v4077 = vpop.f32.mrf.mxu0
        %v4078 = vadd.f32 %v3653, %v4077
        %4079 = vmatmul.bf16.gmra.mxu0 %v3713
        %v4080 = vpop.f32.mrf.mxu0
        %v4081 = vadd.f32 %v3653, %v4080
        %v4082 = vpop.f32.mrf.mxu0
        %v4083 = vadd.f32 %v3653, %v4082
        %4084 = vmatmul.bf16.gmra.mxu0 %v3715
        %v4085 = vpop.f32.mrf.mxu0
        %v4086 = vadd.f32 %v3653, %v4085
        %v4087 = vpop.f32.mrf.mxu0
        %v4088 = vadd.f32 %v3653, %v4087
        %4089 = vmatmul.bf16.gmra.mxu0 %v3717
        %v4090 = vpop.f32.mrf.mxu0
        %v4091 = vadd.f32 %v3653, %v4090
        %v4092 = vpop.f32.mrf.mxu0
        %v4093 = vadd.f32 %v3653, %v4092
        %4094 = vmatmul.bf16.gmra.mxu0 %v3719
        %v4095 = vpop.f32.mrf.mxu0
        %v4096 = vadd.f32 %v3653, %v4095
        %v4097 = vpop.f32.mrf.mxu0
        %v4098 = vadd.f32 %v3653, %v4097
        %4099 = vmatmul.bf16.gmra.mxu0 %v3721
        %v4100 = vpop.f32.mrf.mxu0
        %v4101 = vadd.f32 %v3653, %v4100
        %v4102 = vpop.f32.mrf.mxu0
        %v4103 = vadd.f32 %v3653, %v4102
        %4104 = vmatmul.bf16.gmra.mxu0 %v3723
        %v4105 = vpop.f32.mrf.mxu0
        %v4106 = vadd.f32 %v3653, %v4105
        %v4107 = vpop.f32.mrf.mxu0
        %v4108 = vadd.f32 %v3653, %v4107
        %4109 = vdwg.mxu0
        %4110 = vmatpush.bf16.msra.mxu0 %v3993
        %4111 = vmatpush.bf16.msra.mxu0 %v3989
        %4112 = vmatpush.bf16.msra.mxu0 %v3985
        %4113 = vmatpush.bf16.msra.mxu0 %v3981
        %4114 = vmatpush.bf16.msra.mxu0 %v3977
        %4115 = vmatpush.bf16.msra.mxu0 %v3973
        %4116 = vmatpush.bf16.msra.mxu0 %v3969
        %4117 = vmatpush.bf16.msra.mxu0 %v3965
        %4118 = vmatmul.bf16.gmra.mxu0 %v3710
        %v4119 = vpop.f32.mrf.mxu0
        %v4120 = vadd.f32 %v4071, %v4119
        %v4121 = vpop.f32.mrf.mxu0
        %v4122 = vadd.f32 %v4073, %v4121
        %4123 = vmatmul.bf16.gmra.mxu0 %v3712
        %v4124 = vpop.f32.mrf.mxu0
        %v4125 = vadd.f32 %v4076, %v4124
        %v4126 = vpop.f32.mrf.mxu0
        %v4127 = vadd.f32 %v4078, %v4126
        %4128 = vmatmul.bf16.gmra.mxu0 %v3714
        %v4129 = vpop.f32.mrf.mxu0
        %v4130 = vadd.f32 %v4081, %v4129
        %v4131 = vpop.f32.mrf.mxu0
        %v4132 = vadd.f32 %v4083, %v4131
        %4133 = vmatmul.bf16.gmra.mxu0 %v3716
        %v4134 = vpop.f32.mrf.mxu0
        %v4135 = vadd.f32 %v4086, %v4134
        %v4136 = vpop.f32.mrf.mxu0
        %v4137 = vadd.f32 %v4088, %v4136
        %4138 = vmatmul.bf16.gmra.mxu0 %v3718
        %v4139 = vpop.f32.mrf.mxu0
        %v4140 = vadd.f32 %v4091, %v4139
        %v4141 = vpop.f32.mrf.mxu0
        %v4142 = vadd.f32 %v4093, %v4141
        %4143 = vmatmul.bf16.gmra.mxu0 %v3720
        %v4144 = vpop.f32.mrf.mxu0
        %v4145 = vadd.f32 %v4096, %v4144
        %v4146 = vpop.f32.mrf.mxu0
        %v4147 = vadd.f32 %v4098, %v4146
        %4148 = vmatmul.bf16.gmra.mxu0 %v3722
        %v4149 = vpop.f32.mrf.mxu0
        %v4150 = vadd.f32 %v4101, %v4149
        %v4151 = vpop.f32.mrf.mxu0
        %v4152 = vadd.f32 %v4103, %v4151
        %4153 = vmatmul.bf16.gmra.mxu0 %v3724
        %v4154 = vpop.f32.mrf.mxu0
        %v4155 = vadd.f32 %v4106, %v4154
        %v4156 = vpop.f32.mrf.mxu0
        %v4157 = vadd.f32 %v4108, %v4156
        %4158 = vdwg.mxu0
        %4159 = vmatpush.bf16.msra.mxu0 %v3962
        %4160 = vmatpush.bf16.msra.mxu0 %v3958
        %4161 = vmatpush.bf16.msra.mxu0 %v3954
        %4162 = vmatpush.bf16.msra.mxu0 %v3950
        %4163 = vmatpush.bf16.msra.mxu0 %v3946
        %4164 = vmatpush.bf16.msra.mxu0 %v3942
        %4165 = vmatpush.bf16.msra.mxu0 %v3938
        %4166 = vmatpush.bf16.msra.mxu0 %v3934
        %4167 = vmatmul.bf16.gmra.mxu0 %v3709
        %v4168 = vpop.f32.mrf.mxu0
        %v4169 = vadd.f32 %v3654, %v4168
        %v4170 = vpop.f32.mrf.mxu0
        %v4171 = vadd.f32 %v3654, %v4170
        %4172 = vmatmul.bf16.gmra.mxu0 %v3711
        %v4173 = vpop.f32.mrf.mxu0
        %v4174 = vadd.f32 %v3654, %v4173
        %v4175 = vpop.f32.mrf.mxu0
        %v4176 = vadd.f32 %v3654, %v4175
        %4177 = vmatmul.bf16.gmra.mxu0 %v3713
        %v4178 = vpop.f32.mrf.mxu0
        %v4179 = vadd.f32 %v3654, %v4178
        %v4180 = vpop.f32.mrf.mxu0
        %v4181 = vadd.f32 %v3654, %v4180
        %4182 = vmatmul.bf16.gmra.mxu0 %v3715
        %v4183 = vpop.f32.mrf.mxu0
        %v4184 = vadd.f32 %v3654, %v4183
        %v4185 = vpop.f32.mrf.mxu0
        %v4186 = vadd.f32 %v3654, %v4185
        %4187 = vmatmul.bf16.gmra.mxu0 %v3717
        %v4188 = vpop.f32.mrf.mxu0
        %v4189 = vadd.f32 %v3654, %v4188
        %v4190 = vpop.f32.mrf.mxu0
        %v4191 = vadd.f32 %v3654, %v4190
        %4192 = vmatmul.bf16.gmra.mxu0 %v3719
        %v4193 = vpop.f32.mrf.mxu0
        %v4194 = vadd.f32 %v3654, %v4193
        %v4195 = vpop.f32.mrf.mxu0
        %v4196 = vadd.f32 %v3654, %v4195
        %4197 = vmatmul.bf16.gmra.mxu0 %v3721
        %v4198 = vpop.f32.mrf.mxu0
        %v4199 = vadd.f32 %v3654, %v4198
        %v4200 = vpop.f32.mrf.mxu0
        %v4201 = vadd.f32 %v3654, %v4200
        %4202 = vmatmul.bf16.gmra.mxu0 %v3723
        %v4203 = vpop.f32.mrf.mxu0
        %v4204 = vadd.f32 %v3654, %v4203
        %v4205 = vpop.f32.mrf.mxu0
        %v4206 = vadd.f32 %v3654, %v4205
        %4207 = vdwg.mxu0
        %4208 = vmatpush.bf16.msra.mxu0 %v3994
        %4209 = vmatpush.bf16.msra.mxu0 %v3990
        %4210 = vmatpush.bf16.msra.mxu0 %v3986
        %4211 = vmatpush.bf16.msra.mxu0 %v3982
        %4212 = vmatpush.bf16.msra.mxu0 %v3978
        %4213 = vmatpush.bf16.msra.mxu0 %v3974
        %4214 = vmatpush.bf16.msra.mxu0 %v3970
        %4215 = vmatpush.bf16.msra.mxu0 %v3966
        %4216 = vmatmul.bf16.gmra.mxu0 %v3710
        %v4217 = vpop.f32.mrf.mxu0
        %v4218 = vadd.f32 %v4169, %v4217
        %v4219 = vpop.f32.mrf.mxu0
        %v4220 = vadd.f32 %v4171, %v4219
        %4221 = vmatmul.bf16.gmra.mxu0 %v3712
        %v4222 = vpop.f32.mrf.mxu0
        %v4223 = vadd.f32 %v4174, %v4222
        %v4224 = vpop.f32.mrf.mxu0
        %v4225 = vadd.f32 %v4176, %v4224
        %4226 = vmatmul.bf16.gmra.mxu0 %v3714
        %v4227 = vpop.f32.mrf.mxu0
        %v4228 = vadd.f32 %v4179, %v4227
        %v4229 = vpop.f32.mrf.mxu0
        %v4230 = vadd.f32 %v4181, %v4229
        %4231 = vmatmul.bf16.gmra.mxu0 %v3716
        %v4232 = vpop.f32.mrf.mxu0
        %v4233 = vadd.f32 %v4184, %v4232
        %v4234 = vpop.f32.mrf.mxu0
        %v4235 = vadd.f32 %v4186, %v4234
        %4236 = vmatmul.bf16.gmra.mxu0 %v3718
        %v4237 = vpop.f32.mrf.mxu0
        %v4238 = vadd.f32 %v4189, %v4237
        %v4239 = vpop.f32.mrf.mxu0
        %v4240 = vadd.f32 %v4191, %v4239
        %4241 = vmatmul.bf16.gmra.mxu0 %v3720
        %v4242 = vpop.f32.mrf.mxu0
        %v4243 = vadd.f32 %v4194, %v4242
        %v4244 = vpop.f32.mrf.mxu0
        %v4245 = vadd.f32 %v4196, %v4244
        %4246 = vmatmul.bf16.gmra.mxu0 %v3722
        %v4247 = vpop.f32.mrf.mxu0
        %v4248 = vadd.f32 %v4199, %v4247
        %v4249 = vpop.f32.mrf.mxu0
        %v4250 = vadd.f32 %v4201, %v4249
        %4251 = vmatmul.bf16.gmra.mxu0 %v3724
        %v4252 = vpop.f32.mrf.mxu0
        %v4253 = vadd.f32 %v4204, %v4252
        %v4254 = vpop.f32.mrf.mxu0
        %v4255 = vadd.f32 %v4206, %v4254
        %4256 = vdwg.mxu0
        %4257 = vmatpush.bf16.msra.mxu0 %v3963
        %4258 = vmatpush.bf16.msra.mxu0 %v3959
        %4259 = vmatpush.bf16.msra.mxu0 %v3955
        %4260 = vmatpush.bf16.msra.mxu0 %v3951
        %4261 = vmatpush.bf16.msra.mxu0 %v3947
        %4262 = vmatpush.bf16.msra.mxu0 %v3943
        %4263 = vmatpush.bf16.msra.mxu0 %v3939
        %4264 = vmatpush.bf16.msra.mxu0 %v3935
        %4265 = vmatmul.bf16.gmra.mxu0 %v3709
        %v4266 = vpop.f32.mrf.mxu0
        %v4267 = vadd.f32 %v3655, %v4266
        %v4268 = vpop.f32.mrf.mxu0
        %v4269 = vadd.f32 %v3655, %v4268
        %4270 = vmatmul.bf16.gmra.mxu0 %v3711
        %v4271 = vpop.f32.mrf.mxu0
        %v4272 = vadd.f32 %v3655, %v4271
        %v4273 = vpop.f32.mrf.mxu0
        %v4274 = vadd.f32 %v3655, %v4273
        %4275 = vmatmul.bf16.gmra.mxu0 %v3713
        %v4276 = vpop.f32.mrf.mxu0
        %v4277 = vadd.f32 %v3655, %v4276
        %v4278 = vpop.f32.mrf.mxu0
        %v4279 = vadd.f32 %v3655, %v4278
        %4280 = vmatmul.bf16.gmra.mxu0 %v3715
        %v4281 = vpop.f32.mrf.mxu0
        %v4282 = vadd.f32 %v3655, %v4281
        %v4283 = vpop.f32.mrf.mxu0
        %v4284 = vadd.f32 %v3655, %v4283
        %4285 = vmatmul.bf16.gmra.mxu0 %v3717
        %v4286 = vpop.f32.mrf.mxu0
        %v4287 = vadd.f32 %v3655, %v4286
        %v4288 = vpop.f32.mrf.mxu0
        %v4289 = vadd.f32 %v3655, %v4288
        %4290 = vmatmul.bf16.gmra.mxu0 %v3719
        %v4291 = vpop.f32.mrf.mxu0
        %v4292 = vadd.f32 %v3655, %v4291
        %v4293 = vpop.f32.mrf.mxu0
        %v4294 = vadd.f32 %v3655, %v4293
        %4295 = vmatmul.bf16.gmra.mxu0 %v3721
        %v4296 = vpop.f32.mrf.mxu0
        %v4297 = vadd.f32 %v3655, %v4296
        %v4298 = vpop.f32.mrf.mxu0
        %v4299 = vadd.f32 %v3655, %v4298
        %4300 = vmatmul.bf16.gmra.mxu0 %v3723
        %v4301 = vpop.f32.mrf.mxu0
        %v4302 = vadd.f32 %v3655, %v4301
        %v4303 = vpop.f32.mrf.mxu0
        %v4304 = vadd.f32 %v3655, %v4303
        %4305 = vdwg.mxu0
        %4306 = vmatpush.bf16.msra.mxu0 %v3995
        %4307 = vmatpush.bf16.msra.mxu0 %v3991
        %4308 = vmatpush.bf16.msra.mxu0 %v3987
        %4309 = vmatpush.bf16.msra.mxu0 %v3983
        %4310 = vmatpush.bf16.msra.mxu0 %v3979
        %4311 = vmatpush.bf16.msra.mxu0 %v3975
        %4312 = vmatpush.bf16.msra.mxu0 %v3971
        %4313 = vmatpush.bf16.msra.mxu0 %v3967
        %4314 = vmatmul.bf16.gmra.mxu0 %v3710
        %v4315 = vpop.f32.mrf.mxu0
        %v4316 = vadd.f32 %v4267, %v4315
        %v4317 = vpop.f32.mrf.mxu0
        %v4318 = vadd.f32 %v4269, %v4317
        %4319 = vmatmul.bf16.gmra.mxu0 %v3712
        %v4320 = vpop.f32.mrf.mxu0
        %v4321 = vadd.f32 %v4272, %v4320
        %v4322 = vpop.f32.mrf.mxu0
        %v4323 = vadd.f32 %v4274, %v4322
        %4324 = vmatmul.bf16.gmra.mxu0 %v3714
        %v4325 = vpop.f32.mrf.mxu0
        %v4326 = vadd.f32 %v4277, %v4325
        %v4327 = vpop.f32.mrf.mxu0
        %v4328 = vadd.f32 %v4279, %v4327
        %4329 = vmatmul.bf16.gmra.mxu0 %v3716
        %v4330 = vpop.f32.mrf.mxu0
        %v4331 = vadd.f32 %v4282, %v4330
        %v4332 = vpop.f32.mrf.mxu0
        %v4333 = vadd.f32 %v4284, %v4332
        %4334 = vmatmul.bf16.gmra.mxu0 %v3718
        %v4335 = vpop.f32.mrf.mxu0
        %v4336 = vadd.f32 %v4287, %v4335
        %v4337 = vpop.f32.mrf.mxu0
        %v4338 = vadd.f32 %v4289, %v4337
        %4339 = vmatmul.bf16.gmra.mxu0 %v3720
        %v4340 = vpop.f32.mrf.mxu0
        %v4341 = vadd.f32 %v4292, %v4340
        %v4342 = vpop.f32.mrf.mxu0
        %v4343 = vadd.f32 %v4294, %v4342
        %4344 = vmatmul.bf16.gmra.mxu0 %v3722
        %v4345 = vpop.f32.mrf.mxu0
        %v4346 = vadd.f32 %v4297, %v4345
        %v4347 = vpop.f32.mrf.mxu0
        %v4348 = vadd.f32 %v4299, %v4347
        %4349 = vmatmul.bf16.gmra.mxu0 %v3724
        %v4350 = vpop.f32.mrf.mxu0
        %v4351 = vadd.f32 %v4302, %v4350
        %v4352 = vpop.f32.mrf.mxu0
        %v4353 = vadd.f32 %v4304, %v4352
        %4354 = vdwg.mxu0
        %4355 = vmatpush.bf16.msra.mxu0 %v3964
        %4356 = vmatpush.bf16.msra.mxu0 %v3960
        %4357 = vmatpush.bf16.msra.mxu0 %v3956
        %4358 = vmatpush.bf16.msra.mxu0 %v3952
        %4359 = vmatpush.bf16.msra.mxu0 %v3948
        %4360 = vmatpush.bf16.msra.mxu0 %v3944
        %4361 = vmatpush.bf16.msra.mxu0 %v3940
        %4362 = vmatpush.bf16.msra.mxu0 %v3936
        %4363 = vmatmul.bf16.gmra.mxu0 %v3709
        %v4364 = vpop.f32.mrf.mxu0
        %v4365 = vadd.f32 %v3656, %v4364
        %v4366 = vpop.f32.mrf.mxu0
        %v4367 = vadd.f32 %v3656, %v4366
        %4368 = vmatmul.bf16.gmra.mxu0 %v3711
        %v4369 = vpop.f32.mrf.mxu0
        %v4370 = vadd.f32 %v3656, %v4369
        %v4371 = vpop.f32.mrf.mxu0
        %v4372 = vadd.f32 %v3656, %v4371
        %4373 = vmatmul.bf16.gmra.mxu0 %v3713
        %v4374 = vpop.f32.mrf.mxu0
        %v4375 = vadd.f32 %v3656, %v4374
        %v4376 = vpop.f32.mrf.mxu0
        %v4377 = vadd.f32 %v3656, %v4376
        %4378 = vmatmul.bf16.gmra.mxu0 %v3715
        %v4379 = vpop.f32.mrf.mxu0
        %v4380 = vadd.f32 %v3656, %v4379
        %v4381 = vpop.f32.mrf.mxu0
        %v4382 = vadd.f32 %v3656, %v4381
        %4383 = vmatmul.bf16.gmra.mxu0 %v3717
        %v4384 = vpop.f32.mrf.mxu0
        %v4385 = vadd.f32 %v3656, %v4384
        %v4386 = vpop.f32.mrf.mxu0
        %v4387 = vadd.f32 %v3656, %v4386
        %4388 = vmatmul.bf16.gmra.mxu0 %v3719
        %v4389 = vpop.f32.mrf.mxu0
        %v4390 = vadd.f32 %v3656, %v4389
        %v4391 = vpop.f32.mrf.mxu0
        %v4392 = vadd.f32 %v3656, %v4391
        %4393 = vmatmul.bf16.gmra.mxu0 %v3721
        %v4394 = vpop.f32.mrf.mxu0
        %v4395 = vadd.f32 %v3656, %v4394
        %v4396 = vpop.f32.mrf.mxu0
        %v4397 = vadd.f32 %v3656, %v4396
        %4398 = vmatmul.bf16.gmra.mxu0 %v3723
        %v4399 = vpop.f32.mrf.mxu0
        %v4400 = vadd.f32 %v3656, %v4399
        %v4401 = vpop.f32.mrf.mxu0
        %v4402 = vadd.f32 %v3656, %v4401
        %4403 = vdwg.mxu0
        %4404 = vmatpush.bf16.msra.mxu0 %v3996
        %4405 = vmatpush.bf16.msra.mxu0 %v3992
        %4406 = vmatpush.bf16.msra.mxu0 %v3988
        %4407 = vmatpush.bf16.msra.mxu0 %v3984
        %4408 = vmatpush.bf16.msra.mxu0 %v3980
        %4409 = vmatpush.bf16.msra.mxu0 %v3976
        %4410 = vmatpush.bf16.msra.mxu0 %v3972
        %4411 = vmatpush.bf16.msra.mxu0 %v3968
        %4412 = vmatmul.bf16.gmra.mxu0 %v3710
        %v4413 = vpop.f32.mrf.mxu0
        %v4414 = vadd.f32 %v4365, %v4413
        %v4415 = vpop.f32.mrf.mxu0
        %v4416 = vadd.f32 %v4367, %v4415
        %4417 = vmatmul.bf16.gmra.mxu0 %v3712
        %v4418 = vpop.f32.mrf.mxu0
        %v4419 = vadd.f32 %v4370, %v4418
        %v4420 = vpop.f32.mrf.mxu0
        %v4421 = vadd.f32 %v4372, %v4420
        %4422 = vmatmul.bf16.gmra.mxu0 %v3714
        %v4423 = vpop.f32.mrf.mxu0
        %v4424 = vadd.f32 %v4375, %v4423
        %v4425 = vpop.f32.mrf.mxu0
        %v4426 = vadd.f32 %v4377, %v4425
        %4427 = vmatmul.bf16.gmra.mxu0 %v3716
        %v4428 = vpop.f32.mrf.mxu0
        %v4429 = vadd.f32 %v4380, %v4428
        %v4430 = vpop.f32.mrf.mxu0
        %v4431 = vadd.f32 %v4382, %v4430
        %4432 = vmatmul.bf16.gmra.mxu0 %v3718
        %v4433 = vpop.f32.mrf.mxu0
        %v4434 = vadd.f32 %v4385, %v4433
        %v4435 = vpop.f32.mrf.mxu0
        %v4436 = vadd.f32 %v4387, %v4435
        %4437 = vmatmul.bf16.gmra.mxu0 %v3720
        %v4438 = vpop.f32.mrf.mxu0
        %v4439 = vadd.f32 %v4390, %v4438
        %v4440 = vpop.f32.mrf.mxu0
        %v4441 = vadd.f32 %v4392, %v4440
        %4442 = vmatmul.bf16.gmra.mxu0 %v3722
        %v4443 = vpop.f32.mrf.mxu0
        %v4444 = vadd.f32 %v4395, %v4443
        %v4445 = vpop.f32.mrf.mxu0
        %v4446 = vadd.f32 %v4397, %v4445
        %4447 = vmatmul.bf16.gmra.mxu0 %v3724
        %v4448 = vpop.f32.mrf.mxu0
        %v4449 = vadd.f32 %v4400, %v4448
        %v4450 = vpop.f32.mrf.mxu0
        %v4451 = vadd.f32 %v4402, %v4450
        %4452 = vdwg.mxu0
        %v4453 = vpack.c.bf16 %v4218, %v4120
        %v4454 = vpack.c.bf16 %v4414, %v4316
        %v4455 = vpack.c.bf16 %v4220, %v4122
        %v4456 = vpack.c.bf16 %v4416, %v4318
        %v4457 = vpack.c.bf16 %v4223, %v4125
        %v4458 = vpack.c.bf16 %v4419, %v4321
        %v4459 = vpack.c.bf16 %v4225, %v4127
        %v4460 = vpack.c.bf16 %v4421, %v4323
        %v4461 = vpack.c.bf16 %v4228, %v4130
        %v4462 = vpack.c.bf16 %v4424, %v4326
        %v4463 = vpack.c.bf16 %v4230, %v4132
        %v4464 = vpack.c.bf16 %v4426, %v4328
        %v4465 = vpack.c.bf16 %v4233, %v4135
        %v4466 = vpack.c.bf16 %v4429, %v4331
        %v4467 = vpack.c.bf16 %v4235, %v4137
        %v4468 = vpack.c.bf16 %v4431, %v4333
        %v4469 = vpack.c.bf16 %v4238, %v4140
        %v4470 = vpack.c.bf16 %v4434, %v4336
        %v4471 = vpack.c.bf16 %v4240, %v4142
        %v4472 = vpack.c.bf16 %v4436, %v4338
        %v4473 = vpack.c.bf16 %v4243, %v4145
        %v4474 = vpack.c.bf16 %v4439, %v4341
        %v4475 = vpack.c.bf16 %v4245, %v4147
        %v4476 = vpack.c.bf16 %v4441, %v4343
        %v4477 = vpack.c.bf16 %v4248, %v4150
        %v4478 = vpack.c.bf16 %v4444, %v4346
        %v4479 = vpack.c.bf16 %v4250, %v4152
        %v4480 = vpack.c.bf16 %v4446, %v4348
        %v4481 = vpack.c.bf16 %v4253, %v4155
        %v4482 = vpack.c.bf16 %v4449, %v4351
        %v4483 = vpack.c.bf16 %v4255, %v4157
        %v4484 = vpack.c.bf16 %v4451, %v4353
        %4485 = vst [vmem:[%s508] sm:$0xff] %v4453
        %4486 = vst [vmem:[%s508 + $0x8] sm:$0xff] %v4454
        %4487 = vst [vmem:[%s508 + $0x10] sm:$0xff] %v4455
        %4488 = vst [vmem:[%s508 + $0x18] sm:$0xff] %v4456
        %4489 = vst [vmem:[%s508 + $0x20] sm:$0xff] %v4457
        %4490 = vst [vmem:[%s508 + $0x28] sm:$0xff] %v4458
        %4491 = vst [vmem:[%s508 + $0x30] sm:$0xff] %v4459
        %4492 = vst [vmem:[%s508 + $0x38] sm:$0xff] %v4460
        %4493 = vst [vmem:[%s508 + $0x40] sm:$0xff] %v4461
        %4494 = vst [vmem:[%s508 + $0x48] sm:$0xff] %v4462
        %4495 = vst [vmem:[%s508 + $0x50] sm:$0xff] %v4463
        %4496 = vst [vmem:[%s508 + $0x58] sm:$0xff] %v4464
        %4497 = vst [vmem:[%s508 + $0x60] sm:$0xff] %v4465
        %4498 = vst [vmem:[%s508 + $0x68] sm:$0xff] %v4466
        %4499 = vst [vmem:[%s508 + $0x70] sm:$0xff] %v4467
        %4500 = vst [vmem:[%s508 + $0x78] sm:$0xff] %v4468
        %4501 = vst [vmem:[%s508 + $0x80] sm:$0xff] %v4469
        %4502 = vst [vmem:[%s508 + $0x88] sm:$0xff] %v4470
        %4503 = vst [vmem:[%s508 + $0x90] sm:$0xff] %v4471
        %4504 = vst [vmem:[%s508 + $0x98] sm:$0xff] %v4472
        %4505 = vst [vmem:[%s508 + $0xa0] sm:$0xff] %v4473
        %4506 = vst [vmem:[%s508 + $0xa8] sm:$0xff] %v4474
        %4507 = vst [vmem:[%s508 + $0xb0] sm:$0xff] %v4475
        %4508 = vst [vmem:[%s508 + $0xb8] sm:$0xff] %v4476
        %4509 = vst [vmem:[%s508 + $0xc0] sm:$0xff] %v4477
        %4510 = vst [vmem:[%s508 + $0xc8] sm:$0xff] %v4478
        %4511 = vst [vmem:[%s508 + $0xd0] sm:$0xff] %v4479
        %4512 = vst [vmem:[%s508 + $0xd8] sm:$0xff] %v4480
        %4513 = vst [vmem:[%s508 + $0xe0] sm:$0xff] %v4481
        %4514 = vst [vmem:[%s508 + $0xe8] sm:$0xff] %v4482
        %4515 = vst [vmem:[%s508 + $0xf0] sm:$0xff] %v4483
        %4516 = vst [vmem:[%s508 + $0xf8] sm:$0xff] %v4484
        %s4517 = sand.u32 %s282, 1
        %s4518 = scalar_lea.sflag [#allocation5], %s4517
        %s4519 = sand.u32 %s282, 1
        %s4520 = smul.addr %s4519, 256
        %s4521 = scalar_lea.vmem [#allocation9], %s4520
        %s4522 = smul.u32 16, %s34
        %p4523 = scmp.lt.s32.totalorder %s4522, 31
        %s4524 = scalar_select %p4523, %s4522, 31
        %s4525 = smul.addr %s4524, 8
        %s4526 = scalar_lea.vmem %s11, %s4525
        // Predicated region
        $region77: #{multivae_forward.1} parent=59 // pred_check
          %p4527 = pneg %p292
        $region78: #{multivae_forward.1} parent=59 // pred_check_branch
          %4529 = sbr.rel (%p4527) target = $region80
        $region79: #{multivae_forward.1} parent=59 // pred_region
          %s4530 = smul.u32 16, %s34
          %s4531 = smul.u32 4, %s35
          %4533 = vsyncadd %s4518, 0
          %s4534 = smul.addr %s4530, 8
          %s4535 = sadd.s32 %s4531, %s4534
          %s4536 = smul.addr %s4535, 4
          %s4537 = scalar_lea.hbm %s10, %s4536
          %s4538 = sshll.u32 %s4521, 4
          %s4539 = int_to_ptr.vmem [resolvable:$true] %s4538
          %s4540 = sshll.u32 %s4537, 4
          %s4541 = int_to_ptr.hbm [resolvable:$true] %s4540
          %4546 = dma.vmem_to_hbm [thread:$0]  %s4539, 4096, %s4541, %s4518, 256, 512, 16
        $region80: #{multivae_forward.1} parent=59 // pred_fallthru
          _
        // Predicated region
        $region81: #{multivae_forward.1} parent=59 // pred_check
          %p4547 = pneg %p318
        $region82: #{multivae_forward.1} parent=59 // pred_check_branch
          %4549 = sbr.rel (%p4547) target = $region84
        $region83: #{multivae_forward.1} parent=59 // pred_region
          %s4550 = smul.u32 16, %s34
        $region84: #{multivae_forward.1} parent=59 // pred_fallthru
          _
      $region60: #{multivae_forward.1} parent=5 // pred_fallthru
        _
      %p4551 = scmp.le.s32.totalorder 2, %s25
      // Predicated region
      $region85: #{multivae_forward.1} parent=5 // pred_check
        %p4552 = pneg %p4551
      $region86: #{multivae_forward.1} parent=5 // pred_check_branch
        %4554 = sbr.rel (%p4552) target = $region88
      $region87: #{multivae_forward.1} parent=5 // pred_region
        %s4555 = ssub.s32 %s25, 2
        // Predicated region
        $region89: #{multivae_forward.1} parent=87 // pred_check
          %p4556 = pneg %p298
        $region90: #{multivae_forward.1} parent=87 // pred_check_branch
          %4558 = sbr.rel (%p4556) target = $region92
        $region91: #{multivae_forward.1} parent=87 // pred_region
          %s4559 = sand.u32 %s283, 1
          %s4560 = scalar_lea.sflag [#allocation5], %s4559
          %s4561 = sand.u32 %s283, 1
          %s4562 = smul.addr %s4561, 256
          %s4563 = scalar_lea.vmem [#allocation9], %s4562
          %4565 = dma.done %s4560, 4096
        $region92: #{multivae_forward.1} parent=87 // pred_fallthru
          _
        // Predicated region
        $region93: #{multivae_forward.1} parent=87 // pred_check
          %p4566 = pneg %p324
        $region94: #{multivae_forward.1} parent=87 // pred_check_branch
          %4568 = sbr.rel (%p4566) target = $region96
        $region95: #{multivae_forward.1} parent=87 // pred_region
          %s4569 = smul.u32 16, %s36
          %p4570 = scmp.lt.s32.totalorder %s4569, 31
          %s4571 = scalar_select %p4570, %s4569, 31
          %s4572 = smul.addr %s4571, 8
          %s4573 = scalar_lea.vmem %s11, %s4572
        $region96: #{multivae_forward.1} parent=87 // pred_fallthru
          _
      $region88: #{multivae_forward.1} parent=5 // pred_fallthru
        _
    $region6: #{multivae_forward.1} parent=1 // loop_footer
      %s29 = sadd.s32 1, %s25
    $region7: #{multivae_forward.1} parent=1 // loop_footer_branch
      %24 = sbr.rel target = $region3
    $region8: #{multivae_forward.1} parent=1 // loop_exit
      _
    %4574 = vsyncpa [#allocation4], 1
    %s4575 = scalar_lea.sflag [#allocation4], 1
    %4576 = vsyncpa %s4575, 1
    %4577 = vsyncpa [#allocation7], 1
    %4578 = vsyncpa [#allocation5], 1
    %s4579 = scalar_lea.sflag [#allocation5], 1
    %4580 = vsyncpa %s4579, 1

</llo_original>
